<compile_context>
chip_gen: v5e
topology: v5e:2x2
jax: 0.10.0
libtpu: 0.0.40
codegen_flags: <defaults>
</compile_context>

<pallas_src>
import functools

import jax
import jax.numpy as jnp
from jax.experimental import pallas as pl
from jax.experimental.pallas import tpu as pltpu


# ------------------------------ fused kernel --------------------------------

def _netdepth_kernel(xp_ref, w1_ref, b1_ref, w2_ref, b2_ref, w3_ref, b3_ref,
                     wf1_ref, bf1_ref, wf2_ref, bf2_ref,
                     o_ref,
                     s1_ref, g2_ref, p2_ref, z2_ref, g3_ref, p3_ref, z3_ref,
                     feat_ref,
                     *, NB, H, W, C1, C2, C3, E2, E3):
    H2, W2 = H // 2, W // 2
    H3, W3 = H // 4, W // 4
    H4, W4 = H // 8, W // 8
    PH2, PW2 = H2 + 2, W2 + 2          # padded (ring=1) stage-2 grid extents
    PH3, PW3 = H3 + 2, W3 + 2          # padded (ring=1) stage-3 grid extents
    R1 = NB * H * W                    # stage-1 rows (unpadded, flattened (n,y,x))
    R2 = NB * PH2 * PW2                # stage-2 rows (padded, flattened)
    R3 = NB * PH3 * PW3                # stage-3 rows (padded, flattened)

    # ---- conv1 + ReLU: single MXU matmul on wrapper-built 9-tap patches -------
    z1 = jnp.dot(xp_ref[...], w1_ref[...], preferred_element_type=jnp.float32)
    s1_ref[0:R1, :] = jnp.maximum(z1 + b1_ref[...], 0.0)

    # ---- pool1: 2x2 max via 3 shifted row slices.  Windows never straddle the
    #      image boundary, so window-corner rows (even y, even x) are exact; all
    #      other rows are garbage and are never gathered below.
    m1 = s1_ref[0:R1, :]
    for d in (1, W, W + 1):
        m1 = jnp.maximum(m1, s1_ref[d:d + R1, :])
    s1_ref[0:R1, :] = m1

    # gather pooled rows into the interior of the zero-ringed stage-2 grid
    g2_ref[...] = jnp.zeros_like(g2_ref)          # tiny buffer; ring must be 0
    for n in range(NB):
        for i in range(H2):
            src = n * H * W + (2 * i) * W
            dst = E2 + n * PH2 * PW2 + (1 + i) * PW2 + 1
            g2_ref[dst:dst + W2, :] = s1_ref[pl.ds(src, W2, stride=2), :]

    # ---- conv2 + ReLU: K-concatenated im2col -> one (R2, 9*C1) x (9*C1, C2) ----
    for t in range(9):
        ky, kx = t // 3, t % 3
        d = (ky - 1) * PW2 + (kx - 1)
        p2_ref[:, t * C1:(t + 1) * C1] = g2_ref[E2 + d:E2 + d + R2, :]
    z2 = jnp.dot(p2_ref[...], w2_ref[...], preferred_element_type=jnp.float32)
    z2_ref[0:R2, :] = jnp.maximum(z2 + b2_ref[...], 0.0)

    # ---- pool2 + gather into zero-ringed stage-3 grid --------------------------
    m2 = z2_ref[0:R2, :]
    for d in (1, PW2, PW2 + 1):
        m2 = jnp.maximum(m2, z2_ref[d:d + R2, :])
    z2_ref[0:R2, :] = m2

    g3_ref[...] = jnp.zeros_like(g3_ref)
    for n in range(NB):
        for i in range(H3):
            src = n * PH2 * PW2 + (1 + 2 * i) * PW2 + 1
            dst = E3 + n * PH3 * PW3 + (1 + i) * PW3 + 1
            g3_ref[dst:dst + W3, :] = z2_ref[pl.ds(src, W3, stride=2), :]

    # ---- conv3 + ReLU -----------------------------------------------------------
    for t in range(9):
        ky, kx = t // 3, t % 3
        d = (ky - 1) * PW3 + (kx - 1)
        p3_ref[:, t * C2:(t + 1) * C2] = g3_ref[E3 + d:E3 + d + R3, :]
    z3 = jnp.dot(p3_ref[...], w3_ref[...], preferred_element_type=jnp.float32)
    z3_ref[0:R3, :] = jnp.maximum(z3 + b3_ref[...], 0.0)

    # ---- pool3 ------------------------------------------------------------------
    m3 = z3_ref[0:R3, :]
    for d in (1, PW3, PW3 + 1):
        m3 = jnp.maximum(m3, z3_ref[d:d + R3, :])
    z3_ref[0:R3, :] = m3

    # ---- fc1 + ReLU + fc2, batched over the sample block -----------------------
    # feat[n, s*C3 + c] = pool3[n, c, y4, x4] with s = y4*W4 + x4; the fc1 weights
    # are pre-permuted in the wrapper so this matches PyTorch's NCHW flatten.
    for s in range(H4 * W4):
        y4, x4 = s // W4, s % W4
        start = (1 + 2 * y4) * PW3 + (1 + 2 * x4)
        feat_ref[:, s * C3:(s + 1) * C3] = z3_ref[pl.ds(start, NB, stride=PH3 * PW3), :]
    h = jnp.dot(feat_ref[...], wf1_ref[...], preferred_element_type=jnp.float32)
    h = jnp.maximum(h + bf1_ref[...], 0.0)
    logits = jnp.dot(h, wf2_ref[...], preferred_element_type=jnp.float32) + bf2_ref[...]
    o_ref[...] = logits.astype(o_ref.dtype)      # one lane-dense (NB, 128) store


# ------------------------------ host wrapper ---------------------------------

def _ru(x, m):
    return (x + m - 1) // m * m


def net_depth_forward(x_nchw, params):
    """NetDepth forward.  x_nchw: (N, 1, H, W) float32 -> (N, 10) float32."""
    N, Cin, H, W = x_nchw.shape
    assert Cin == 1, "NetDepth expects a single input channel"
    assert H % 8 == 0 and W % 8 == 0, "H and W must be divisible by 8 (3 pools)"

    C1 = params["conv1_w"].shape[0]
    C2 = params["conv2_w"].shape[0]
    C3 = params["conv3_w"].shape[0]
    assert C2 == C3, "conv2/conv3 channel counts must match (module spec)"
    F1 = params["fc1_w"].shape[0]
    F2 = params["fc2_w"].shape[0]
    H2, W2 = H // 2, W // 2
    H3, W3 = H // 4, W // 4
    H4, W4 = H // 8, W // 8
    PH2, PW2 = H2 + 2, W2 + 2
    PH3, PW3 = H3 + 2, W3 + 2
    assert params["fc1_w"].shape[1] == C3 * H4 * W4

    # Batch blocking: NB samples per grid step, "parallel" across cores.
    if N <= 8:
        NB, Npad = N, N
    else:
        NB, Npad = 8, _ru(N, 8)

    R1 = NB * H * W
    R2 = NB * PH2 * PW2
    R3 = NB * PH3 * PW3
    G1 = _ru(W + 2, 8)          # trailing guard rows for the pool-1 row shifts
    G2 = _ru(PW2 + 2, 8)        # trailing guards for pool-2 shifts
    G3 = _ru(PW3 + 2, 8)        # trailing guards for pool-3 shifts
    E2 = _ru(PW2 + 2, 8)        # leading/trailing guards for conv-2 tap shifts
    E3 = _ru(PW3 + 2, 8)        # leading/trailing guards for conv-3 tap shifts
    F2P = 128                   # fc2 output padded to a lane-dense slab

    # ---- conv1 im2col in the wrapper (layout plumbing only; Cin == 1) ----------
    x = x_nchw[:, 0].astype(jnp.float32)
    if Npad > N:
        x = jnp.concatenate([x, jnp.zeros((Npad - N, H, W), jnp.float32)], axis=0)
    xpad = jnp.pad(x, ((0, 0), (1, 1), (1, 1)))
    taps = [xpad[:, ky:ky + H, kx:kx + W] for ky in range(3) for kx in range(3)]
    xp = jnp.stack(taps, axis=-1).reshape(Npad * H * W, 9)

    # ---- weight prep: per-tap matrices concatenated along K --------------------
    w1 = jnp.transpose(params["conv1_w"], (2, 3, 1, 0)).reshape(9, C1).astype(jnp.float32)
    w2 = jnp.transpose(params["conv2_w"], (2, 3, 1, 0)).reshape(9 * C1, C2).astype(jnp.float32)
    w3 = jnp.transpose(params["conv3_w"], (2, 3, 1, 0)).reshape(9 * C2, C3).astype(jnp.float32)
    b1 = params["conv1_b"].reshape(1, C1).astype(jnp.float32)
    b2 = params["conv2_b"].reshape(1, C2).astype(jnp.float32)
    b3 = params["conv3_b"].reshape(1, C3).astype(jnp.float32)
    # fc1 pre-permuted: wf1[s*C3 + c, o] = fc1_w[o, c*H4*W4 + s]
    wf1 = (params["fc1_w"].reshape(F1, C3, H4 * W4).transpose(2, 1, 0)
           .reshape(H4 * W4 * C3, F1).astype(jnp.float32))
    bf1 = params["fc1_b"].reshape(1, F1).astype(jnp.float32)
    wf2 = jnp.zeros((F1, F2P), jnp.float32).at[:, :F2].set(params["fc2_w"].T)
    bf2 = jnp.zeros((1, F2P), jnp.float32).at[:, :F2].set(params["fc2_b"][None, :])

    scratch_defs = [
        (R1 + G1, C1),        # conv1 output, then pool1 maxima
        (R2 + 2 * E2, C1),    # zero-ringed stage-2 grid (compacted pool1)
        (R2, 9 * C1),         # conv2 im2col patch matrix (lane-dense)
        (R2 + G2, C2),        # conv2 output, then pool2 maxima
        (R3 + 2 * E3, C2),    # zero-ringed stage-3 grid (compacted pool2)
        (R3, 9 * C2),         # conv3 im2col patch matrix
        (R3 + G3, C3),        # conv3 output, then pool3 maxima
        (NB, H4 * W4 * C3),   # gathered fc1 features
    ]
    scratch_shapes = [pltpu.VMEM(s, jnp.float32) for s in scratch_defs]

    # VMEM sizing from the actual footprint (tile-padded) with generous headroom.
    def _tile_bytes(r, c):
        return _ru(r, 8) * _ru(c, 128) * 4

    vmem = sum(_tile_bytes(*s) for s in scratch_defs)
    vmem += 2 * _tile_bytes(NB * H * W, 9) + 2 * _tile_bytes(NB, F2P)
    for arr in (w1, b1, w2, b2, w3, b3, wf1, bf1, wf2, bf2):
        vmem += 2 * _tile_bytes(*arr.shape)
    vmem_limit = int(max(4 * vmem + (8 << 20), 16 << 20))

    kernel = functools.partial(
        _netdepth_kernel,
        NB=NB, H=H, W=W, C1=C1, C2=C2, C3=C3, E2=E2, E3=E3)

    out = pl.pallas_call(
        kernel,
        out_shape=jax.ShapeDtypeStruct((Npad, F2P), jnp.float32),
        grid_spec=pltpu.PrefetchScalarGridSpec(
            num_scalar_prefetch=0,
            grid=(Npad // NB,),
            in_specs=[
                pl.BlockSpec((NB * H * W, 9), lambda i: (i, 0)),       # conv1 patches
                pl.BlockSpec((9, C1), lambda i: (0, 0)),               # w1
                pl.BlockSpec((1, C1), lambda i: (0, 0)),               # b1
                pl.BlockSpec((9 * C1, C2), lambda i: (0, 0)),          # w2 (K-concat)
                pl.BlockSpec((1, C2), lambda i: (0, 0)),               # b2
                pl.BlockSpec((9 * C2, C3), lambda i: (0, 0)),          # w3 (K-concat)
                pl.BlockSpec((1, C3), lambda i: (0, 0)),               # b3
                pl.BlockSpec((H4 * W4 * C3, F1), lambda i: (0, 0)),    # fc1 (permuted)
                pl.BlockSpec((1, F1), lambda i: (0, 0)),               # fc1 bias
                pl.BlockSpec((F1, F2P), lambda i: (0, 0)),             # fc2 (padded)
                pl.BlockSpec((1, F2P), lambda i: (0, 0)),              # fc2 bias (padded)
            ],
            out_specs=pl.BlockSpec((NB, F2P), lambda i: (i, 0)),
            scratch_shapes=scratch_shapes,
        ),
        compiler_params=pltpu.CompilerParams(
            dimension_semantics=("parallel",),
            vmem_limit_bytes=vmem_limit,
        ),
    )(xp, w1, b1, w2, b2, w3, b3, wf1, bf1, wf2, bf2)

    return out[:N, :F2]


# ------------------------- plain-JAX reference (check) -----------------------

def net_depth_reference(x, params):
    hi = jax.lax.Precision.HIGHEST

    def conv(y, w, b):
        z = jax.lax.conv_general_dilated(
            y, w, window_strides=(1, 1), padding=((1, 1), (1, 1)),
            dimension_numbers=("NCHW", "OIHW", "NCHW"), precision=hi)
        return jax.nn.relu(z + b[None, :, None, None])

    def pool(y):
        return jax.lax.reduce_window(y, -jnp.inf, jax.lax.max,
                                     (1, 1, 2, 2), (1, 1, 2, 2), "VALID")

    y = pool(conv(x, params["conv1_w"], params["conv1_b"]))
    y = pool(conv(y, params["conv2_w"], params["conv2_b"]))
    y = pool(conv(y, params["conv3_w"], params["conv3_b"]))
    flat = y.reshape(y.shape[0], -1)
    h = jax.nn.relu(jnp.matmul(flat, params["fc1_w"].T, precision=hi)
                    + params["fc1_b"])
    return jnp.matmul(h, params["fc2_w"].T, precision=hi) + params["fc2_b"]


# -------------------------------- parameters ---------------------------------

def init_params(height, width, n_chans1=32):
    c2 = n_chans1 // 2
    fc_in = (height // 8) * (width // 8) * n_chans1 // 2
    key = jax.random.PRNGKey(0)
    ks = jax.random.split(key, 10)

    def rnd(k, shape, scale=0.1):
        return scale * jax.random.normal(k, shape, jnp.float32)

    return {
        "conv1_w": rnd(ks[0], (n_chans1, 1, 3, 3)),
        "conv1_b": rnd(ks[1], (n_chans1,)),
        "conv2_w": rnd(ks[2], (c2, n_chans1, 3, 3)),
        "conv2_b": rnd(ks[3], (c2,)),
        "conv3_w": rnd(ks[4], (c2, c2, 3, 3)),
        "conv3_b": rnd(ks[5], (c2,)),
        "fc1_w": rnd(ks[6], (32, fc_in)),
        "fc1_b": rnd(ks[7], (32,)),
        "fc2_w": rnd(ks[8], (10, 32)),
        "fc2_b": rnd(ks[9], (10,)),
    }


# ----------------------------------- main -------------------------------------

if __name__ == "__main__":
    batch, height, width, n_chans1 = 2, 16, 16, 32
    params = init_params(height, width, n_chans1)

    x = jax.random.normal(jax.random.PRNGKey(0), (batch, 1, height, width), jnp.float32)

    out = jax.jit(net_depth_forward)(x, params)
    jax.block_until_ready(out)
    assert out.shape == (batch, 10), out.shape

    ref = net_depth_reference(x, params)
    err = float(jnp.max(jnp.abs(out - ref)))
    assert err < 2e-3, f"mismatch vs reference: max abs err = {err}"

    print("KERNEL_OK")
</pallas_src>

<mosaic_0001>
module attributes {stable_mosaic.version = 11 : i64} {
  func.func @_netdepth_kernel(%arg0: i32, %arg1: memref<512x9xf32, #tpu.memory_space<vmem>>, %arg2: memref<9x32xf32, #tpu.memory_space<vmem>>, %arg3: memref<1x32xf32, #tpu.memory_space<vmem>>, %arg4: memref<288x16xf32, #tpu.memory_space<vmem>>, %arg5: memref<1x16xf32, #tpu.memory_space<vmem>>, %arg6: memref<144x16xf32, #tpu.memory_space<vmem>>, %arg7: memref<1x16xf32, #tpu.memory_space<vmem>>, %arg8: memref<64x32xf32, #tpu.memory_space<vmem>>, %arg9: memref<1x32xf32, #tpu.memory_space<vmem>>, %arg10: memref<32x128xf32, #tpu.memory_space<vmem>>, %arg11: memref<1x128xf32, #tpu.memory_space<vmem>>, %arg12: memref<2x128xf32, #tpu.memory_space<vmem>>, %arg13: memref<536x32xf32, #tpu.memory_space<vmem>>, %arg14: memref<232x32xf32, #tpu.memory_space<vmem>>, %arg15: memref<200x288xf32, #tpu.memory_space<vmem>>, %arg16: memref<216x16xf32, #tpu.memory_space<vmem>>, %arg17: memref<88x16xf32, #tpu.memory_space<vmem>>, %arg18: memref<72x144xf32, #tpu.memory_space<vmem>>, %arg19: memref<80x16xf32, #tpu.memory_space<vmem>>, %arg20: memref<2x64xf32, #tpu.memory_space<vmem>>) attributes {dimension_semantics = [#tpu.dimension_semantics<parallel>], iteration_bounds = array<i64: 1>, scalar_prefetch = 0 : i64, scratch_operands = 8 : i64, tpu.core_type = #tpu.core_type<tc>, window_params = [{transform_indices = @transform_0, window_bounds = array<i64: 512, 9>}, {pipeline_mode = #tpu.pipeline_mode<synchronous>, transform_indices = @transform_1, window_bounds = array<i64: 9, 32>}, {pipeline_mode = #tpu.pipeline_mode<synchronous>, transform_indices = @transform_2, window_bounds = array<i64: 1, 32>}, {pipeline_mode = #tpu.pipeline_mode<synchronous>, transform_indices = @transform_3, window_bounds = array<i64: 288, 16>}, {pipeline_mode = #tpu.pipeline_mode<synchronous>, transform_indices = @transform_4, window_bounds = array<i64: 1, 16>}, {pipeline_mode = #tpu.pipeline_mode<synchronous>, transform_indices = @transform_5, window_bounds = array<i64: 144, 16>}, {pipeline_mode = #tpu.pipeline_mode<synchronous>, transform_indices = @transform_6, window_bounds = array<i64: 1, 16>}, {pipeline_mode = #tpu.pipeline_mode<synchronous>, transform_indices = @transform_7, window_bounds = array<i64: 64, 32>}, {pipeline_mode = #tpu.pipeline_mode<synchronous>, transform_indices = @transform_8, window_bounds = array<i64: 1, 32>}, {pipeline_mode = #tpu.pipeline_mode<synchronous>, transform_indices = @transform_9, window_bounds = array<i64: 32, 128>}, {pipeline_mode = #tpu.pipeline_mode<synchronous>, transform_indices = @transform_10, window_bounds = array<i64: 1, 128>}, {transform_indices = @transform_11, window_bounds = array<i64: 2, 128>}]} {
    %c0 = arith.constant 0 : index
    %c0_0 = arith.constant 0 : index
    %0 = vector.load %arg1[%c0, %c0_0] : memref<512x9xf32, #tpu.memory_space<vmem>>, vector<512x9xf32>
    %c0_1 = arith.constant 0 : index
    %c0_2 = arith.constant 0 : index
    %1 = vector.load %arg2[%c0_1, %c0_2] : memref<9x32xf32, #tpu.memory_space<vmem>>, vector<9x32xf32>
    %cst = arith.constant dense<0.000000e+00> : vector<512x32xf32>
    %2 = tpu.matmul %0, %1, %cst {dimension_numbers = #tpu.dot_dimension_numbers<[1], [0], [0], [1], [0, 0, 1, 1], [], []>} : vector<512x9xf32>, vector<9x32xf32>, vector<512x32xf32> -> vector<512x32xf32>
    %c0_3 = arith.constant 0 : index
    %c0_4 = arith.constant 0 : index
    %3 = vector.load %arg3[%c0_3, %c0_4] : memref<1x32xf32, #tpu.memory_space<vmem>>, vector<1x32xf32>
    %4 = vector.broadcast %3 : vector<1x32xf32> to vector<512x32xf32>
    %5 = arith.addf %2, %4 : vector<512x32xf32>
    %cst_5 = arith.constant 0.000000e+00 : f32
    %6 = vector.broadcast %cst_5 : f32 to vector<512x32xf32>
    %7 = arith.maximumf %5, %6 : vector<512x32xf32>
    %c0_6 = arith.constant 0 : index
    %c0_7 = arith.constant 0 : index
    %8 = vector.load %arg13[%c0_6, %c0_7] : memref<536x32xf32, #tpu.memory_space<vmem>>, vector<512x32xf32>
    tpu.vector_store %arg13[%c0_6, %c0_7], %7 {strides = array<i32>} : memref<536x32xf32, #tpu.memory_space<vmem>>, vector<512x32xf32>,
    %c0_8 = arith.constant 0 : index
    %c0_9 = arith.constant 0 : index
    %9 = vector.load %arg13[%c0_8, %c0_9] : memref<536x32xf32, #tpu.memory_space<vmem>>, vector<512x32xf32>
    %c1 = arith.constant 1 : index
    %c0_10 = arith.constant 0 : index
    %10 = vector.load %arg13[%c1, %c0_10] : memref<536x32xf32, #tpu.memory_space<vmem>>, vector<512x32xf32>
    %11 = arith.maximumf %9, %10 : vector<512x32xf32>
    %c16 = arith.constant 16 : index
    %c0_11 = arith.constant 0 : index
    %12 = vector.load %arg13[%c16, %c0_11] : memref<536x32xf32, #tpu.memory_space<vmem>>, vector<512x32xf32>
    %13 = arith.maximumf %11, %12 : vector<512x32xf32>
    %c17 = arith.constant 17 : index
    %c0_12 = arith.constant 0 : index
    %14 = vector.load %arg13[%c17, %c0_12] : memref<536x32xf32, #tpu.memory_space<vmem>>, vector<512x32xf32>
    %15 = arith.maximumf %13, %14 : vector<512x32xf32>
    %c0_13 = arith.constant 0 : index
    %c0_14 = arith.constant 0 : index
    %16 = vector.load %arg13[%c0_13, %c0_14] : memref<536x32xf32, #tpu.memory_space<vmem>>, vector<512x32xf32>
    tpu.vector_store %arg13[%c0_13, %c0_14], %15 {strides = array<i32>} : memref<536x32xf32, #tpu.memory_space<vmem>>, vector<512x32xf32>,
    %cst_15 = arith.constant 0.000000e+00 : f32
    %17 = vector.broadcast %cst_15 : f32 to vector<232x32xf32>
    %c0_16 = arith.constant 0 : index
    %c0_17 = arith.constant 0 : index
    %18 = vector.load %arg14[%c0_16, %c0_17] : memref<232x32xf32, #tpu.memory_space<vmem>>, vector<232x32xf32>
    tpu.vector_store %arg14[%c0_16, %c0_17], %17 {strides = array<i32>} : memref<232x32xf32, #tpu.memory_space<vmem>>, vector<232x32xf32>,
    %c0_18 = arith.constant 0 : index
    %c0_19 = arith.constant 0 : index
    %19 = tpu.strided_load %arg13[%c0_18, %c0_19] {strides = array<i32: 2, 1>} : memref<536x32xf32, #tpu.memory_space<vmem>>, vector<8x32xf32>
    %c27 = arith.constant 27 : index
    %c0_20 = arith.constant 0 : index
    %20 = vector.load %arg14[%c27, %c0_20] : memref<232x32xf32, #tpu.memory_space<vmem>>, vector<8x32xf32>
    tpu.vector_store %arg14[%c27, %c0_20], %19 {strides = array<i32>} : memref<232x32xf32, #tpu.memory_space<vmem>>, vector<8x32xf32>,
    %c32 = arith.constant 32 : index
    %c0_21 = arith.constant 0 : index
    %21 = tpu.strided_load %arg13[%c32, %c0_21] {strides = array<i32: 2, 1>} : memref<536x32xf32, #tpu.memory_space<vmem>>, vector<8x32xf32>
    %c37 = arith.constant 37 : index
    %c0_22 = arith.constant 0 : index
    %22 = vector.load %arg14[%c37, %c0_22] : memref<232x32xf32, #tpu.memory_space<vmem>>, vector<8x32xf32>
    tpu.vector_store %arg14[%c37, %c0_22], %21 {strides = array<i32>} : memref<232x32xf32, #tpu.memory_space<vmem>>, vector<8x32xf32>,
    %c64 = arith.constant 64 : index
    %c0_23 = arith.constant 0 : index
    %23 = tpu.strided_load %arg13[%c64, %c0_23] {strides = array<i32: 2, 1>} : memref<536x32xf32, #tpu.memory_space<vmem>>, vector<8x32xf32>
    %c47 = arith.constant 47 : index
    %c0_24 = arith.constant 0 : index
    %24 = vector.load %arg14[%c47, %c0_24] : memref<232x32xf32, #tpu.memory_space<vmem>>, vector<8x32xf32>
    tpu.vector_store %arg14[%c47, %c0_24], %23 {strides = array<i32>} : memref<232x32xf32, #tpu.memory_space<vmem>>, vector<8x32xf32>,
    %c96 = arith.constant 96 : index
    %c0_25 = arith.constant 0 : index
    %25 = tpu.strided_load %arg13[%c96, %c0_25] {strides = array<i32: 2, 1>} : memref<536x32xf32, #tpu.memory_space<vmem>>, vector<8x32xf32>
    %c57 = arith.constant 57 : index
    %c0_26 = arith.constant 0 : index
    %26 = vector.load %arg14[%c57, %c0_26] : memref<232x32xf32, #tpu.memory_space<vmem>>, vector<8x32xf32>
    tpu.vector_store %arg14[%c57, %c0_26], %25 {strides = array<i32>} : memref<232x32xf32, #tpu.memory_space<vmem>>, vector<8x32xf32>,
    %c128 = arith.constant 128 : index
    %c0_27 = arith.constant 0 : index
    %27 = tpu.strided_load %arg13[%c128, %c0_27] {strides = array<i32: 2, 1>} : memref<536x32xf32, #tpu.memory_space<vmem>>, vector<8x32xf32>
    %c67 = arith.constant 67 : index
    %c0_28 = arith.constant 0 : index
    %28 = vector.load %arg14[%c67, %c0_28] : memref<232x32xf32, #tpu.memory_space<vmem>>, vector<8x32xf32>
    tpu.vector_store %arg14[%c67, %c0_28], %27 {strides = array<i32>} : memref<232x32xf32, #tpu.memory_space<vmem>>, vector<8x32xf32>,
    %c160 = arith.constant 160 : index
    %c0_29 = arith.constant 0 : index
    %29 = tpu.strided_load %arg13[%c160, %c0_29] {strides = array<i32: 2, 1>} : memref<536x32xf32, #tpu.memory_space<vmem>>, vector<8x32xf32>
    %c77 = arith.constant 77 : index
    %c0_30 = arith.constant 0 : index
    %30 = vector.load %arg14[%c77, %c0_30] : memref<232x32xf32, #tpu.memory_space<vmem>>, vector<8x32xf32>
    tpu.vector_store %arg14[%c77, %c0_30], %29 {strides = array<i32>} : memref<232x32xf32, #tpu.memory_space<vmem>>, vector<8x32xf32>,
    %c192 = arith.constant 192 : index
    %c0_31 = arith.constant 0 : index
    %31 = tpu.strided_load %arg13[%c192, %c0_31] {strides = array<i32: 2, 1>} : memref<536x32xf32, #tpu.memory_space<vmem>>, vector<8x32xf32>
    %c87 = arith.constant 87 : index
    %c0_32 = arith.constant 0 : index
    %32 = vector.load %arg14[%c87, %c0_32] : memref<232x32xf32, #tpu.memory_space<vmem>>, vector<8x32xf32>
    tpu.vector_store %arg14[%c87, %c0_32], %31 {strides = array<i32>} : memref<232x32xf32, #tpu.memory_space<vmem>>, vector<8x32xf32>,
    %c224 = arith.constant 224 : index
    %c0_33 = arith.constant 0 : index
    %33 = tpu.strided_load %arg13[%c224, %c0_33] {strides = array<i32: 2, 1>} : memref<536x32xf32, #tpu.memory_space<vmem>>, vector<8x32xf32>
    %c97 = arith.constant 97 : index
    %c0_34 = arith.constant 0 : index
    %34 = vector.load %arg14[%c97, %c0_34] : memref<232x32xf32, #tpu.memory_space<vmem>>, vector<8x32xf32>
    tpu.vector_store %arg14[%c97, %c0_34], %33 {strides = array<i32>} : memref<232x32xf32, #tpu.memory_space<vmem>>, vector<8x32xf32>,
    %c256 = arith.constant 256 : index
    %c0_35 = arith.constant 0 : index
    %35 = tpu.strided_load %arg13[%c256, %c0_35] {strides = array<i32: 2, 1>} : memref<536x32xf32, #tpu.memory_space<vmem>>, vector<8x32xf32>
    %c127 = arith.constant 127 : index
    %c0_36 = arith.constant 0 : index
    %36 = vector.load %arg14[%c127, %c0_36] : memref<232x32xf32, #tpu.memory_space<vmem>>, vector<8x32xf32>
    tpu.vector_store %arg14[%c127, %c0_36], %35 {strides = array<i32>} : memref<232x32xf32, #tpu.memory_space<vmem>>, vector<8x32xf32>,
    %c288 = arith.constant 288 : index
    %c0_37 = arith.constant 0 : index
    %37 = tpu.strided_load %arg13[%c288, %c0_37] {strides = array<i32: 2, 1>} : memref<536x32xf32, #tpu.memory_space<vmem>>, vector<8x32xf32>
    %c137 = arith.constant 137 : index
    %c0_38 = arith.constant 0 : index
    %38 = vector.load %arg14[%c137, %c0_38] : memref<232x32xf32, #tpu.memory_space<vmem>>, vector<8x32xf32>
    tpu.vector_store %arg14[%c137, %c0_38], %37 {strides = array<i32>} : memref<232x32xf32, #tpu.memory_space<vmem>>, vector<8x32xf32>,
    %c320 = arith.constant 320 : index
    %c0_39 = arith.constant 0 : index
    %39 = tpu.strided_load %arg13[%c320, %c0_39] {strides = array<i32: 2, 1>} : memref<536x32xf32, #tpu.memory_space<vmem>>, vector<8x32xf32>
    %c147 = arith.constant 147 : index
    %c0_40 = arith.constant 0 : index
    %40 = vector.load %arg14[%c147, %c0_40] : memref<232x32xf32, #tpu.memory_space<vmem>>, vector<8x32xf32>
    tpu.vector_store %arg14[%c147, %c0_40], %39 {strides = array<i32>} : memref<232x32xf32, #tpu.memory_space<vmem>>, vector<8x32xf32>,
    %c352 = arith.constant 352 : index
    %c0_41 = arith.constant 0 : index
    %41 = tpu.strided_load %arg13[%c352, %c0_41] {strides = array<i32: 2, 1>} : memref<536x32xf32, #tpu.memory_space<vmem>>, vector<8x32xf32>
    %c157 = arith.constant 157 : index
    %c0_42 = arith.constant 0 : index
    %42 = vector.load %arg14[%c157, %c0_42] : memref<232x32xf32, #tpu.memory_space<vmem>>, vector<8x32xf32>
    tpu.vector_store %arg14[%c157, %c0_42], %41 {strides = array<i32>} : memref<232x32xf32, #tpu.memory_space<vmem>>, vector<8x32xf32>,
    %c384 = arith.constant 384 : index
    %c0_43 = arith.constant 0 : index
    %43 = tpu.strided_load %arg13[%c384, %c0_43] {strides = array<i32: 2, 1>} : memref<536x32xf32, #tpu.memory_space<vmem>>, vector<8x32xf32>
    %c167 = arith.constant 167 : index
    %c0_44 = arith.constant 0 : index
    %44 = vector.load %arg14[%c167, %c0_44] : memref<232x32xf32, #tpu.memory_space<vmem>>, vector<8x32xf32>
    tpu.vector_store %arg14[%c167, %c0_44], %43 {strides = array<i32>} : memref<232x32xf32, #tpu.memory_space<vmem>>, vector<8x32xf32>,
    %c416 = arith.constant 416 : index
    %c0_45 = arith.constant 0 : index
    %45 = tpu.strided_load %arg13[%c416, %c0_45] {strides = array<i32: 2, 1>} : memref<536x32xf32, #tpu.memory_space<vmem>>, vector<8x32xf32>
    %c177 = arith.constant 177 : index
    %c0_46 = arith.constant 0 : index
    %46 = vector.load %arg14[%c177, %c0_46] : memref<232x32xf32, #tpu.memory_space<vmem>>, vector<8x32xf32>
    tpu.vector_store %arg14[%c177, %c0_46], %45 {strides = array<i32>} : memref<232x32xf32, #tpu.memory_space<vmem>>, vector<8x32xf32>,
    %c448 = arith.constant 448 : index
    %c0_47 = arith.constant 0 : index
    %47 = tpu.strided_load %arg13[%c448, %c0_47] {strides = array<i32: 2, 1>} : memref<536x32xf32, #tpu.memory_space<vmem>>, vector<8x32xf32>
    %c187 = arith.constant 187 : index
    %c0_48 = arith.constant 0 : index
    %48 = vector.load %arg14[%c187, %c0_48] : memref<232x32xf32, #tpu.memory_space<vmem>>, vector<8x32xf32>
    tpu.vector_store %arg14[%c187, %c0_48], %47 {strides = array<i32>} : memref<232x32xf32, #tpu.memory_space<vmem>>, vector<8x32xf32>,
    %c480 = arith.constant 480 : index
    %c0_49 = arith.constant 0 : index
    %49 = tpu.strided_load %arg13[%c480, %c0_49] {strides = array<i32: 2, 1>} : memref<536x32xf32, #tpu.memory_space<vmem>>, vector<8x32xf32>
    %c197 = arith.constant 197 : index
    %c0_50 = arith.constant 0 : index
    %50 = vector.load %arg14[%c197, %c0_50] : memref<232x32xf32, #tpu.memory_space<vmem>>, vector<8x32xf32>
    tpu.vector_store %arg14[%c197, %c0_50], %49 {strides = array<i32>} : memref<232x32xf32, #tpu.memory_space<vmem>>, vector<8x32xf32>,
    %c5 = arith.constant 5 : index
    %c0_51 = arith.constant 0 : index
    %51 = vector.load %arg14[%c5, %c0_51] : memref<232x32xf32, #tpu.memory_space<vmem>>, vector<200x32xf32>
    %c0_52 = arith.constant 0 : index
    %c0_53 = arith.constant 0 : index
    %52 = vector.load %arg15[%c0_52, %c0_53] : memref<200x288xf32, #tpu.memory_space<vmem>>, vector<200x32xf32>
    tpu.vector_store %arg15[%c0_52, %c0_53], %51 {strides = array<i32>} : memref<200x288xf32, #tpu.memory_space<vmem>>, vector<200x32xf32>,
    %c6 = arith.constant 6 : index
    %c0_54 = arith.constant 0 : index
    %53 = vector.load %arg14[%c6, %c0_54] : memref<232x32xf32, #tpu.memory_space<vmem>>, vector<200x32xf32>
    %c0_55 = arith.constant 0 : index
    %c32_56 = arith.constant 32 : index
    %54 = vector.load %arg15[%c0_55, %c32_56] : memref<200x288xf32, #tpu.memory_space<vmem>>, vector<200x32xf32>
    tpu.vector_store %arg15[%c0_55, %c32_56], %53 {strides = array<i32>} : memref<200x288xf32, #tpu.memory_space<vmem>>, vector<200x32xf32>,
    %c7 = arith.constant 7 : index
    %c0_57 = arith.constant 0 : index
    %55 = vector.load %arg14[%c7, %c0_57] : memref<232x32xf32, #tpu.memory_space<vmem>>, vector<200x32xf32>
    %c0_58 = arith.constant 0 : index
    %c64_59 = arith.constant 64 : index
    %56 = vector.load %arg15[%c0_58, %c64_59] : memref<200x288xf32, #tpu.memory_space<vmem>>, vector<200x32xf32>
    tpu.vector_store %arg15[%c0_58, %c64_59], %55 {strides = array<i32>} : memref<200x288xf32, #tpu.memory_space<vmem>>, vector<200x32xf32>,
    %c15 = arith.constant 15 : index
    %c0_60 = arith.constant 0 : index
    %57 = vector.load %arg14[%c15, %c0_60] : memref<232x32xf32, #tpu.memory_space<vmem>>, vector<200x32xf32>
    %c0_61 = arith.constant 0 : index
    %c96_62 = arith.constant 96 : index
    %58 = vector.load %arg15[%c0_61, %c96_62] : memref<200x288xf32, #tpu.memory_space<vmem>>, vector<200x32xf32>
    tpu.vector_store %arg15[%c0_61, %c96_62], %57 {strides = array<i32>} : memref<200x288xf32, #tpu.memory_space<vmem>>, vector<200x32xf32>,
    %c16_63 = arith.constant 16 : index
    %c0_64 = arith.constant 0 : index
    %59 = vector.load %arg14[%c16_63, %c0_64] : memref<232x32xf32, #tpu.memory_space<vmem>>, vector<200x32xf32>
    %c0_65 = arith.constant 0 : index
    %c128_66 = arith.constant 128 : index
    %60 = vector.load %arg15[%c0_65, %c128_66] : memref<200x288xf32, #tpu.memory_space<vmem>>, vector<200x32xf32>
    tpu.vector_store %arg15[%c0_65, %c128_66], %59 {strides = array<i32>} : memref<200x288xf32, #tpu.memory_space<vmem>>, vector<200x32xf32>,
    %c17_67 = arith.constant 17 : index
    %c0_68 = arith.constant 0 : index
    %61 = vector.load %arg14[%c17_67, %c0_68] : memref<232x32xf32, #tpu.memory_space<vmem>>, vector<200x32xf32>
    %c0_69 = arith.constant 0 : index
    %c160_70 = arith.constant 160 : index
    %62 = vector.load %arg15[%c0_69, %c160_70] : memref<200x288xf32, #tpu.memory_space<vmem>>, vector<200x32xf32>
    tpu.vector_store %arg15[%c0_69, %c160_70], %61 {strides = array<i32>} : memref<200x288xf32, #tpu.memory_space<vmem>>, vector<200x32xf32>,
    %c25 = arith.constant 25 : index
    %c0_71 = arith.constant 0 : index
    %63 = vector.load %arg14[%c25, %c0_71] : memref<232x32xf32, #tpu.memory_space<vmem>>, vector<200x32xf32>
    %c0_72 = arith.constant 0 : index
    %c192_73 = arith.constant 192 : index
    %64 = vector.load %arg15[%c0_72, %c192_73] : memref<200x288xf32, #tpu.memory_space<vmem>>, vector<200x32xf32>
    tpu.vector_store %arg15[%c0_72, %c192_73], %63 {strides = array<i32>} : memref<200x288xf32, #tpu.memory_space<vmem>>, vector<200x32xf32>,
    %c26 = arith.constant 26 : index
    %c0_74 = arith.constant 0 : index
    %65 = vector.load %arg14[%c26, %c0_74] : memref<232x32xf32, #tpu.memory_space<vmem>>, vector<200x32xf32>
    %c0_75 = arith.constant 0 : index
    %c224_76 = arith.constant 224 : index
    %66 = vector.load %arg15[%c0_75, %c224_76] : memref<200x288xf32, #tpu.memory_space<vmem>>, vector<200x32xf32>
    tpu.vector_store %arg15[%c0_75, %c224_76], %65 {strides = array<i32>} : memref<200x288xf32, #tpu.memory_space<vmem>>, vector<200x32xf32>,
    %c27_77 = arith.constant 27 : index
    %c0_78 = arith.constant 0 : index
    %67 = vector.load %arg14[%c27_77, %c0_78] : memref<232x32xf32, #tpu.memory_space<vmem>>, vector<200x32xf32>
    %c0_79 = arith.constant 0 : index
    %c256_80 = arith.constant 256 : index
    %68 = vector.load %arg15[%c0_79, %c256_80] : memref<200x288xf32, #tpu.memory_space<vmem>>, vector<200x32xf32>
    tpu.vector_store %arg15[%c0_79, %c256_80], %67 {strides = array<i32>} : memref<200x288xf32, #tpu.memory_space<vmem>>, vector<200x32xf32>,
    %c0_81 = arith.constant 0 : index
    %c0_82 = arith.constant 0 : index
    %69 = vector.load %arg15[%c0_81, %c0_82] : memref<200x288xf32, #tpu.memory_space<vmem>>, vector<200x288xf32>
    %c0_83 = arith.constant 0 : index
    %c0_84 = arith.constant 0 : index
    %70 = vector.load %arg4[%c0_83, %c0_84] : memref<288x16xf32, #tpu.memory_space<vmem>>, vector<288x16xf32>
    %cst_85 = arith.constant dense<0.000000e+00> : vector<200x16xf32>
    %71 = tpu.matmul %69, %70, %cst_85 {dimension_numbers = #tpu.dot_dimension_numbers<[1], [0], [0], [1], [0, 0, 1, 1], [], []>} : vector<200x288xf32>, vector<288x16xf32>, vector<200x16xf32> -> vector<200x16xf32>
    %c0_86 = arith.constant 0 : index
    %c0_87 = arith.constant 0 : index
    %72 = vector.load %arg5[%c0_86, %c0_87] : memref<1x16xf32, #tpu.memory_space<vmem>>, vector<1x16xf32>
    %73 = vector.broadcast %72 : vector<1x16xf32> to vector<200x16xf32>
    %74 = arith.addf %71, %73 : vector<200x16xf32>
    %cst_88 = arith.constant 0.000000e+00 : f32
    %75 = vector.broadcast %cst_88 : f32 to vector<200x16xf32>
    %76 = arith.maximumf %74, %75 : vector<200x16xf32>
    %c0_89 = arith.constant 0 : index
    %c0_90 = arith.constant 0 : index
    %77 = vector.load %arg16[%c0_89, %c0_90] : memref<216x16xf32, #tpu.memory_space<vmem>>, vector<200x16xf32>
    tpu.vector_store %arg16[%c0_89, %c0_90], %76 {strides = array<i32>} : memref<216x16xf32, #tpu.memory_space<vmem>>, vector<200x16xf32>,
    %c0_91 = arith.constant 0 : index
    %c0_92 = arith.constant 0 : index
    %78 = vector.load %arg16[%c0_91, %c0_92] : memref<216x16xf32, #tpu.memory_space<vmem>>, vector<200x16xf32>
    %c1_93 = arith.constant 1 : index
    %c0_94 = arith.constant 0 : index
    %79 = vector.load %arg16[%c1_93, %c0_94] : memref<216x16xf32, #tpu.memory_space<vmem>>, vector<200x16xf32>
    %80 = arith.maximumf %78, %79 : vector<200x16xf32>
    %c10 = arith.constant 10 : index
    %c0_95 = arith.constant 0 : index
    %81 = vector.load %arg16[%c10, %c0_95] : memref<216x16xf32, #tpu.memory_space<vmem>>, vector<200x16xf32>
    %82 = arith.maximumf %80, %81 : vector<200x16xf32>
    %c11 = arith.constant 11 : index
    %c0_96 = arith.constant 0 : index
    %83 = vector.load %arg16[%c11, %c0_96] : memref<216x16xf32, #tpu.memory_space<vmem>>, vector<200x16xf32>
    %84 = arith.maximumf %82, %83 : vector<200x16xf32>
    %c0_97 = arith.constant 0 : index
    %c0_98 = arith.constant 0 : index
    %85 = vector.load %arg16[%c0_97, %c0_98] : memref<216x16xf32, #tpu.memory_space<vmem>>, vector<200x16xf32>
    tpu.vector_store %arg16[%c0_97, %c0_98], %84 {strides = array<i32>} : memref<216x16xf32, #tpu.memory_space<vmem>>, vector<200x16xf32>,
    %cst_99 = arith.constant 0.000000e+00 : f32
    %86 = vector.broadcast %cst_99 : f32 to vector<88x16xf32>
    %c0_100 = arith.constant 0 : index
    %c0_101 = arith.constant 0 : index
    %87 = vector.load %arg17[%c0_100, %c0_101] : memref<88x16xf32, #tpu.memory_space<vmem>>, vector<88x16xf32>
    tpu.vector_store %arg17[%c0_100, %c0_101], %86 {strides = array<i32>} : memref<88x16xf32, #tpu.memory_space<vmem>>, vector<88x16xf32>,
    %c11_102 = arith.constant 11 : index
    %c0_103 = arith.constant 0 : index
    %88 = tpu.strided_load %arg16[%c11_102, %c0_103] {strides = array<i32: 2, 1>} : memref<216x16xf32, #tpu.memory_space<vmem>>, vector<4x16xf32>
    %c15_104 = arith.constant 15 : index
    %c0_105 = arith.constant 0 : index
    %89 = vector.load %arg17[%c15_104, %c0_105] : memref<88x16xf32, #tpu.memory_space<vmem>>, vector<4x16xf32>
    tpu.vector_store %arg17[%c15_104, %c0_105], %88 {strides = array<i32>} : memref<88x16xf32, #tpu.memory_space<vmem>>, vector<4x16xf32>,
    %c31 = arith.constant 31 : index
    %c0_106 = arith.constant 0 : index
    %90 = tpu.strided_load %arg16[%c31, %c0_106] {strides = array<i32: 2, 1>} : memref<216x16xf32, #tpu.memory_space<vmem>>, vector<4x16xf32>
    %c21 = arith.constant 21 : index
    %c0_107 = arith.constant 0 : index
    %91 = vector.load %arg17[%c21, %c0_107] : memref<88x16xf32, #tpu.memory_space<vmem>>, vector<4x16xf32>
    tpu.vector_store %arg17[%c21, %c0_107], %90 {strides = array<i32>} : memref<88x16xf32, #tpu.memory_space<vmem>>, vector<4x16xf32>,
    %c51 = arith.constant 51 : index
    %c0_108 = arith.constant 0 : index
    %92 = tpu.strided_load %arg16[%c51, %c0_108] {strides = array<i32: 2, 1>} : memref<216x16xf32, #tpu.memory_space<vmem>>, vector<4x16xf32>
    %c27_109 = arith.constant 27 : index
    %c0_110 = arith.constant 0 : index
    %93 = vector.load %arg17[%c27_109, %c0_110] : memref<88x16xf32, #tpu.memory_space<vmem>>, vector<4x16xf32>
    tpu.vector_store %arg17[%c27_109, %c0_110], %92 {strides = array<i32>} : memref<88x16xf32, #tpu.memory_space<vmem>>, vector<4x16xf32>,
    %c71 = arith.constant 71 : index
    %c0_111 = arith.constant 0 : index
    %94 = tpu.strided_load %arg16[%c71, %c0_111] {strides = array<i32: 2, 1>} : memref<216x16xf32, #tpu.memory_space<vmem>>, vector<4x16xf32>
    %c33 = arith.constant 33 : index
    %c0_112 = arith.constant 0 : index
    %95 = vector.load %arg17[%c33, %c0_112] : memref<88x16xf32, #tpu.memory_space<vmem>>, vector<4x16xf32>
    tpu.vector_store %arg17[%c33, %c0_112], %94 {strides = array<i32>} : memref<88x16xf32, #tpu.memory_space<vmem>>, vector<4x16xf32>,
    %c111 = arith.constant 111 : index
    %c0_113 = arith.constant 0 : index
    %96 = tpu.strided_load %arg16[%c111, %c0_113] {strides = array<i32: 2, 1>} : memref<216x16xf32, #tpu.memory_space<vmem>>, vector<4x16xf32>
    %c51_114 = arith.constant 51 : index
    %c0_115 = arith.constant 0 : index
    %97 = vector.load %arg17[%c51_114, %c0_115] : memref<88x16xf32, #tpu.memory_space<vmem>>, vector<4x16xf32>
    tpu.vector_store %arg17[%c51_114, %c0_115], %96 {strides = array<i32>} : memref<88x16xf32, #tpu.memory_space<vmem>>, vector<4x16xf32>,
    %c131 = arith.constant 131 : index
    %c0_116 = arith.constant 0 : index
    %98 = tpu.strided_load %arg16[%c131, %c0_116] {strides = array<i32: 2, 1>} : memref<216x16xf32, #tpu.memory_space<vmem>>, vector<4x16xf32>
    %c57_117 = arith.constant 57 : index
    %c0_118 = arith.constant 0 : index
    %99 = vector.load %arg17[%c57_117, %c0_118] : memref<88x16xf32, #tpu.memory_space<vmem>>, vector<4x16xf32>
    tpu.vector_store %arg17[%c57_117, %c0_118], %98 {strides = array<i32>} : memref<88x16xf32, #tpu.memory_space<vmem>>, vector<4x16xf32>,
    %c151 = arith.constant 151 : index
    %c0_119 = arith.constant 0 : index
    %100 = tpu.strided_load %arg16[%c151, %c0_119] {strides = array<i32: 2, 1>} : memref<216x16xf32, #tpu.memory_space<vmem>>, vector<4x16xf32>
    %c63 = arith.constant 63 : index
    %c0_120 = arith.constant 0 : index
    %101 = vector.load %arg17[%c63, %c0_120] : memref<88x16xf32, #tpu.memory_space<vmem>>, vector<4x16xf32>
    tpu.vector_store %arg17[%c63, %c0_120], %100 {strides = array<i32>} : memref<88x16xf32, #tpu.memory_space<vmem>>, vector<4x16xf32>,
    %c171 = arith.constant 171 : index
    %c0_121 = arith.constant 0 : index
    %102 = tpu.strided_load %arg16[%c171, %c0_121] {strides = array<i32: 2, 1>} : memref<216x16xf32, #tpu.memory_space<vmem>>, vector<4x16xf32>
    %c69 = arith.constant 69 : index
    %c0_122 = arith.constant 0 : index
    %103 = vector.load %arg17[%c69, %c0_122] : memref<88x16xf32, #tpu.memory_space<vmem>>, vector<4x16xf32>
    tpu.vector_store %arg17[%c69, %c0_122], %102 {strides = array<i32>} : memref<88x16xf32, #tpu.memory_space<vmem>>, vector<4x16xf32>,
    %c1_123 = arith.constant 1 : index
    %c0_124 = arith.constant 0 : index
    %104 = vector.load %arg17[%c1_123, %c0_124] : memref<88x16xf32, #tpu.memory_space<vmem>>, vector<72x16xf32>
    %c0_125 = arith.constant 0 : index
    %c0_126 = arith.constant 0 : index
    %105 = vector.load %arg18[%c0_125, %c0_126] : memref<72x144xf32, #tpu.memory_space<vmem>>, vector<72x16xf32>
    tpu.vector_store %arg18[%c0_125, %c0_126], %104 {strides = array<i32>} : memref<72x144xf32, #tpu.memory_space<vmem>>, vector<72x16xf32>,
    %c2 = arith.constant 2 : index
    %c0_127 = arith.constant 0 : index
    %106 = vector.load %arg17[%c2, %c0_127] : memref<88x16xf32, #tpu.memory_space<vmem>>, vector<72x16xf32>
    %c0_128 = arith.constant 0 : index
    %c16_129 = arith.constant 16 : index
    %107 = vector.load %arg18[%c0_128, %c16_129] : memref<72x144xf32, #tpu.memory_space<vmem>>, vector<72x16xf32>
    tpu.vector_store %arg18[%c0_128, %c16_129], %106 {strides = array<i32>} : memref<72x144xf32, #tpu.memory_space<vmem>>, vector<72x16xf32>,
    %c3 = arith.constant 3 : index
    %c0_130 = arith.constant 0 : index
    %108 = vector.load %arg17[%c3, %c0_130] : memref<88x16xf32, #tpu.memory_space<vmem>>, vector<72x16xf32>
    %c0_131 = arith.constant 0 : index
    %c32_132 = arith.constant 32 : index
    %109 = vector.load %arg18[%c0_131, %c32_132] : memref<72x144xf32, #tpu.memory_space<vmem>>, vector<72x16xf32>
    tpu.vector_store %arg18[%c0_131, %c32_132], %108 {strides = array<i32>} : memref<72x144xf32, #tpu.memory_space<vmem>>, vector<72x16xf32>,
    %c7_133 = arith.constant 7 : index
    %c0_134 = arith.constant 0 : index
    %110 = vector.load %arg17[%c7_133, %c0_134] : memref<88x16xf32, #tpu.memory_space<vmem>>, vector<72x16xf32>
    %c0_135 = arith.constant 0 : index
    %c48 = arith.constant 48 : index
    %111 = vector.load %arg18[%c0_135, %c48] : memref<72x144xf32, #tpu.memory_space<vmem>>, vector<72x16xf32>
    tpu.vector_store %arg18[%c0_135, %c48], %110 {strides = array<i32>} : memref<72x144xf32, #tpu.memory_space<vmem>>, vector<72x16xf32>,
    %c8 = arith.constant 8 : index
    %c0_136 = arith.constant 0 : index
    %112 = vector.load %arg17[%c8, %c0_136] : memref<88x16xf32, #tpu.memory_space<vmem>>, vector<72x16xf32>
    %c0_137 = arith.constant 0 : index
    %c64_138 = arith.constant 64 : index
    %113 = vector.load %arg18[%c0_137, %c64_138] : memref<72x144xf32, #tpu.memory_space<vmem>>, vector<72x16xf32>
    tpu.vector_store %arg18[%c0_137, %c64_138], %112 {strides = array<i32>} : memref<72x144xf32, #tpu.memory_space<vmem>>, vector<72x16xf32>,
    %c9 = arith.constant 9 : index
    %c0_139 = arith.constant 0 : index
    %114 = vector.load %arg17[%c9, %c0_139] : memref<88x16xf32, #tpu.memory_space<vmem>>, vector<72x16xf32>
    %c0_140 = arith.constant 0 : index
    %c80 = arith.constant 80 : index
    %115 = vector.load %arg18[%c0_140, %c80] : memref<72x144xf32, #tpu.memory_space<vmem>>, vector<72x16xf32>
    tpu.vector_store %arg18[%c0_140, %c80], %114 {strides = array<i32>} : memref<72x144xf32, #tpu.memory_space<vmem>>, vector<72x16xf32>,
    %c13 = arith.constant 13 : index
    %c0_141 = arith.constant 0 : index
    %116 = vector.load %arg17[%c13, %c0_141] : memref<88x16xf32, #tpu.memory_space<vmem>>, vector<72x16xf32>
    %c0_142 = arith.constant 0 : index
    %c96_143 = arith.constant 96 : index
    %117 = vector.load %arg18[%c0_142, %c96_143] : memref<72x144xf32, #tpu.memory_space<vmem>>, vector<72x16xf32>
    tpu.vector_store %arg18[%c0_142, %c96_143], %116 {strides = array<i32>} : memref<72x144xf32, #tpu.memory_space<vmem>>, vector<72x16xf32>,
    %c14 = arith.constant 14 : index
    %c0_144 = arith.constant 0 : index
    %118 = vector.load %arg17[%c14, %c0_144] : memref<88x16xf32, #tpu.memory_space<vmem>>, vector<72x16xf32>
    %c0_145 = arith.constant 0 : index
    %c112 = arith.constant 112 : index
    %119 = vector.load %arg18[%c0_145, %c112] : memref<72x144xf32, #tpu.memory_space<vmem>>, vector<72x16xf32>
    tpu.vector_store %arg18[%c0_145, %c112], %118 {strides = array<i32>} : memref<72x144xf32, #tpu.memory_space<vmem>>, vector<72x16xf32>,
    %c15_146 = arith.constant 15 : index
    %c0_147 = arith.constant 0 : index
    %120 = vector.load %arg17[%c15_146, %c0_147] : memref<88x16xf32, #tpu.memory_space<vmem>>, vector<72x16xf32>
    %c0_148 = arith.constant 0 : index
    %c128_149 = arith.constant 128 : index
    %121 = vector.load %arg18[%c0_148, %c128_149] : memref<72x144xf32, #tpu.memory_space<vmem>>, vector<72x16xf32>
    tpu.vector_store %arg18[%c0_148, %c128_149], %120 {strides = array<i32>} : memref<72x144xf32, #tpu.memory_space<vmem>>, vector<72x16xf32>,
    %c0_150 = arith.constant 0 : index
    %c0_151 = arith.constant 0 : index
    %122 = vector.load %arg18[%c0_150, %c0_151] : memref<72x144xf32, #tpu.memory_space<vmem>>, vector<72x144xf32>
    %c0_152 = arith.constant 0 : index
    %c0_153 = arith.constant 0 : index
    %123 = vector.load %arg6[%c0_152, %c0_153] : memref<144x16xf32, #tpu.memory_space<vmem>>, vector<144x16xf32>
    %cst_154 = arith.constant dense<0.000000e+00> : vector<72x16xf32>
    %124 = tpu.matmul %122, %123, %cst_154 {dimension_numbers = #tpu.dot_dimension_numbers<[1], [0], [0], [1], [0, 0, 1, 1], [], []>} : vector<72x144xf32>, vector<144x16xf32>, vector<72x16xf32> -> vector<72x16xf32>
    %c0_155 = arith.constant 0 : index
    %c0_156 = arith.constant 0 : index
    %125 = vector.load %arg7[%c0_155, %c0_156] : memref<1x16xf32, #tpu.memory_space<vmem>>, vector<1x16xf32>
    %126 = vector.broadcast %125 : vector<1x16xf32> to vector<72x16xf32>
    %127 = arith.addf %124, %126 : vector<72x16xf32>
    %cst_157 = arith.constant 0.000000e+00 : f32
    %128 = vector.broadcast %cst_157 : f32 to vector<72x16xf32>
    %129 = arith.maximumf %127, %128 : vector<72x16xf32>
    %c0_158 = arith.constant 0 : index
    %c0_159 = arith.constant 0 : index
    %130 = vector.load %arg19[%c0_158, %c0_159] : memref<80x16xf32, #tpu.memory_space<vmem>>, vector<72x16xf32>
    tpu.vector_store %arg19[%c0_158, %c0_159], %129 {strides = array<i32>} : memref<80x16xf32, #tpu.memory_space<vmem>>, vector<72x16xf32>,
    %c0_160 = arith.constant 0 : index
    %c0_161 = arith.constant 0 : index
    %131 = vector.load %arg19[%c0_160, %c0_161] : memref<80x16xf32, #tpu.memory_space<vmem>>, vector<72x16xf32>
    %c1_162 = arith.constant 1 : index
    %c0_163 = arith.constant 0 : index
    %132 = vector.load %arg19[%c1_162, %c0_163] : memref<80x16xf32, #tpu.memory_space<vmem>>, vector<72x16xf32>
    %133 = arith.maximumf %131, %132 : vector<72x16xf32>
    %c6_164 = arith.constant 6 : index
    %c0_165 = arith.constant 0 : index
    %134 = vector.load %arg19[%c6_164, %c0_165] : memref<80x16xf32, #tpu.memory_space<vmem>>, vector<72x16xf32>
    %135 = arith.maximumf %133, %134 : vector<72x16xf32>
    %c7_166 = arith.constant 7 : index
    %c0_167 = arith.constant 0 : index
    %136 = vector.load %arg19[%c7_166, %c0_167] : memref<80x16xf32, #tpu.memory_space<vmem>>, vector<72x16xf32>
    %137 = arith.maximumf %135, %136 : vector<72x16xf32>
    %c0_168 = arith.constant 0 : index
    %c0_169 = arith.constant 0 : index
    %138 = vector.load %arg19[%c0_168, %c0_169] : memref<80x16xf32, #tpu.memory_space<vmem>>, vector<72x16xf32>
    tpu.vector_store %arg19[%c0_168, %c0_169], %137 {strides = array<i32>} : memref<80x16xf32, #tpu.memory_space<vmem>>, vector<72x16xf32>,
    %c7_170 = arith.constant 7 : index
    %c0_171 = arith.constant 0 : index
    %139 = tpu.strided_load %arg19[%c7_170, %c0_171] {strides = array<i32: 36, 1>} : memref<80x16xf32, #tpu.memory_space<vmem>>, vector<2x16xf32>
    %c0_172 = arith.constant 0 : index
    %c0_173 = arith.constant 0 : index
    %140 = vector.load %arg20[%c0_172, %c0_173] : memref<2x64xf32, #tpu.memory_space<vmem>>, vector<2x16xf32>
    tpu.vector_store %arg20[%c0_172, %c0_173], %139 {strides = array<i32>} : memref<2x64xf32, #tpu.memory_space<vmem>>, vector<2x16xf32>,
    %c9_174 = arith.constant 9 : index
    %c0_175 = arith.constant 0 : index
    %141 = tpu.strided_load %arg19[%c9_174, %c0_175] {strides = array<i32: 36, 1>} : memref<80x16xf32, #tpu.memory_space<vmem>>, vector<2x16xf32>
    %c0_176 = arith.constant 0 : index
    %c16_177 = arith.constant 16 : index
    %142 = vector.load %arg20[%c0_176, %c16_177] : memref<2x64xf32, #tpu.memory_space<vmem>>, vector<2x16xf32>
    tpu.vector_store %arg20[%c0_176, %c16_177], %141 {strides = array<i32>} : memref<2x64xf32, #tpu.memory_space<vmem>>, vector<2x16xf32>,
    %c19 = arith.constant 19 : index
    %c0_178 = arith.constant 0 : index
    %143 = tpu.strided_load %arg19[%c19, %c0_178] {strides = array<i32: 36, 1>} : memref<80x16xf32, #tpu.memory_space<vmem>>, vector<2x16xf32>
    %c0_179 = arith.constant 0 : index
    %c32_180 = arith.constant 32 : index
    %144 = vector.load %arg20[%c0_179, %c32_180] : memref<2x64xf32, #tpu.memory_space<vmem>>, vector<2x16xf32>
    tpu.vector_store %arg20[%c0_179, %c32_180], %143 {strides = array<i32>} : memref<2x64xf32, #tpu.memory_space<vmem>>, vector<2x16xf32>,
    %c21_181 = arith.constant 21 : index
    %c0_182 = arith.constant 0 : index
    %145 = tpu.strided_load %arg19[%c21_181, %c0_182] {strides = array<i32: 36, 1>} : memref<80x16xf32, #tpu.memory_space<vmem>>, vector<2x16xf32>
    %c0_183 = arith.constant 0 : index
    %c48_184 = arith.constant 48 : index
    %146 = vector.load %arg20[%c0_183, %c48_184] : memref<2x64xf32, #tpu.memory_space<vmem>>, vector<2x16xf32>
    tpu.vector_store %arg20[%c0_183, %c48_184], %145 {strides = array<i32>} : memref<2x64xf32, #tpu.memory_space<vmem>>, vector<2x16xf32>,
    %c0_185 = arith.constant 0 : index
    %c0_186 = arith.constant 0 : index
    %147 = vector.load %arg20[%c0_185, %c0_186] : memref<2x64xf32, #tpu.memory_space<vmem>>, vector<2x64xf32>
    %c0_187 = arith.constant 0 : index
    %c0_188 = arith.constant 0 : index
    %148 = vector.load %arg8[%c0_187, %c0_188] : memref<64x32xf32, #tpu.memory_space<vmem>>, vector<64x32xf32>
    %cst_189 = arith.constant dense<0.000000e+00> : vector<2x32xf32>
    %149 = tpu.matmul %147, %148, %cst_189 {dimension_numbers = #tpu.dot_dimension_numbers<[1], [0], [0], [1], [0, 0, 1, 1], [], []>} : vector<2x64xf32>, vector<64x32xf32>, vector<2x32xf32> -> vector<2x32xf32>
    %c0_190 = arith.constant 0 : index
    %c0_191 = arith.constant 0 : index
    %150 = vector.load %arg9[%c0_190, %c0_191] : memref<1x32xf32, #tpu.memory_space<vmem>>, vector<1x32xf32>
    %151 = vector.broadcast %150 : vector<1x32xf32> to vector<2x32xf32>
    %152 = arith.addf %149, %151 : vector<2x32xf32>
    %cst_192 = arith.constant 0.000000e+00 : f32
    %153 = vector.broadcast %cst_192 : f32 to vector<2x32xf32>
    %154 = arith.maximumf %152, %153 : vector<2x32xf32>
    %c0_193 = arith.constant 0 : index
    %c0_194 = arith.constant 0 : index
    %155 = vector.load %arg10[%c0_193, %c0_194] : memref<32x128xf32, #tpu.memory_space<vmem>>, vector<32x128xf32>
    %cst_195 = arith.constant dense<0.000000e+00> : vector<2x128xf32>
    %156 = tpu.matmul %154, %155, %cst_195 {dimension_numbers = #tpu.dot_dimension_numbers<[1], [0], [0], [1], [0, 0, 1, 1], [], []>} : vector<2x32xf32>, vector<32x128xf32>, vector<2x128xf32> -> vector<2x128xf32>
    %c0_196 = arith.constant 0 : index
    %c0_197 = arith.constant 0 : index
    %157 = vector.load %arg11[%c0_196, %c0_197] : memref<1x128xf32, #tpu.memory_space<vmem>>, vector<1x128xf32>
    %158 = vector.broadcast %157 : vector<1x128xf32> to vector<2x128xf32>
    %159 = arith.addf %156, %158 : vector<2x128xf32>
    %c0_198 = arith.constant 0 : index
    %c0_199 = arith.constant 0 : index
    %160 = vector.load %arg12[%c0_198, %c0_199] : memref<2x128xf32, #tpu.memory_space<vmem>>, vector<2x128xf32>
    tpu.vector_store %arg12[%c0_198, %c0_199], %159 {strides = array<i32>} : memref<2x128xf32, #tpu.memory_space<vmem>>, vector<2x128xf32>,
    return
  }
  func.func @transform_0(%arg0: i32) -> (i32, i32) {
    %c0_i32 = arith.constant 0 : i32
    %c0_i32_0 = arith.constant 0 : i32
    return %arg0, %c0_i32 : i32, i32
  }
  func.func @transform_1(%arg0: i32) -> (i32, i32) {
    %c0_i32 = arith.constant 0 : i32
    %c0_i32_0 = arith.constant 0 : i32
    %c0_i32_1 = arith.constant 0 : i32
    return %c0_i32, %c0_i32_0 : i32, i32
  }
  func.func @transform_2(%arg0: i32) -> (i32, i32) {
    %c0_i32 = arith.constant 0 : i32
    %c0_i32_0 = arith.constant 0 : i32
    %c0_i32_1 = arith.constant 0 : i32
    return %c0_i32, %c0_i32_0 : i32, i32
  }
  func.func @transform_3(%arg0: i32) -> (i32, i32) {
    %c0_i32 = arith.constant 0 : i32
    %c0_i32_0 = arith.constant 0 : i32
    %c0_i32_1 = arith.constant 0 : i32
    return %c0_i32, %c0_i32_0 : i32, i32
  }
  func.func @transform_4(%arg0: i32) -> (i32, i32) {
    %c0_i32 = arith.constant 0 : i32
    %c0_i32_0 = arith.constant 0 : i32
    %c0_i32_1 = arith.constant 0 : i32
    return %c0_i32, %c0_i32_0 : i32, i32
  }
  func.func @transform_5(%arg0: i32) -> (i32, i32) {
    %c0_i32 = arith.constant 0 : i32
    %c0_i32_0 = arith.constant 0 : i32
    %c0_i32_1 = arith.constant 0 : i32
    return %c0_i32, %c0_i32_0 : i32, i32
  }
  func.func @transform_6(%arg0: i32) -> (i32, i32) {
    %c0_i32 = arith.constant 0 : i32
    %c0_i32_0 = arith.constant 0 : i32
    %c0_i32_1 = arith.constant 0 : i32
    return %c0_i32, %c0_i32_0 : i32, i32
  }
  func.func @transform_7(%arg0: i32) -> (i32, i32) {
    %c0_i32 = arith.constant 0 : i32
    %c0_i32_0 = arith.constant 0 : i32
    %c0_i32_1 = arith.constant 0 : i32
    return %c0_i32, %c0_i32_0 : i32, i32
  }
  func.func @transform_8(%arg0: i32) -> (i32, i32) {
    %c0_i32 = arith.constant 0 : i32
    %c0_i32_0 = arith.constant 0 : i32
    %c0_i32_1 = arith.constant 0 : i32
    return %c0_i32, %c0_i32_0 : i32, i32
  }
  func.func @transform_9(%arg0: i32) -> (i32, i32) {
    %c0_i32 = arith.constant 0 : i32
    %c0_i32_0 = arith.constant 0 : i32
    %c0_i32_1 = arith.constant 0 : i32
    return %c0_i32, %c0_i32_0 : i32, i32
  }
  func.func @transform_10(%arg0: i32) -> (i32, i32) {
    %c0_i32 = arith.constant 0 : i32
    %c0_i32_0 = arith.constant 0 : i32
    %c0_i32_1 = arith.constant 0 : i32
    return %c0_i32, %c0_i32_0 : i32, i32
  }
  func.func @transform_11(%arg0: i32) -> (i32, i32) {
    %c0_i32 = arith.constant 0 : i32
    %c0_i32_0 = arith.constant 0 : i32
    return %arg0, %c0_i32 : i32, i32
  }
}

</mosaic_0001>

<llo_original>
// kernel: net_depth_forward.1
$region0: #{net_depth_forward.1}
  #allocation0 [shape = 'u32[]', space=smem, size = 0x4, offset = 0x4, fixed_abs, tag = 'smem constant byte address 0x4 - core index']
  #allocation1 [shape = 'u32[72,128]{1,0:T(1,128)}', space=vmem, size = 0x9000, scoped, tag = 'internal scratch']
  #allocation2 [shape = 'f32[536,32]{1,0:T(8,128)}', space=vmem, size = 0x43000, scoped, tag = 'scratch operand']
  #allocation3 [shape = 'f32[232,32]{1,0:T(8,128)}', space=vmem, size = 0x1d000, scoped, tag = 'scratch operand']
  #allocation4 [shape = 'f32[200,288]{1,0:T(8,128)}', space=vmem, size = 0x4b000, scoped, tag = 'scratch operand']
  #allocation5 [shape = 'f32[216,16]{1,0:T(8,128)}', space=vmem, size = 0x1b000, scoped, tag = 'scratch operand']
  #allocation6 [shape = 'f32[88,16]{1,0:T(8,128)}', space=vmem, size = 0xb000, scoped, tag = 'scratch operand']
  #allocation7 [shape = 'f32[72,144]{1,0:T(8,128)}', space=vmem, size = 0x12000, scoped, tag = 'scratch operand']
  #allocation8 [shape = 'f32[80,16]{1,0:T(8,128)}', space=vmem, size = 0xa000, scoped, tag = 'scratch operand']
  #allocation9 [shape = 'f32[2,64]{1,0:T(2,128)}', space=vmem, size = 0x400, scoped, tag = 'scratch operand']
  %s0 = inlined_call_operand.vmem [shape: f32[512,9], index: 0, kind: input, shape index: {}]
  %s1 = inlined_call_operand.vmem [shape: f32[9,32], index: 1, kind: input, shape index: {}]
  %s2 = inlined_call_operand.vmem [shape: f32[1,32], index: 2, kind: input, shape index: {}]
  %s3 = inlined_call_operand.vmem [shape: f32[288,16], index: 3, kind: input, shape index: {}]
  %s4 = inlined_call_operand.vmem [shape: f32[1,16], index: 4, kind: input, shape index: {}]
  %s5 = inlined_call_operand.vmem [shape: f32[144,16], index: 5, kind: input, shape index: {}]
  %s6 = inlined_call_operand.vmem [shape: f32[1,16], index: 6, kind: input, shape index: {}]
  %s7 = inlined_call_operand.vmem [shape: f32[64,32], index: 7, kind: input, shape index: {}]
  %s8 = inlined_call_operand.vmem [shape: f32[1,32], index: 8, kind: input, shape index: {}]
  %s9 = inlined_call_operand.vmem [shape: f32[32,128], index: 9, kind: input, shape index: {}]
  %s10 = inlined_call_operand.vmem [shape: f32[1,128], index: 10, kind: input, shape index: {}]
  %s11 = inlined_call_operand.hbm [shape: f32[2,128], index: 11, kind: output, shape index: {}]
  %s12 = sld [smem:[#allocation0]]
  $region54: #{net_depth_forward.1} parent=0
    _
  %s14 = ssub.s32 1, %s12
  %s15 = scalar_select 0, %s14, %s12
  $region1: #{net_depth_forward.1} parent=0
    #allocation10 [shape = 'u8[1024]{0}', space=vmem, size = 0x400, scoped, tag = 'output window, operand 0, single buffered']
    #allocation11 [shape = 's32[1]{0}', space=sflag, size = 0x4, scoped, tag = 'scoped memory for net_depth_forward.1']
    %16 = vsyncpa [#allocation11], 0
    // Predicated region
    $region2: #{net_depth_forward.1} parent=1 // pred_check
      _
    $region3: #{net_depth_forward.1} parent=1 // pred_check_branch
      %18 = sbr.rel (0) target = $region5
    $region4: #{net_depth_forward.1} parent=1 // pred_region
      _
    $region5: #{net_depth_forward.1} parent=1 // pred_fallthru
      _
    // Predicated region
    $region6: #{net_depth_forward.1} parent=1 // pred_check
      _
    $region7: #{net_depth_forward.1} parent=1 // pred_check_branch
      %20 = sbr.rel (0) target = $region9
    $region8: #{net_depth_forward.1} parent=1 // pred_region
      _
    $region9: #{net_depth_forward.1} parent=1 // pred_fallthru
      _
    // Predicated region
    $region10: #{net_depth_forward.1} parent=1 // pred_check
      _
    $region11: #{net_depth_forward.1} parent=1 // pred_check_branch
      %22 = sbr.rel (0) target = $region13
    $region12: #{net_depth_forward.1} parent=1 // pred_region
      _
    $region13: #{net_depth_forward.1} parent=1 // pred_fallthru
      _
    // Predicated region
    $region14: #{net_depth_forward.1} parent=1 // pred_check
      _
    $region15: #{net_depth_forward.1} parent=1 // pred_check_branch
      %24 = sbr.rel (0) target = $region17
    $region16: #{net_depth_forward.1} parent=1 // pred_region
      _
    $region17: #{net_depth_forward.1} parent=1 // pred_fallthru
      _
    // Predicated region
    $region18: #{net_depth_forward.1} parent=1 // pred_check
      _
    $region19: #{net_depth_forward.1} parent=1 // pred_check_branch
      %26 = sbr.rel (0) target = $region21
    $region20: #{net_depth_forward.1} parent=1 // pred_region
      _
    $region21: #{net_depth_forward.1} parent=1 // pred_fallthru
      _
    // Predicated region
    $region22: #{net_depth_forward.1} parent=1 // pred_check
      _
    $region23: #{net_depth_forward.1} parent=1 // pred_check_branch
      %28 = sbr.rel (0) target = $region25
    $region24: #{net_depth_forward.1} parent=1 // pred_region
      _
    $region25: #{net_depth_forward.1} parent=1 // pred_fallthru
      _
    // Predicated region
    $region26: #{net_depth_forward.1} parent=1 // pred_check
      _
    $region27: #{net_depth_forward.1} parent=1 // pred_check_branch
      %30 = sbr.rel (0) target = $region29
    $region28: #{net_depth_forward.1} parent=1 // pred_region
      _
    $region29: #{net_depth_forward.1} parent=1 // pred_fallthru
      _
    // Predicated region
    $region30: #{net_depth_forward.1} parent=1 // pred_check
      _
    $region31: #{net_depth_forward.1} parent=1 // pred_check_branch
      %32 = sbr.rel (0) target = $region33
    $region32: #{net_depth_forward.1} parent=1 // pred_region
      _
    $region33: #{net_depth_forward.1} parent=1 // pred_fallthru
      _
    // Predicated region
    $region34: #{net_depth_forward.1} parent=1 // pred_check
      _
    $region35: #{net_depth_forward.1} parent=1 // pred_check_branch
      %34 = sbr.rel (0) target = $region37
    $region36: #{net_depth_forward.1} parent=1 // pred_region
      _
    $region37: #{net_depth_forward.1} parent=1 // pred_fallthru
      _
    // Predicated region
    $region38: #{net_depth_forward.1} parent=1 // pred_check
      _
    $region39: #{net_depth_forward.1} parent=1 // pred_check_branch
      %36 = sbr.rel (0) target = $region41
    $region40: #{net_depth_forward.1} parent=1 // pred_region
      _
    $region41: #{net_depth_forward.1} parent=1 // pred_fallthru
      _
    // Predicated region
    $region42: #{net_depth_forward.1} parent=1 // pred_check
      _
    $region43: #{net_depth_forward.1} parent=1 // pred_check_branch
      %38 = sbr.rel (0) target = $region45
    $region44: #{net_depth_forward.1} parent=1 // pred_region
      _
    $region45: #{net_depth_forward.1} parent=1 // pred_fallthru
      _
    %v39 = vld [vmem:[%s0] sm:$0xff]
    %v40 = vld [vmem:[%s0 + $0x8] sm:$0xff]
    %v41 = vld [vmem:[%s0 + $0x10] sm:$0xff]
    %v42 = vld [vmem:[%s0 + $0x18] sm:$0xff]
    %v43 = vld [vmem:[%s0 + $0x20] sm:$0xff]
    %v44 = vld [vmem:[%s0 + $0x28] sm:$0xff]
    %v45 = vld [vmem:[%s0 + $0x30] sm:$0xff]
    %v46 = vld [vmem:[%s0 + $0x38] sm:$0xff]
    %v47 = vld [vmem:[%s0 + $0x40] sm:$0xff]
    %v48 = vld [vmem:[%s0 + $0x48] sm:$0xff]
    %v49 = vld [vmem:[%s0 + $0x50] sm:$0xff]
    %v50 = vld [vmem:[%s0 + $0x58] sm:$0xff]
    %v51 = vld [vmem:[%s0 + $0x60] sm:$0xff]
    %v52 = vld [vmem:[%s0 + $0x68] sm:$0xff]
    %v53 = vld [vmem:[%s0 + $0x70] sm:$0xff]
    %v54 = vld [vmem:[%s0 + $0x78] sm:$0xff]
    %v55 = vld [vmem:[%s0 + $0x80] sm:$0xff]
    %v56 = vld [vmem:[%s0 + $0x88] sm:$0xff]
    %v57 = vld [vmem:[%s0 + $0x90] sm:$0xff]
    %v58 = vld [vmem:[%s0 + $0x98] sm:$0xff]
    %v59 = vld [vmem:[%s0 + $0xa0] sm:$0xff]
    %v60 = vld [vmem:[%s0 + $0xa8] sm:$0xff]
    %v61 = vld [vmem:[%s0 + $0xb0] sm:$0xff]
    %v62 = vld [vmem:[%s0 + $0xb8] sm:$0xff]
    %v63 = vld [vmem:[%s0 + $0xc0] sm:$0xff]
    %v64 = vld [vmem:[%s0 + $0xc8] sm:$0xff]
    %v65 = vld [vmem:[%s0 + $0xd0] sm:$0xff]
    %v66 = vld [vmem:[%s0 + $0xd8] sm:$0xff]
    %v67 = vld [vmem:[%s0 + $0xe0] sm:$0xff]
    %v68 = vld [vmem:[%s0 + $0xe8] sm:$0xff]
    %v69 = vld [vmem:[%s0 + $0xf0] sm:$0xff]
    %v70 = vld [vmem:[%s0 + $0xf8] sm:$0xff]
    %v71 = vld [vmem:[%s0 + $0x100] sm:$0xff]
    %v72 = vld [vmem:[%s0 + $0x108] sm:$0xff]
    %v73 = vld [vmem:[%s0 + $0x110] sm:$0xff]
    %v74 = vld [vmem:[%s0 + $0x118] sm:$0xff]
    %v75 = vld [vmem:[%s0 + $0x120] sm:$0xff]
    %v76 = vld [vmem:[%s0 + $0x128] sm:$0xff]
    %v77 = vld [vmem:[%s0 + $0x130] sm:$0xff]
    %v78 = vld [vmem:[%s0 + $0x138] sm:$0xff]
    %v79 = vld [vmem:[%s0 + $0x140] sm:$0xff]
    %v80 = vld [vmem:[%s0 + $0x148] sm:$0xff]
    %v81 = vld [vmem:[%s0 + $0x150] sm:$0xff]
    %v82 = vld [vmem:[%s0 + $0x158] sm:$0xff]
    %v83 = vld [vmem:[%s0 + $0x160] sm:$0xff]
    %v84 = vld [vmem:[%s0 + $0x168] sm:$0xff]
    %v85 = vld [vmem:[%s0 + $0x170] sm:$0xff]
    %v86 = vld [vmem:[%s0 + $0x178] sm:$0xff]
    %v87 = vld [vmem:[%s0 + $0x180] sm:$0xff]
    %v88 = vld [vmem:[%s0 + $0x188] sm:$0xff]
    %v89 = vld [vmem:[%s0 + $0x190] sm:$0xff]
    %v90 = vld [vmem:[%s0 + $0x198] sm:$0xff]
    %v91 = vld [vmem:[%s0 + $0x1a0] sm:$0xff]
    %v92 = vld [vmem:[%s0 + $0x1a8] sm:$0xff]
    %v93 = vld [vmem:[%s0 + $0x1b0] sm:$0xff]
    %v94 = vld [vmem:[%s0 + $0x1b8] sm:$0xff]
    %v95 = vld [vmem:[%s0 + $0x1c0] sm:$0xff]
    %v96 = vld [vmem:[%s0 + $0x1c8] sm:$0xff]
    %v97 = vld [vmem:[%s0 + $0x1d0] sm:$0xff]
    %v98 = vld [vmem:[%s0 + $0x1d8] sm:$0xff]
    %v99 = vld [vmem:[%s0 + $0x1e0] sm:$0xff]
    %v100 = vld [vmem:[%s0 + $0x1e8] sm:$0xff]
    %v101 = vld [vmem:[%s0 + $0x1f0] sm:$0xff]
    %v102 = vld [vmem:[%s0 + $0x1f8] sm:$0xff]
    %v103 = vld [vmem:[%s1] sm:$0xff]
    %v104 = vld [vmem:[%s1 + $0x8] sm:$0x1]
    %v105 = vld [vmem:[%s2] sm:$0x1]
    %v107 = vperm.slane %v105, 0
    %vm109 = vcmask 72704
    %v111 = vsel %vm109, %v39, 0
    %v114 = vsel %vm109, %v40, 0
    %v117 = vsel %vm109, %v41, 0
    %v120 = vsel %vm109, %v42, 0
    %v123 = vsel %vm109, %v43, 0
    %v126 = vsel %vm109, %v44, 0
    %v129 = vsel %vm109, %v45, 0
    %v132 = vsel %vm109, %v46, 0
    %v135 = vsel %vm109, %v47, 0
    %v138 = vsel %vm109, %v48, 0
    %v141 = vsel %vm109, %v49, 0
    %v144 = vsel %vm109, %v50, 0
    %v147 = vsel %vm109, %v51, 0
    %v150 = vsel %vm109, %v52, 0
    %v153 = vsel %vm109, %v53, 0
    %v156 = vsel %vm109, %v54, 0
    %v159 = vsel %vm109, %v55, 0
    %v162 = vsel %vm109, %v56, 0
    %v165 = vsel %vm109, %v57, 0
    %v168 = vsel %vm109, %v58, 0
    %v171 = vsel %vm109, %v59, 0
    %v174 = vsel %vm109, %v60, 0
    %v177 = vsel %vm109, %v61, 0
    %v180 = vsel %vm109, %v62, 0
    %v183 = vsel %vm109, %v63, 0
    %v186 = vsel %vm109, %v64, 0
    %v189 = vsel %vm109, %v65, 0
    %v192 = vsel %vm109, %v66, 0
    %v195 = vsel %vm109, %v67, 0
    %v198 = vsel %vm109, %v68, 0
    %v201 = vsel %vm109, %v69, 0
    %v204 = vsel %vm109, %v70, 0
    %v207 = vsel %vm109, %v71, 0
    %v210 = vsel %vm109, %v72, 0
    %v213 = vsel %vm109, %v73, 0
    %v216 = vsel %vm109, %v74, 0
    %v219 = vsel %vm109, %v75, 0
    %v222 = vsel %vm109, %v76, 0
    %v225 = vsel %vm109, %v77, 0
    %v228 = vsel %vm109, %v78, 0
    %v231 = vsel %vm109, %v79, 0
    %v234 = vsel %vm109, %v80, 0
    %v237 = vsel %vm109, %v81, 0
    %v240 = vsel %vm109, %v82, 0
    %v243 = vsel %vm109, %v83, 0
    %v246 = vsel %vm109, %v84, 0
    %v249 = vsel %vm109, %v85, 0
    %v252 = vsel %vm109, %v86, 0
    %v255 = vsel %vm109, %v87, 0
    %v258 = vsel %vm109, %v88, 0
    %v261 = vsel %vm109, %v89, 0
    %v264 = vsel %vm109, %v90, 0
    %v267 = vsel %vm109, %v91, 0
    %v270 = vsel %vm109, %v92, 0
    %v273 = vsel %vm109, %v93, 0
    %v276 = vsel %vm109, %v94, 0
    %v279 = vsel %vm109, %v95, 0
    %v282 = vsel %vm109, %v96, 0
    %v285 = vsel %vm109, %v97, 0
    %v288 = vsel %vm109, %v98, 0
    %v291 = vsel %vm109, %v99, 0
    %v294 = vsel %vm109, %v100, 0
    %v297 = vsel %vm109, %v101, 0
    %v300 = vsel %vm109, %v102, 0
    %vm302 = vcmask 1040384
    %v304 = vsel %vm302, %v104, 0
    %306 = vmatpush.msra.mxu0 0.0
    %307 = vmatpush.msra.mxu0 0.0
    %308 = vmatpush.msra.mxu0 0.0
    %309 = vmatpush.msra.mxu0 0.0
    %310 = vmatpush.msra.mxu0 0.0
    %311 = vmatpush.msra.mxu0 0.0
    %312 = vmatpush.msra.mxu0 0.0
    %313 = vmatpush.msra.mxu0 0.0
    %314 = vmatpush.msra.mxu0 0.0
    %315 = vmatpush.msra.mxu0 0.0
    %316 = vmatpush.msra.mxu0 0.0
    %317 = vmatpush.msra.mxu0 0.0
    %318 = vmatpush.msra.mxu0 0.0
    %319 = vmatpush.msra.mxu0 0.0
    %320 = vmatpush.msra.mxu0 %v304
    %321 = vmatpush.msra.mxu0 %v103
    %322 = vmatmul.f32.gmra.mxu0 %v111
    %v323 = vpop.f32.mrf.mxu0
    %v324 = vadd.f32 %v107, %v323
    %325 = vmatmul.f32.gmra.mxu0 %v114
    %v326 = vpop.f32.mrf.mxu0
    %v327 = vadd.f32 %v107, %v326
    %328 = vmatmul.f32.gmra.mxu0 %v117
    %v329 = vpop.f32.mrf.mxu0
    %v330 = vadd.f32 %v107, %v329
    %331 = vmatmul.f32.gmra.mxu0 %v120
    %v332 = vpop.f32.mrf.mxu0
    %v333 = vadd.f32 %v107, %v332
    %334 = vmatmul.f32.gmra.mxu0 %v123
    %v335 = vpop.f32.mrf.mxu0
    %v336 = vadd.f32 %v107, %v335
    %337 = vmatmul.f32.gmra.mxu0 %v126
    %v338 = vpop.f32.mrf.mxu0
    %v339 = vadd.f32 %v107, %v338
    %340 = vmatmul.f32.gmra.mxu0 %v129
    %v341 = vpop.f32.mrf.mxu0
    %v342 = vadd.f32 %v107, %v341
    %343 = vmatmul.f32.gmra.mxu0 %v132
    %v344 = vpop.f32.mrf.mxu0
    %v345 = vadd.f32 %v107, %v344
    %346 = vmatmul.f32.gmra.mxu0 %v135
    %v347 = vpop.f32.mrf.mxu0
    %v348 = vadd.f32 %v107, %v347
    %349 = vmatmul.f32.gmra.mxu0 %v138
    %v350 = vpop.f32.mrf.mxu0
    %v351 = vadd.f32 %v107, %v350
    %352 = vmatmul.f32.gmra.mxu0 %v141
    %v353 = vpop.f32.mrf.mxu0
    %v354 = vadd.f32 %v107, %v353
    %355 = vmatmul.f32.gmra.mxu0 %v144
    %v356 = vpop.f32.mrf.mxu0
    %v357 = vadd.f32 %v107, %v356
    %358 = vmatmul.f32.gmra.mxu0 %v147
    %v359 = vpop.f32.mrf.mxu0
    %v360 = vadd.f32 %v107, %v359
    %361 = vmatmul.f32.gmra.mxu0 %v150
    %v362 = vpop.f32.mrf.mxu0
    %v363 = vadd.f32 %v107, %v362
    %364 = vmatmul.f32.gmra.mxu0 %v153
    %v365 = vpop.f32.mrf.mxu0
    %v366 = vadd.f32 %v107, %v365
    %367 = vmatmul.f32.gmra.mxu0 %v156
    %v368 = vpop.f32.mrf.mxu0
    %v369 = vadd.f32 %v107, %v368
    %370 = vmatmul.f32.gmra.mxu0 %v159
    %v371 = vpop.f32.mrf.mxu0
    %v372 = vadd.f32 %v107, %v371
    %373 = vmatmul.f32.gmra.mxu0 %v162
    %v374 = vpop.f32.mrf.mxu0
    %v375 = vadd.f32 %v107, %v374
    %376 = vmatmul.f32.gmra.mxu0 %v165
    %v377 = vpop.f32.mrf.mxu0
    %v378 = vadd.f32 %v107, %v377
    %379 = vmatmul.f32.gmra.mxu0 %v168
    %v380 = vpop.f32.mrf.mxu0
    %v381 = vadd.f32 %v107, %v380
    %382 = vmatmul.f32.gmra.mxu0 %v171
    %v383 = vpop.f32.mrf.mxu0
    %v384 = vadd.f32 %v107, %v383
    %385 = vmatmul.f32.gmra.mxu0 %v174
    %v386 = vpop.f32.mrf.mxu0
    %v387 = vadd.f32 %v107, %v386
    %388 = vmatmul.f32.gmra.mxu0 %v177
    %v389 = vpop.f32.mrf.mxu0
    %v390 = vadd.f32 %v107, %v389
    %391 = vmatmul.f32.gmra.mxu0 %v180
    %v392 = vpop.f32.mrf.mxu0
    %v393 = vadd.f32 %v107, %v392
    %394 = vmatmul.f32.gmra.mxu0 %v183
    %v395 = vpop.f32.mrf.mxu0
    %v396 = vadd.f32 %v107, %v395
    %397 = vmatmul.f32.gmra.mxu0 %v186
    %v398 = vpop.f32.mrf.mxu0
    %v399 = vadd.f32 %v107, %v398
    %400 = vmatmul.f32.gmra.mxu0 %v189
    %v401 = vpop.f32.mrf.mxu0
    %v402 = vadd.f32 %v107, %v401
    %403 = vmatmul.f32.gmra.mxu0 %v192
    %v404 = vpop.f32.mrf.mxu0
    %v405 = vadd.f32 %v107, %v404
    %406 = vmatmul.f32.gmra.mxu0 %v195
    %v407 = vpop.f32.mrf.mxu0
    %v408 = vadd.f32 %v107, %v407
    %409 = vmatmul.f32.gmra.mxu0 %v198
    %v410 = vpop.f32.mrf.mxu0
    %v411 = vadd.f32 %v107, %v410
    %412 = vmatmul.f32.gmra.mxu0 %v201
    %v413 = vpop.f32.mrf.mxu0
    %v414 = vadd.f32 %v107, %v413
    %415 = vmatmul.f32.gmra.mxu0 %v204
    %v416 = vpop.f32.mrf.mxu0
    %v417 = vadd.f32 %v107, %v416
    %418 = vmatmul.f32.gmra.mxu0 %v207
    %v419 = vpop.f32.mrf.mxu0
    %v420 = vadd.f32 %v107, %v419
    %421 = vmatmul.f32.gmra.mxu0 %v210
    %v422 = vpop.f32.mrf.mxu0
    %v423 = vadd.f32 %v107, %v422
    %424 = vmatmul.f32.gmra.mxu0 %v213
    %v425 = vpop.f32.mrf.mxu0
    %v426 = vadd.f32 %v107, %v425
    %427 = vmatmul.f32.gmra.mxu0 %v216
    %v428 = vpop.f32.mrf.mxu0
    %v429 = vadd.f32 %v107, %v428
    %430 = vmatmul.f32.gmra.mxu0 %v219
    %v431 = vpop.f32.mrf.mxu0
    %v432 = vadd.f32 %v107, %v431
    %433 = vmatmul.f32.gmra.mxu0 %v222
    %v434 = vpop.f32.mrf.mxu0
    %v435 = vadd.f32 %v107, %v434
    %436 = vmatmul.f32.gmra.mxu0 %v225
    %v437 = vpop.f32.mrf.mxu0
    %v438 = vadd.f32 %v107, %v437
    %439 = vmatmul.f32.gmra.mxu0 %v228
    %v440 = vpop.f32.mrf.mxu0
    %v441 = vadd.f32 %v107, %v440
    %442 = vmatmul.f32.gmra.mxu0 %v231
    %v443 = vpop.f32.mrf.mxu0
    %v444 = vadd.f32 %v107, %v443
    %445 = vmatmul.f32.gmra.mxu0 %v234
    %v446 = vpop.f32.mrf.mxu0
    %v447 = vadd.f32 %v107, %v446
    %448 = vmatmul.f32.gmra.mxu0 %v237
    %v449 = vpop.f32.mrf.mxu0
    %v450 = vadd.f32 %v107, %v449
    %451 = vmatmul.f32.gmra.mxu0 %v240
    %v452 = vpop.f32.mrf.mxu0
    %v453 = vadd.f32 %v107, %v452
    %454 = vmatmul.f32.gmra.mxu0 %v243
    %v455 = vpop.f32.mrf.mxu0
    %v456 = vadd.f32 %v107, %v455
    %457 = vmatmul.f32.gmra.mxu0 %v246
    %v458 = vpop.f32.mrf.mxu0
    %v459 = vadd.f32 %v107, %v458
    %460 = vmatmul.f32.gmra.mxu0 %v249
    %v461 = vpop.f32.mrf.mxu0
    %v462 = vadd.f32 %v107, %v461
    %463 = vmatmul.f32.gmra.mxu0 %v252
    %v464 = vpop.f32.mrf.mxu0
    %v465 = vadd.f32 %v107, %v464
    %466 = vmatmul.f32.gmra.mxu0 %v255
    %v467 = vpop.f32.mrf.mxu0
    %v468 = vadd.f32 %v107, %v467
    %469 = vmatmul.f32.gmra.mxu0 %v258
    %v470 = vpop.f32.mrf.mxu0
    %v471 = vadd.f32 %v107, %v470
    %472 = vmatmul.f32.gmra.mxu0 %v261
    %v473 = vpop.f32.mrf.mxu0
    %v474 = vadd.f32 %v107, %v473
    %475 = vmatmul.f32.gmra.mxu0 %v264
    %v476 = vpop.f32.mrf.mxu0
    %v477 = vadd.f32 %v107, %v476
    %478 = vmatmul.f32.gmra.mxu0 %v267
    %v479 = vpop.f32.mrf.mxu0
    %v480 = vadd.f32 %v107, %v479
    %481 = vmatmul.f32.gmra.mxu0 %v270
    %v482 = vpop.f32.mrf.mxu0
    %v483 = vadd.f32 %v107, %v482
    %484 = vmatmul.f32.gmra.mxu0 %v273
    %v485 = vpop.f32.mrf.mxu0
    %v486 = vadd.f32 %v107, %v485
    %487 = vmatmul.f32.gmra.mxu0 %v276
    %v488 = vpop.f32.mrf.mxu0
    %v489 = vadd.f32 %v107, %v488
    %490 = vmatmul.f32.gmra.mxu0 %v279
    %v491 = vpop.f32.mrf.mxu0
    %v492 = vadd.f32 %v107, %v491
    %493 = vmatmul.f32.gmra.mxu0 %v282
    %v494 = vpop.f32.mrf.mxu0
    %v495 = vadd.f32 %v107, %v494
    %496 = vmatmul.f32.gmra.mxu0 %v285
    %v497 = vpop.f32.mrf.mxu0
    %v498 = vadd.f32 %v107, %v497
    %499 = vmatmul.f32.gmra.mxu0 %v288
    %v500 = vpop.f32.mrf.mxu0
    %v501 = vadd.f32 %v107, %v500
    %502 = vmatmul.f32.gmra.mxu0 %v291
    %v503 = vpop.f32.mrf.mxu0
    %v504 = vadd.f32 %v107, %v503
    %505 = vmatmul.f32.gmra.mxu0 %v294
    %v506 = vpop.f32.mrf.mxu0
    %v507 = vadd.f32 %v107, %v506
    %508 = vmatmul.f32.gmra.mxu0 %v297
    %v509 = vpop.f32.mrf.mxu0
    %v510 = vadd.f32 %v107, %v509
    %511 = vmatmul.f32.gmra.mxu0 %v300
    %v512 = vpop.f32.mrf.mxu0
    %v513 = vadd.f32 %v107, %v512
    %514 = vdwg.mxu0
    %v515 = vmax.f32 %v324, 0.0
    %v516 = vmax.f32 %v327, 0.0
    %v517 = vmax.f32 %v330, 0.0
    %v518 = vmax.f32 %v333, 0.0
    %v519 = vmax.f32 %v336, 0.0
    %v520 = vmax.f32 %v339, 0.0
    %v521 = vmax.f32 %v342, 0.0
    %v522 = vmax.f32 %v345, 0.0
    %v523 = vmax.f32 %v348, 0.0
    %v524 = vmax.f32 %v351, 0.0
    %v525 = vmax.f32 %v354, 0.0
    %v526 = vmax.f32 %v357, 0.0
    %v527 = vmax.f32 %v360, 0.0
    %v528 = vmax.f32 %v363, 0.0
    %v529 = vmax.f32 %v366, 0.0
    %v530 = vmax.f32 %v369, 0.0
    %v531 = vmax.f32 %v372, 0.0
    %v532 = vmax.f32 %v375, 0.0
    %v533 = vmax.f32 %v378, 0.0
    %v534 = vmax.f32 %v381, 0.0
    %v535 = vmax.f32 %v384, 0.0
    %v536 = vmax.f32 %v387, 0.0
    %v537 = vmax.f32 %v390, 0.0
    %v538 = vmax.f32 %v393, 0.0
    %v539 = vmax.f32 %v396, 0.0
    %v540 = vmax.f32 %v399, 0.0
    %v541 = vmax.f32 %v402, 0.0
    %v542 = vmax.f32 %v405, 0.0
    %v543 = vmax.f32 %v408, 0.0
    %v544 = vmax.f32 %v411, 0.0
    %v545 = vmax.f32 %v414, 0.0
    %v546 = vmax.f32 %v417, 0.0
    %v547 = vmax.f32 %v420, 0.0
    %v548 = vmax.f32 %v423, 0.0
    %v549 = vmax.f32 %v426, 0.0
    %v550 = vmax.f32 %v429, 0.0
    %v551 = vmax.f32 %v432, 0.0
    %v552 = vmax.f32 %v435, 0.0
    %v553 = vmax.f32 %v438, 0.0
    %v554 = vmax.f32 %v441, 0.0
    %v555 = vmax.f32 %v444, 0.0
    %v556 = vmax.f32 %v447, 0.0
    %v557 = vmax.f32 %v450, 0.0
    %v558 = vmax.f32 %v453, 0.0
    %v559 = vmax.f32 %v456, 0.0
    %v560 = vmax.f32 %v459, 0.0
    %v561 = vmax.f32 %v462, 0.0
    %v562 = vmax.f32 %v465, 0.0
    %v563 = vmax.f32 %v468, 0.0
    %v564 = vmax.f32 %v471, 0.0
    %v565 = vmax.f32 %v474, 0.0
    %v566 = vmax.f32 %v477, 0.0
    %v567 = vmax.f32 %v480, 0.0
    %v568 = vmax.f32 %v483, 0.0
    %v569 = vmax.f32 %v486, 0.0
    %v570 = vmax.f32 %v489, 0.0
    %v571 = vmax.f32 %v492, 0.0
    %v572 = vmax.f32 %v495, 0.0
    %v573 = vmax.f32 %v498, 0.0
    %v574 = vmax.f32 %v501, 0.0
    %v575 = vmax.f32 %v504, 0.0
    %v576 = vmax.f32 %v507, 0.0
    %v577 = vmax.f32 %v510, 0.0
    %v578 = vmax.f32 %v513, 0.0
    %vm579 = vcmask 261120
    %580 = vst.msk [vmem:[#allocation2] sm:$0xff] %vm579, %v515
    %581 = vst.msk [vmem:[#allocation2 + $0x8] sm:$0xff] %vm579, %v516
    %582 = vst.msk [vmem:[#allocation2 + $0x10] sm:$0xff] %vm579, %v517
    %583 = vst.msk [vmem:[#allocation2 + $0x18] sm:$0xff] %vm579, %v518
    %584 = vst.msk [vmem:[#allocation2 + $0x20] sm:$0xff] %vm579, %v519
    %585 = vst.msk [vmem:[#allocation2 + $0x28] sm:$0xff] %vm579, %v520
    %586 = vst.msk [vmem:[#allocation2 + $0x30] sm:$0xff] %vm579, %v521
    %587 = vst.msk [vmem:[#allocation2 + $0x38] sm:$0xff] %vm579, %v522
    %588 = vst.msk [vmem:[#allocation2 + $0x40] sm:$0xff] %vm579, %v523
    %589 = vst.msk [vmem:[#allocation2 + $0x48] sm:$0xff] %vm579, %v524
    %590 = vst.msk [vmem:[#allocation2 + $0x50] sm:$0xff] %vm579, %v525
    %591 = vst.msk [vmem:[#allocation2 + $0x58] sm:$0xff] %vm579, %v526
    %592 = vst.msk [vmem:[#allocation2 + $0x60] sm:$0xff] %vm579, %v527
    %593 = vst.msk [vmem:[#allocation2 + $0x68] sm:$0xff] %vm579, %v528
    %594 = vst.msk [vmem:[#allocation2 + $0x70] sm:$0xff] %vm579, %v529
    %595 = vst.msk [vmem:[#allocation2 + $0x78] sm:$0xff] %vm579, %v530
    %596 = vst.msk [vmem:[#allocation2 + $0x80] sm:$0xff] %vm579, %v531
    %597 = vst.msk [vmem:[#allocation2 + $0x88] sm:$0xff] %vm579, %v532
    %598 = vst.msk [vmem:[#allocation2 + $0x90] sm:$0xff] %vm579, %v533
    %599 = vst.msk [vmem:[#allocation2 + $0x98] sm:$0xff] %vm579, %v534
    %600 = vst.msk [vmem:[#allocation2 + $0xa0] sm:$0xff] %vm579, %v535
    %601 = vst.msk [vmem:[#allocation2 + $0xa8] sm:$0xff] %vm579, %v536
    %602 = vst.msk [vmem:[#allocation2 + $0xb0] sm:$0xff] %vm579, %v537
    %603 = vst.msk [vmem:[#allocation2 + $0xb8] sm:$0xff] %vm579, %v538
    %604 = vst.msk [vmem:[#allocation2 + $0xc0] sm:$0xff] %vm579, %v539
    %605 = vst.msk [vmem:[#allocation2 + $0xc8] sm:$0xff] %vm579, %v540
    %606 = vst.msk [vmem:[#allocation2 + $0xd0] sm:$0xff] %vm579, %v541
    %607 = vst.msk [vmem:[#allocation2 + $0xd8] sm:$0xff] %vm579, %v542
    %608 = vst.msk [vmem:[#allocation2 + $0xe0] sm:$0xff] %vm579, %v543
    %609 = vst.msk [vmem:[#allocation2 + $0xe8] sm:$0xff] %vm579, %v544
    %610 = vst.msk [vmem:[#allocation2 + $0xf0] sm:$0xff] %vm579, %v545
    %611 = vst.msk [vmem:[#allocation2 + $0xf8] sm:$0xff] %vm579, %v546
    %612 = vst.msk [vmem:[#allocation2 + $0x100] sm:$0xff] %vm579, %v547
    %613 = vst.msk [vmem:[#allocation2 + $0x108] sm:$0xff] %vm579, %v548
    %614 = vst.msk [vmem:[#allocation2 + $0x110] sm:$0xff] %vm579, %v549
    %615 = vst.msk [vmem:[#allocation2 + $0x118] sm:$0xff] %vm579, %v550
    %616 = vst.msk [vmem:[#allocation2 + $0x120] sm:$0xff] %vm579, %v551
    %617 = vst.msk [vmem:[#allocation2 + $0x128] sm:$0xff] %vm579, %v552
    %618 = vst.msk [vmem:[#allocation2 + $0x130] sm:$0xff] %vm579, %v553
    %619 = vst.msk [vmem:[#allocation2 + $0x138] sm:$0xff] %vm579, %v554
    %620 = vst.msk [vmem:[#allocation2 + $0x140] sm:$0xff] %vm579, %v555
    %621 = vst.msk [vmem:[#allocation2 + $0x148] sm:$0xff] %vm579, %v556
    %622 = vst.msk [vmem:[#allocation2 + $0x150] sm:$0xff] %vm579, %v557
    %623 = vst.msk [vmem:[#allocation2 + $0x158] sm:$0xff] %vm579, %v558
    %624 = vst.msk [vmem:[#allocation2 + $0x160] sm:$0xff] %vm579, %v559
    %625 = vst.msk [vmem:[#allocation2 + $0x168] sm:$0xff] %vm579, %v560
    %626 = vst.msk [vmem:[#allocation2 + $0x170] sm:$0xff] %vm579, %v561
    %627 = vst.msk [vmem:[#allocation2 + $0x178] sm:$0xff] %vm579, %v562
    %628 = vst.msk [vmem:[#allocation2 + $0x180] sm:$0xff] %vm579, %v563
    %629 = vst.msk [vmem:[#allocation2 + $0x188] sm:$0xff] %vm579, %v564
    %630 = vst.msk [vmem:[#allocation2 + $0x190] sm:$0xff] %vm579, %v565
    %631 = vst.msk [vmem:[#allocation2 + $0x198] sm:$0xff] %vm579, %v566
    %632 = vst.msk [vmem:[#allocation2 + $0x1a0] sm:$0xff] %vm579, %v567
    %633 = vst.msk [vmem:[#allocation2 + $0x1a8] sm:$0xff] %vm579, %v568
    %634 = vst.msk [vmem:[#allocation2 + $0x1b0] sm:$0xff] %vm579, %v569
    %635 = vst.msk [vmem:[#allocation2 + $0x1b8] sm:$0xff] %vm579, %v570
    %636 = vst.msk [vmem:[#allocation2 + $0x1c0] sm:$0xff] %vm579, %v571
    %637 = vst.msk [vmem:[#allocation2 + $0x1c8] sm:$0xff] %vm579, %v572
    %638 = vst.msk [vmem:[#allocation2 + $0x1d0] sm:$0xff] %vm579, %v573
    %639 = vst.msk [vmem:[#allocation2 + $0x1d8] sm:$0xff] %vm579, %v574
    %640 = vst.msk [vmem:[#allocation2 + $0x1e0] sm:$0xff] %vm579, %v575
    %641 = vst.msk [vmem:[#allocation2 + $0x1e8] sm:$0xff] %vm579, %v576
    %642 = vst.msk [vmem:[#allocation2 + $0x1f0] sm:$0xff] %vm579, %v577
    %643 = vst.msk [vmem:[#allocation2 + $0x1f8] sm:$0xff] %vm579, %v578
    %v644 = vld [vmem:[#allocation2] sm:$0xff]
    %v645 = vld [vmem:[#allocation2 + $0x8] sm:$0xff]
    %v646 = vld [vmem:[#allocation2 + $0x10] sm:$0xff]
    %v647 = vld [vmem:[#allocation2 + $0x18] sm:$0xff]
    %v648 = vld [vmem:[#allocation2 + $0x20] sm:$0xff]
    %v649 = vld [vmem:[#allocation2 + $0x28] sm:$0xff]
    %v650 = vld [vmem:[#allocation2 + $0x30] sm:$0xff]
    %v651 = vld [vmem:[#allocation2 + $0x38] sm:$0xff]
    %v652 = vld [vmem:[#allocation2 + $0x40] sm:$0xff]
    %v653 = vld [vmem:[#allocation2 + $0x48] sm:$0xff]
    %v654 = vld [vmem:[#allocation2 + $0x50] sm:$0xff]
    %v655 = vld [vmem:[#allocation2 + $0x58] sm:$0xff]
    %v656 = vld [vmem:[#allocation2 + $0x60] sm:$0xff]
    %v657 = vld [vmem:[#allocation2 + $0x68] sm:$0xff]
    %v658 = vld [vmem:[#allocation2 + $0x70] sm:$0xff]
    %v659 = vld [vmem:[#allocation2 + $0x78] sm:$0xff]
    %v660 = vld [vmem:[#allocation2 + $0x80] sm:$0xff]
    %v661 = vld [vmem:[#allocation2 + $0x88] sm:$0xff]
    %v662 = vld [vmem:[#allocation2 + $0x90] sm:$0xff]
    %v663 = vld [vmem:[#allocation2 + $0x98] sm:$0xff]
    %v664 = vld [vmem:[#allocation2 + $0xa0] sm:$0xff]
    %v665 = vld [vmem:[#allocation2 + $0xa8] sm:$0xff]
    %v666 = vld [vmem:[#allocation2 + $0xb0] sm:$0xff]
    %v667 = vld [vmem:[#allocation2 + $0xb8] sm:$0xff]
    %v668 = vld [vmem:[#allocation2 + $0xc0] sm:$0xff]
    %v669 = vld [vmem:[#allocation2 + $0xc8] sm:$0xff]
    %v670 = vld [vmem:[#allocation2 + $0xd0] sm:$0xff]
    %v671 = vld [vmem:[#allocation2 + $0xd8] sm:$0xff]
    %v672 = vld [vmem:[#allocation2 + $0xe0] sm:$0xff]
    %v673 = vld [vmem:[#allocation2 + $0xe8] sm:$0xff]
    %v674 = vld [vmem:[#allocation2 + $0xf0] sm:$0xff]
    %v675 = vld [vmem:[#allocation2 + $0xf8] sm:$0xff]
    %v676 = vld [vmem:[#allocation2 + $0x100] sm:$0xff]
    %v677 = vld [vmem:[#allocation2 + $0x108] sm:$0xff]
    %v678 = vld [vmem:[#allocation2 + $0x110] sm:$0xff]
    %v679 = vld [vmem:[#allocation2 + $0x118] sm:$0xff]
    %v680 = vld [vmem:[#allocation2 + $0x120] sm:$0xff]
    %v681 = vld [vmem:[#allocation2 + $0x128] sm:$0xff]
    %v682 = vld [vmem:[#allocation2 + $0x130] sm:$0xff]
    %v683 = vld [vmem:[#allocation2 + $0x138] sm:$0xff]
    %v684 = vld [vmem:[#allocation2 + $0x140] sm:$0xff]
    %v685 = vld [vmem:[#allocation2 + $0x148] sm:$0xff]
    %v686 = vld [vmem:[#allocation2 + $0x150] sm:$0xff]
    %v687 = vld [vmem:[#allocation2 + $0x158] sm:$0xff]
    %v688 = vld [vmem:[#allocation2 + $0x160] sm:$0xff]
    %v689 = vld [vmem:[#allocation2 + $0x168] sm:$0xff]
    %v690 = vld [vmem:[#allocation2 + $0x170] sm:$0xff]
    %v691 = vld [vmem:[#allocation2 + $0x178] sm:$0xff]
    %v692 = vld [vmem:[#allocation2 + $0x180] sm:$0xff]
    %v693 = vld [vmem:[#allocation2 + $0x188] sm:$0xff]
    %v694 = vld [vmem:[#allocation2 + $0x190] sm:$0xff]
    %v695 = vld [vmem:[#allocation2 + $0x198] sm:$0xff]
    %v696 = vld [vmem:[#allocation2 + $0x1a0] sm:$0xff]
    %v697 = vld [vmem:[#allocation2 + $0x1a8] sm:$0xff]
    %v698 = vld [vmem:[#allocation2 + $0x1b0] sm:$0xff]
    %v699 = vld [vmem:[#allocation2 + $0x1b8] sm:$0xff]
    %v700 = vld [vmem:[#allocation2 + $0x1c0] sm:$0xff]
    %v701 = vld [vmem:[#allocation2 + $0x1c8] sm:$0xff]
    %v702 = vld [vmem:[#allocation2 + $0x1d0] sm:$0xff]
    %v703 = vld [vmem:[#allocation2 + $0x1d8] sm:$0xff]
    %v704 = vld [vmem:[#allocation2 + $0x1e0] sm:$0xff]
    %v705 = vld [vmem:[#allocation2 + $0x1e8] sm:$0xff]
    %v706 = vld [vmem:[#allocation2 + $0x1f0] sm:$0xff]
    %v707 = vld [vmem:[#allocation2 + $0x1f8] sm:$0xff]
    %v708 = vld [vmem:[#allocation2 + $0x1] sm:$0xff]
    %v709 = vld [vmem:[#allocation2 + $0x9] sm:$0xff]
    %v710 = vld [vmem:[#allocation2 + $0x11] sm:$0xff]
    %v711 = vld [vmem:[#allocation2 + $0x19] sm:$0xff]
    %v712 = vld [vmem:[#allocation2 + $0x21] sm:$0xff]
    %v713 = vld [vmem:[#allocation2 + $0x29] sm:$0xff]
    %v714 = vld [vmem:[#allocation2 + $0x31] sm:$0xff]
    %v715 = vld [vmem:[#allocation2 + $0x39] sm:$0xff]
    %v716 = vld [vmem:[#allocation2 + $0x41] sm:$0xff]
    %v717 = vld [vmem:[#allocation2 + $0x49] sm:$0xff]
    %v718 = vld [vmem:[#allocation2 + $0x51] sm:$0xff]
    %v719 = vld [vmem:[#allocation2 + $0x59] sm:$0xff]
    %v720 = vld [vmem:[#allocation2 + $0x61] sm:$0xff]
    %v721 = vld [vmem:[#allocation2 + $0x69] sm:$0xff]
    %v722 = vld [vmem:[#allocation2 + $0x71] sm:$0xff]
    %v723 = vld [vmem:[#allocation2 + $0x79] sm:$0xff]
    %v724 = vld [vmem:[#allocation2 + $0x81] sm:$0xff]
    %v725 = vld [vmem:[#allocation2 + $0x89] sm:$0xff]
    %v726 = vld [vmem:[#allocation2 + $0x91] sm:$0xff]
    %v727 = vld [vmem:[#allocation2 + $0x99] sm:$0xff]
    %v728 = vld [vmem:[#allocation2 + $0xa1] sm:$0xff]
    %v729 = vld [vmem:[#allocation2 + $0xa9] sm:$0xff]
    %v730 = vld [vmem:[#allocation2 + $0xb1] sm:$0xff]
    %v731 = vld [vmem:[#allocation2 + $0xb9] sm:$0xff]
    %v732 = vld [vmem:[#allocation2 + $0xc1] sm:$0xff]
    %v733 = vld [vmem:[#allocation2 + $0xc9] sm:$0xff]
    %v734 = vld [vmem:[#allocation2 + $0xd1] sm:$0xff]
    %v735 = vld [vmem:[#allocation2 + $0xd9] sm:$0xff]
    %v736 = vld [vmem:[#allocation2 + $0xe1] sm:$0xff]
    %v737 = vld [vmem:[#allocation2 + $0xe9] sm:$0xff]
    %v738 = vld [vmem:[#allocation2 + $0xf1] sm:$0xff]
    %v739 = vld [vmem:[#allocation2 + $0xf9] sm:$0xff]
    %v740 = vld [vmem:[#allocation2 + $0x101] sm:$0xff]
    %v741 = vld [vmem:[#allocation2 + $0x109] sm:$0xff]
    %v742 = vld [vmem:[#allocation2 + $0x111] sm:$0xff]
    %v743 = vld [vmem:[#allocation2 + $0x119] sm:$0xff]
    %v744 = vld [vmem:[#allocation2 + $0x121] sm:$0xff]
    %v745 = vld [vmem:[#allocation2 + $0x129] sm:$0xff]
    %v746 = vld [vmem:[#allocation2 + $0x131] sm:$0xff]
    %v747 = vld [vmem:[#allocation2 + $0x139] sm:$0xff]
    %v748 = vld [vmem:[#allocation2 + $0x141] sm:$0xff]
    %v749 = vld [vmem:[#allocation2 + $0x149] sm:$0xff]
    %v750 = vld [vmem:[#allocation2 + $0x151] sm:$0xff]
    %v751 = vld [vmem:[#allocation2 + $0x159] sm:$0xff]
    %v752 = vld [vmem:[#allocation2 + $0x161] sm:$0xff]
    %v753 = vld [vmem:[#allocation2 + $0x169] sm:$0xff]
    %v754 = vld [vmem:[#allocation2 + $0x171] sm:$0xff]
    %v755 = vld [vmem:[#allocation2 + $0x179] sm:$0xff]
    %v756 = vld [vmem:[#allocation2 + $0x181] sm:$0xff]
    %v757 = vld [vmem:[#allocation2 + $0x189] sm:$0xff]
    %v758 = vld [vmem:[#allocation2 + $0x191] sm:$0xff]
    %v759 = vld [vmem:[#allocation2 + $0x199] sm:$0xff]
    %v760 = vld [vmem:[#allocation2 + $0x1a1] sm:$0xff]
    %v761 = vld [vmem:[#allocation2 + $0x1a9] sm:$0xff]
    %v762 = vld [vmem:[#allocation2 + $0x1b1] sm:$0xff]
    %v763 = vld [vmem:[#allocation2 + $0x1b9] sm:$0xff]
    %v764 = vld [vmem:[#allocation2 + $0x1c1] sm:$0xff]
    %v765 = vld [vmem:[#allocation2 + $0x1c9] sm:$0xff]
    %v766 = vld [vmem:[#allocation2 + $0x1d1] sm:$0xff]
    %v767 = vld [vmem:[#allocation2 + $0x1d9] sm:$0xff]
    %v768 = vld [vmem:[#allocation2 + $0x1e1] sm:$0xff]
    %v769 = vld [vmem:[#allocation2 + $0x1e9] sm:$0xff]
    %v770 = vld [vmem:[#allocation2 + $0x1f1] sm:$0xff]
    %v771 = vld [vmem:[#allocation2 + $0x1f9] sm:$0xff]
    %v772 = vmax.f32 %v644, %v708
    %v773 = vmax.f32 %v645, %v709
    %v774 = vmax.f32 %v646, %v710
    %v775 = vmax.f32 %v647, %v711
    %v776 = vmax.f32 %v648, %v712
    %v777 = vmax.f32 %v649, %v713
    %v778 = vmax.f32 %v650, %v714
    %v779 = vmax.f32 %v651, %v715
    %v780 = vmax.f32 %v652, %v716
    %v781 = vmax.f32 %v653, %v717
    %v782 = vmax.f32 %v654, %v718
    %v783 = vmax.f32 %v655, %v719
    %v784 = vmax.f32 %v656, %v720
    %v785 = vmax.f32 %v657, %v721
    %v786 = vmax.f32 %v658, %v722
    %v787 = vmax.f32 %v659, %v723
    %v788 = vmax.f32 %v660, %v724
    %v789 = vmax.f32 %v661, %v725
    %v790 = vmax.f32 %v662, %v726
    %v791 = vmax.f32 %v663, %v727
    %v792 = vmax.f32 %v664, %v728
    %v793 = vmax.f32 %v665, %v729
    %v794 = vmax.f32 %v666, %v730
    %v795 = vmax.f32 %v667, %v731
    %v796 = vmax.f32 %v668, %v732
    %v797 = vmax.f32 %v669, %v733
    %v798 = vmax.f32 %v670, %v734
    %v799 = vmax.f32 %v671, %v735
    %v800 = vmax.f32 %v672, %v736
    %v801 = vmax.f32 %v673, %v737
    %v802 = vmax.f32 %v674, %v738
    %v803 = vmax.f32 %v675, %v739
    %v804 = vmax.f32 %v676, %v740
    %v805 = vmax.f32 %v677, %v741
    %v806 = vmax.f32 %v678, %v742
    %v807 = vmax.f32 %v679, %v743
    %v808 = vmax.f32 %v680, %v744
    %v809 = vmax.f32 %v681, %v745
    %v810 = vmax.f32 %v682, %v746
    %v811 = vmax.f32 %v683, %v747
    %v812 = vmax.f32 %v684, %v748
    %v813 = vmax.f32 %v685, %v749
    %v814 = vmax.f32 %v686, %v750
    %v815 = vmax.f32 %v687, %v751
    %v816 = vmax.f32 %v688, %v752
    %v817 = vmax.f32 %v689, %v753
    %v818 = vmax.f32 %v690, %v754
    %v819 = vmax.f32 %v691, %v755
    %v820 = vmax.f32 %v692, %v756
    %v821 = vmax.f32 %v693, %v757
    %v822 = vmax.f32 %v694, %v758
    %v823 = vmax.f32 %v695, %v759
    %v824 = vmax.f32 %v696, %v760
    %v825 = vmax.f32 %v697, %v761
    %v826 = vmax.f32 %v698, %v762
    %v827 = vmax.f32 %v699, %v763
    %v828 = vmax.f32 %v700, %v764
    %v829 = vmax.f32 %v701, %v765
    %v830 = vmax.f32 %v702, %v766
    %v831 = vmax.f32 %v703, %v767
    %v832 = vmax.f32 %v704, %v768
    %v833 = vmax.f32 %v705, %v769
    %v834 = vmax.f32 %v706, %v770
    %v835 = vmax.f32 %v707, %v771
    %v836 = vld [vmem:[#allocation2 + $0x200] sm:$0xff]
    %v837 = vld [vmem:[#allocation2 + $0x208] sm:$0xff]
    %v838 = vmax.f32 %v772, %v646
    %v839 = vmax.f32 %v773, %v647
    %v840 = vmax.f32 %v774, %v648
    %v841 = vmax.f32 %v775, %v649
    %v842 = vmax.f32 %v776, %v650
    %v843 = vmax.f32 %v777, %v651
    %v844 = vmax.f32 %v778, %v652
    %v845 = vmax.f32 %v779, %v653
    %v846 = vmax.f32 %v780, %v654
    %v847 = vmax.f32 %v781, %v655
    %v848 = vmax.f32 %v782, %v656
    %v849 = vmax.f32 %v783, %v657
    %v850 = vmax.f32 %v784, %v658
    %v851 = vmax.f32 %v785, %v659
    %v852 = vmax.f32 %v786, %v660
    %v853 = vmax.f32 %v787, %v661
    %v854 = vmax.f32 %v788, %v662
    %v855 = vmax.f32 %v789, %v663
    %v856 = vmax.f32 %v790, %v664
    %v857 = vmax.f32 %v791, %v665
    %v858 = vmax.f32 %v792, %v666
    %v859 = vmax.f32 %v793, %v667
    %v860 = vmax.f32 %v794, %v668
    %v861 = vmax.f32 %v795, %v669
    %v862 = vmax.f32 %v796, %v670
    %v863 = vmax.f32 %v797, %v671
    %v864 = vmax.f32 %v798, %v672
    %v865 = vmax.f32 %v799, %v673
    %v866 = vmax.f32 %v800, %v674
    %v867 = vmax.f32 %v801, %v675
    %v868 = vmax.f32 %v802, %v676
    %v869 = vmax.f32 %v803, %v677
    %v870 = vmax.f32 %v804, %v678
    %v871 = vmax.f32 %v805, %v679
    %v872 = vmax.f32 %v806, %v680
    %v873 = vmax.f32 %v807, %v681
    %v874 = vmax.f32 %v808, %v682
    %v875 = vmax.f32 %v809, %v683
    %v876 = vmax.f32 %v810, %v684
    %v877 = vmax.f32 %v811, %v685
    %v878 = vmax.f32 %v812, %v686
    %v879 = vmax.f32 %v813, %v687
    %v880 = vmax.f32 %v814, %v688
    %v881 = vmax.f32 %v815, %v689
    %v882 = vmax.f32 %v816, %v690
    %v883 = vmax.f32 %v817, %v691
    %v884 = vmax.f32 %v818, %v692
    %v885 = vmax.f32 %v819, %v693
    %v886 = vmax.f32 %v820, %v694
    %v887 = vmax.f32 %v821, %v695
    %v888 = vmax.f32 %v822, %v696
    %v889 = vmax.f32 %v823, %v697
    %v890 = vmax.f32 %v824, %v698
    %v891 = vmax.f32 %v825, %v699
    %v892 = vmax.f32 %v826, %v700
    %v893 = vmax.f32 %v827, %v701
    %v894 = vmax.f32 %v828, %v702
    %v895 = vmax.f32 %v829, %v703
    %v896 = vmax.f32 %v830, %v704
    %v897 = vmax.f32 %v831, %v705
    %v898 = vmax.f32 %v832, %v706
    %v899 = vmax.f32 %v833, %v707
    %v900 = vmax.f32 %v834, %v836
    %v901 = vmax.f32 %v835, %v837
    %v902 = vld [vmem:[#allocation2 + $0x201] sm:$0xff]
    %v903 = vld [vmem:[#allocation2 + $0x209] sm:$0xff]
    %v904 = vmax.f32 %v838, %v710
    %v905 = vmax.f32 %v839, %v711
    %v906 = vmax.f32 %v840, %v712
    %v907 = vmax.f32 %v841, %v713
    %v908 = vmax.f32 %v842, %v714
    %v909 = vmax.f32 %v843, %v715
    %v910 = vmax.f32 %v844, %v716
    %v911 = vmax.f32 %v845, %v717
    %v912 = vmax.f32 %v846, %v718
    %v913 = vmax.f32 %v847, %v719
    %v914 = vmax.f32 %v848, %v720
    %v915 = vmax.f32 %v849, %v721
    %v916 = vmax.f32 %v850, %v722
    %v917 = vmax.f32 %v851, %v723
    %v918 = vmax.f32 %v852, %v724
    %v919 = vmax.f32 %v853, %v725
    %v920 = vmax.f32 %v854, %v726
    %v921 = vmax.f32 %v855, %v727
    %v922 = vmax.f32 %v856, %v728
    %v923 = vmax.f32 %v857, %v729
    %v924 = vmax.f32 %v858, %v730
    %v925 = vmax.f32 %v859, %v731
    %v926 = vmax.f32 %v860, %v732
    %v927 = vmax.f32 %v861, %v733
    %v928 = vmax.f32 %v862, %v734
    %v929 = vmax.f32 %v863, %v735
    %v930 = vmax.f32 %v864, %v736
    %v931 = vmax.f32 %v865, %v737
    %v932 = vmax.f32 %v866, %v738
    %v933 = vmax.f32 %v867, %v739
    %v934 = vmax.f32 %v868, %v740
    %v935 = vmax.f32 %v869, %v741
    %v936 = vmax.f32 %v870, %v742
    %v937 = vmax.f32 %v871, %v743
    %v938 = vmax.f32 %v872, %v744
    %v939 = vmax.f32 %v873, %v745
    %v940 = vmax.f32 %v874, %v746
    %v941 = vmax.f32 %v875, %v747
    %v942 = vmax.f32 %v876, %v748
    %v943 = vmax.f32 %v877, %v749
    %v944 = vmax.f32 %v878, %v750
    %v945 = vmax.f32 %v879, %v751
    %v946 = vmax.f32 %v880, %v752
    %v947 = vmax.f32 %v881, %v753
    %v948 = vmax.f32 %v882, %v754
    %v949 = vmax.f32 %v883, %v755
    %v950 = vmax.f32 %v884, %v756
    %v951 = vmax.f32 %v885, %v757
    %v952 = vmax.f32 %v886, %v758
    %v953 = vmax.f32 %v887, %v759
    %v954 = vmax.f32 %v888, %v760
    %v955 = vmax.f32 %v889, %v761
    %v956 = vmax.f32 %v890, %v762
    %v957 = vmax.f32 %v891, %v763
    %v958 = vmax.f32 %v892, %v764
    %v959 = vmax.f32 %v893, %v765
    %v960 = vmax.f32 %v894, %v766
    %v961 = vmax.f32 %v895, %v767
    %v962 = vmax.f32 %v896, %v768
    %v963 = vmax.f32 %v897, %v769
    %v964 = vmax.f32 %v898, %v770
    %v965 = vmax.f32 %v899, %v771
    %v966 = vmax.f32 %v900, %v902
    %v967 = vmax.f32 %v901, %v903
    %968 = vst.msk [vmem:[#allocation2] sm:$0xff] %vm579, %v904
    %969 = vst.msk [vmem:[#allocation2 + $0x8] sm:$0xff] %vm579, %v905
    %970 = vst.msk [vmem:[#allocation2 + $0x10] sm:$0xff] %vm579, %v906
    %971 = vst.msk [vmem:[#allocation2 + $0x18] sm:$0xff] %vm579, %v907
    %972 = vst.msk [vmem:[#allocation2 + $0x20] sm:$0xff] %vm579, %v908
    %973 = vst.msk [vmem:[#allocation2 + $0x28] sm:$0xff] %vm579, %v909
    %974 = vst.msk [vmem:[#allocation2 + $0x30] sm:$0xff] %vm579, %v910
    %975 = vst.msk [vmem:[#allocation2 + $0x38] sm:$0xff] %vm579, %v911
    %976 = vst.msk [vmem:[#allocation2 + $0x40] sm:$0xff] %vm579, %v912
    %977 = vst.msk [vmem:[#allocation2 + $0x48] sm:$0xff] %vm579, %v913
    %978 = vst.msk [vmem:[#allocation2 + $0x50] sm:$0xff] %vm579, %v914
    %979 = vst.msk [vmem:[#allocation2 + $0x58] sm:$0xff] %vm579, %v915
    %980 = vst.msk [vmem:[#allocation2 + $0x60] sm:$0xff] %vm579, %v916
    %981 = vst.msk [vmem:[#allocation2 + $0x68] sm:$0xff] %vm579, %v917
    %982 = vst.msk [vmem:[#allocation2 + $0x70] sm:$0xff] %vm579, %v918
    %983 = vst.msk [vmem:[#allocation2 + $0x78] sm:$0xff] %vm579, %v919
    %984 = vst.msk [vmem:[#allocation2 + $0x80] sm:$0xff] %vm579, %v920
    %985 = vst.msk [vmem:[#allocation2 + $0x88] sm:$0xff] %vm579, %v921
    %986 = vst.msk [vmem:[#allocation2 + $0x90] sm:$0xff] %vm579, %v922
    %987 = vst.msk [vmem:[#allocation2 + $0x98] sm:$0xff] %vm579, %v923
    %988 = vst.msk [vmem:[#allocation2 + $0xa0] sm:$0xff] %vm579, %v924
    %989 = vst.msk [vmem:[#allocation2 + $0xa8] sm:$0xff] %vm579, %v925
    %990 = vst.msk [vmem:[#allocation2 + $0xb0] sm:$0xff] %vm579, %v926
    %991 = vst.msk [vmem:[#allocation2 + $0xb8] sm:$0xff] %vm579, %v927
    %992 = vst.msk [vmem:[#allocation2 + $0xc0] sm:$0xff] %vm579, %v928
    %993 = vst.msk [vmem:[#allocation2 + $0xc8] sm:$0xff] %vm579, %v929
    %994 = vst.msk [vmem:[#allocation2 + $0xd0] sm:$0xff] %vm579, %v930
    %995 = vst.msk [vmem:[#allocation2 + $0xd8] sm:$0xff] %vm579, %v931
    %996 = vst.msk [vmem:[#allocation2 + $0xe0] sm:$0xff] %vm579, %v932
    %997 = vst.msk [vmem:[#allocation2 + $0xe8] sm:$0xff] %vm579, %v933
    %998 = vst.msk [vmem:[#allocation2 + $0xf0] sm:$0xff] %vm579, %v934
    %999 = vst.msk [vmem:[#allocation2 + $0xf8] sm:$0xff] %vm579, %v935
    %1000 = vst.msk [vmem:[#allocation2 + $0x100] sm:$0xff] %vm579, %v936
    %1001 = vst.msk [vmem:[#allocation2 + $0x108] sm:$0xff] %vm579, %v937
    %1002 = vst.msk [vmem:[#allocation2 + $0x110] sm:$0xff] %vm579, %v938
    %1003 = vst.msk [vmem:[#allocation2 + $0x118] sm:$0xff] %vm579, %v939
    %1004 = vst.msk [vmem:[#allocation2 + $0x120] sm:$0xff] %vm579, %v940
    %1005 = vst.msk [vmem:[#allocation2 + $0x128] sm:$0xff] %vm579, %v941
    %1006 = vst.msk [vmem:[#allocation2 + $0x130] sm:$0xff] %vm579, %v942
    %1007 = vst.msk [vmem:[#allocation2 + $0x138] sm:$0xff] %vm579, %v943
    %1008 = vst.msk [vmem:[#allocation2 + $0x140] sm:$0xff] %vm579, %v944
    %1009 = vst.msk [vmem:[#allocation2 + $0x148] sm:$0xff] %vm579, %v945
    %1010 = vst.msk [vmem:[#allocation2 + $0x150] sm:$0xff] %vm579, %v946
    %1011 = vst.msk [vmem:[#allocation2 + $0x158] sm:$0xff] %vm579, %v947
    %1012 = vst.msk [vmem:[#allocation2 + $0x160] sm:$0xff] %vm579, %v948
    %1013 = vst.msk [vmem:[#allocation2 + $0x168] sm:$0xff] %vm579, %v949
    %1014 = vst.msk [vmem:[#allocation2 + $0x170] sm:$0xff] %vm579, %v950
    %1015 = vst.msk [vmem:[#allocation2 + $0x178] sm:$0xff] %vm579, %v951
    %1016 = vst.msk [vmem:[#allocation2 + $0x180] sm:$0xff] %vm579, %v952
    %1017 = vst.msk [vmem:[#allocation2 + $0x188] sm:$0xff] %vm579, %v953
    %1018 = vst.msk [vmem:[#allocation2 + $0x190] sm:$0xff] %vm579, %v954
    %1019 = vst.msk [vmem:[#allocation2 + $0x198] sm:$0xff] %vm579, %v955
    %1020 = vst.msk [vmem:[#allocation2 + $0x1a0] sm:$0xff] %vm579, %v956
    %1021 = vst.msk [vmem:[#allocation2 + $0x1a8] sm:$0xff] %vm579, %v957
    %1022 = vst.msk [vmem:[#allocation2 + $0x1b0] sm:$0xff] %vm579, %v958
    %1023 = vst.msk [vmem:[#allocation2 + $0x1b8] sm:$0xff] %vm579, %v959
    %1024 = vst.msk [vmem:[#allocation2 + $0x1c0] sm:$0xff] %vm579, %v960
    %1025 = vst.msk [vmem:[#allocation2 + $0x1c8] sm:$0xff] %vm579, %v961
    %1026 = vst.msk [vmem:[#allocation2 + $0x1d0] sm:$0xff] %vm579, %v962
    %1027 = vst.msk [vmem:[#allocation2 + $0x1d8] sm:$0xff] %vm579, %v963
    %1028 = vst.msk [vmem:[#allocation2 + $0x1e0] sm:$0xff] %vm579, %v964
    %1029 = vst.msk [vmem:[#allocation2 + $0x1e8] sm:$0xff] %vm579, %v965
    %1030 = vst.msk [vmem:[#allocation2 + $0x1f0] sm:$0xff] %vm579, %v966
    %1031 = vst.msk [vmem:[#allocation2 + $0x1f8] sm:$0xff] %vm579, %v967
    %1032 = vst.msk [vmem:[#allocation3] sm:$0xff] %vm579, 0.0
    %1033 = vst.msk [vmem:[#allocation3 + $0x8] sm:$0xff] %vm579, 0.0
    %1034 = vst.msk [vmem:[#allocation3 + $0x10] sm:$0xff] %vm579, 0.0
    %1035 = vst.msk [vmem:[#allocation3 + $0x18] sm:$0xff] %vm579, 0.0
    %1036 = vst.msk [vmem:[#allocation3 + $0x20] sm:$0xff] %vm579, 0.0
    %1037 = vst.msk [vmem:[#allocation3 + $0x28] sm:$0xff] %vm579, 0.0
    %1038 = vst.msk [vmem:[#allocation3 + $0x30] sm:$0xff] %vm579, 0.0
    %1039 = vst.msk [vmem:[#allocation3 + $0x38] sm:$0xff] %vm579, 0.0
    %1040 = vst.msk [vmem:[#allocation3 + $0x40] sm:$0xff] %vm579, 0.0
    %1041 = vst.msk [vmem:[#allocation3 + $0x48] sm:$0xff] %vm579, 0.0
    %1042 = vst.msk [vmem:[#allocation3 + $0x50] sm:$0xff] %vm579, 0.0
    %1043 = vst.msk [vmem:[#allocation3 + $0x58] sm:$0xff] %vm579, 0.0
    %1044 = vst.msk [vmem:[#allocation3 + $0x60] sm:$0xff] %vm579, 0.0
    %1045 = vst.msk [vmem:[#allocation3 + $0x68] sm:$0xff] %vm579, 0.0
    %1046 = vst.msk [vmem:[#allocation3 + $0x70] sm:$0xff] %vm579, 0.0
    %1047 = vst.msk [vmem:[#allocation3 + $0x78] sm:$0xff] %vm579, 0.0
    %1048 = vst.msk [vmem:[#allocation3 + $0x80] sm:$0xff] %vm579, 0.0
    %1049 = vst.msk [vmem:[#allocation3 + $0x88] sm:$0xff] %vm579, 0.0
    %1050 = vst.msk [vmem:[#allocation3 + $0x90] sm:$0xff] %vm579, 0.0
    %1051 = vst.msk [vmem:[#allocation3 + $0x98] sm:$0xff] %vm579, 0.0
    %1052 = vst.msk [vmem:[#allocation3 + $0xa0] sm:$0xff] %vm579, 0.0
    %1053 = vst.msk [vmem:[#allocation3 + $0xa8] sm:$0xff] %vm579, 0.0
    %1054 = vst.msk [vmem:[#allocation3 + $0xb0] sm:$0xff] %vm579, 0.0
    %1055 = vst.msk [vmem:[#allocation3 + $0xb8] sm:$0xff] %vm579, 0.0
    %1056 = vst.msk [vmem:[#allocation3 + $0xc0] sm:$0xff] %vm579, 0.0
    %1057 = vst.msk [vmem:[#allocation3 + $0xc8] sm:$0xff] %vm579, 0.0
    %1058 = vst.msk [vmem:[#allocation3 + $0xd0] sm:$0xff] %vm579, 0.0
    %1059 = vst.msk [vmem:[#allocation3 + $0xd8] sm:$0xff] %vm579, 0.0
    %1060 = vst.msk [vmem:[#allocation3 + $0xe0] sm:$0xff] %vm579, 0.0
    %v1061 = vld [vmem:[#allocation2] ss:$2 sm:$0xff]
    %1062 = vst.msk [vmem:[#allocation3 + $0x1b] sm:$0xff] %vm579, %v1061
    %s1063 = scalar_lea.vmem [#allocation2], 32
    %v1064 = vld [vmem:[%s1063] ss:$2 sm:$0xff]
    %1065 = vst.msk [vmem:[#allocation3 + $0x25] sm:$0xff] %vm579, %v1064
    %s1066 = scalar_lea.vmem [#allocation2], 64
    %v1067 = vld [vmem:[%s1066] ss:$2 sm:$0xff]
    %1068 = vst.msk [vmem:[#allocation3 + $0x2f] sm:$0xff] %vm579, %v1067
    %s1069 = scalar_lea.vmem [#allocation2], 96
    %v1070 = vld [vmem:[%s1069] ss:$2 sm:$0xff]
    %1071 = vst.msk [vmem:[#allocation3 + $0x39] sm:$0xff] %vm579, %v1070
    %s1072 = scalar_lea.vmem [#allocation2], 128
    %v1073 = vld [vmem:[%s1072] ss:$2 sm:$0xff]
    %1074 = vst.msk [vmem:[#allocation3 + $0x43] sm:$0xff] %vm579, %v1073
    %s1075 = scalar_lea.vmem [#allocation2], 160
    %v1076 = vld [vmem:[%s1075] ss:$2 sm:$0xff]
    %1077 = vst.msk [vmem:[#allocation3 + $0x4d] sm:$0xff] %vm579, %v1076
    %s1078 = scalar_lea.vmem [#allocation2], 192
    %v1079 = vld [vmem:[%s1078] ss:$2 sm:$0xff]
    %1080 = vst.msk [vmem:[#allocation3 + $0x57] sm:$0xff] %vm579, %v1079
    %s1081 = scalar_lea.vmem [#allocation2], 224
    %v1082 = vld [vmem:[%s1081] ss:$2 sm:$0xff]
    %1083 = vst.msk [vmem:[#allocation3 + $0x61] sm:$0xff] %vm579, %v1082
    %s1084 = scalar_lea.vmem [#allocation2], 256
    %v1085 = vld [vmem:[%s1084] ss:$2 sm:$0xff]
    %1086 = vst.msk [vmem:[#allocation3 + $0x7f] sm:$0xff] %vm579, %v1085
    %s1087 = scalar_lea.vmem [#allocation2], 288
    %v1088 = vld [vmem:[%s1087] ss:$2 sm:$0xff]
    %1089 = vst.msk [vmem:[#allocation3 + $0x89] sm:$0xff] %vm579, %v1088
    %s1090 = scalar_lea.vmem [#allocation2], 320
    %v1091 = vld [vmem:[%s1090] ss:$2 sm:$0xff]
    %1092 = vst.msk [vmem:[#allocation3 + $0x93] sm:$0xff] %vm579, %v1091
    %s1093 = scalar_lea.vmem [#allocation2], 352
    %v1094 = vld [vmem:[%s1093] ss:$2 sm:$0xff]
    %1095 = vst.msk [vmem:[#allocation3 + $0x9d] sm:$0xff] %vm579, %v1094
    %s1096 = scalar_lea.vmem [#allocation2], 384
    %v1097 = vld [vmem:[%s1096] ss:$2 sm:$0xff]
    %1098 = vst.msk [vmem:[#allocation3 + $0xa7] sm:$0xff] %vm579, %v1097
    %s1099 = scalar_lea.vmem [#allocation2], 416
    %v1100 = vld [vmem:[%s1099] ss:$2 sm:$0xff]
    %1101 = vst.msk [vmem:[#allocation3 + $0xb1] sm:$0xff] %vm579, %v1100
    %s1102 = scalar_lea.vmem [#allocation2], 448
    %v1103 = vld [vmem:[%s1102] ss:$2 sm:$0xff]
    %1104 = vst.msk [vmem:[#allocation3 + $0xbb] sm:$0xff] %vm579, %v1103
    %s1105 = scalar_lea.vmem [#allocation2], 480
    %v1106 = vld [vmem:[%s1105] ss:$2 sm:$0xff]
    %1107 = vst.msk [vmem:[#allocation3 + $0xc5] sm:$0xff] %vm579, %v1106
    %v1108 = vld [vmem:[#allocation3 + $0x5] sm:$0xff]
    %v1109 = vld [vmem:[#allocation3 + $0xd] sm:$0xff]
    %v1110 = vld [vmem:[#allocation3 + $0x15] sm:$0xff]
    %v1111 = vld [vmem:[#allocation3 + $0x1d] sm:$0xff]
    %v1112 = vld [vmem:[#allocation3 + $0x25] sm:$0xff]
    %v1113 = vld [vmem:[#allocation3 + $0x2d] sm:$0xff]
    %v1114 = vld [vmem:[#allocation3 + $0x35] sm:$0xff]
    %v1115 = vld [vmem:[#allocation3 + $0x3d] sm:$0xff]
    %v1116 = vld [vmem:[#allocation3 + $0x45] sm:$0xff]
    %v1117 = vld [vmem:[#allocation3 + $0x4d] sm:$0xff]
    %v1118 = vld [vmem:[#allocation3 + $0x55] sm:$0xff]
    %v1119 = vld [vmem:[#allocation3 + $0x5d] sm:$0xff]
    %v1120 = vld [vmem:[#allocation3 + $0x65] sm:$0xff]
    %v1121 = vld [vmem:[#allocation3 + $0x6d] sm:$0xff]
    %v1122 = vld [vmem:[#allocation3 + $0x75] sm:$0xff]
    %v1123 = vld [vmem:[#allocation3 + $0x7d] sm:$0xff]
    %v1124 = vld [vmem:[#allocation3 + $0x85] sm:$0xff]
    %v1125 = vld [vmem:[#allocation3 + $0x8d] sm:$0xff]
    %v1126 = vld [vmem:[#allocation3 + $0x95] sm:$0xff]
    %v1127 = vld [vmem:[#allocation3 + $0x9d] sm:$0xff]
    %v1128 = vld [vmem:[#allocation3 + $0xa5] sm:$0xff]
    %v1129 = vld [vmem:[#allocation3 + $0xad] sm:$0xff]
    %v1130 = vld [vmem:[#allocation3 + $0xb5] sm:$0xff]
    %v1131 = vld [vmem:[#allocation3 + $0xbd] sm:$0xff]
    %v1132 = vld [vmem:[#allocation3 + $0xc5] sm:$0xff]
    %1133 = vst.msk [vmem:[#allocation4] sm:$0xff] %vm579, %v1108
    %1134 = vst.msk [vmem:[#allocation4 + $0x18] sm:$0xff] %vm579, %v1109
    %1135 = vst.msk [vmem:[#allocation4 + $0x30] sm:$0xff] %vm579, %v1110
    %1136 = vst.msk [vmem:[#allocation4 + $0x48] sm:$0xff] %vm579, %v1111
    %1137 = vst.msk [vmem:[#allocation4 + $0x60] sm:$0xff] %vm579, %v1112
    %1138 = vst.msk [vmem:[#allocation4 + $0x78] sm:$0xff] %vm579, %v1113
    %1139 = vst.msk [vmem:[#allocation4 + $0x90] sm:$0xff] %vm579, %v1114
    %1140 = vst.msk [vmem:[#allocation4 + $0xa8] sm:$0xff] %vm579, %v1115
    %1141 = vst.msk [vmem:[#allocation4 + $0xc0] sm:$0xff] %vm579, %v1116
    %1142 = vst.msk [vmem:[#allocation4 + $0xd8] sm:$0xff] %vm579, %v1117
    %1143 = vst.msk [vmem:[#allocation4 + $0xf0] sm:$0xff] %vm579, %v1118
    %1144 = vst.msk [vmem:[#allocation4 + $0x108] sm:$0xff] %vm579, %v1119
    %1145 = vst.msk [vmem:[#allocation4 + $0x120] sm:$0xff] %vm579, %v1120
    %1146 = vst.msk [vmem:[#allocation4 + $0x138] sm:$0xff] %vm579, %v1121
    %1147 = vst.msk [vmem:[#allocation4 + $0x150] sm:$0xff] %vm579, %v1122
    %1148 = vst.msk [vmem:[#allocation4 + $0x168] sm:$0xff] %vm579, %v1123
    %1149 = vst.msk [vmem:[#allocation4 + $0x180] sm:$0xff] %vm579, %v1124
    %1150 = vst.msk [vmem:[#allocation4 + $0x198] sm:$0xff] %vm579, %v1125
    %1151 = vst.msk [vmem:[#allocation4 + $0x1b0] sm:$0xff] %vm579, %v1126
    %1152 = vst.msk [vmem:[#allocation4 + $0x1c8] sm:$0xff] %vm579, %v1127
    %1153 = vst.msk [vmem:[#allocation4 + $0x1e0] sm:$0xff] %vm579, %v1128
    %1154 = vst.msk [vmem:[#allocation4 + $0x1f8] sm:$0xff] %vm579, %v1129
    %1155 = vst.msk [vmem:[#allocation4 + $0x210] sm:$0xff] %vm579, %v1130
    %1156 = vst.msk [vmem:[#allocation4 + $0x228] sm:$0xff] %vm579, %v1131
    %1157 = vst.msk [vmem:[#allocation4 + $0x240] sm:$0xff] %vm579, %v1132
    %v1158 = vld [vmem:[#allocation3 + $0x6] sm:$0xff]
    %v1159 = vld [vmem:[#allocation3 + $0xe] sm:$0xff]
    %v1160 = vld [vmem:[#allocation3 + $0x16] sm:$0xff]
    %v1161 = vld [vmem:[#allocation3 + $0x1e] sm:$0xff]
    %v1162 = vld [vmem:[#allocation3 + $0x26] sm:$0xff]
    %v1163 = vld [vmem:[#allocation3 + $0x2e] sm:$0xff]
    %v1164 = vld [vmem:[#allocation3 + $0x36] sm:$0xff]
    %v1165 = vld [vmem:[#allocation3 + $0x3e] sm:$0xff]
    %v1166 = vld [vmem:[#allocation3 + $0x46] sm:$0xff]
    %v1167 = vld [vmem:[#allocation3 + $0x4e] sm:$0xff]
    %v1168 = vld [vmem:[#allocation3 + $0x56] sm:$0xff]
    %v1169 = vld [vmem:[#allocation3 + $0x5e] sm:$0xff]
    %v1170 = vld [vmem:[#allocation3 + $0x66] sm:$0xff]
    %v1171 = vld [vmem:[#allocation3 + $0x6e] sm:$0xff]
    %v1172 = vld [vmem:[#allocation3 + $0x76] sm:$0xff]
    %v1173 = vld [vmem:[#allocation3 + $0x7e] sm:$0xff]
    %v1174 = vld [vmem:[#allocation3 + $0x86] sm:$0xff]
    %v1175 = vld [vmem:[#allocation3 + $0x8e] sm:$0xff]
    %v1176 = vld [vmem:[#allocation3 + $0x96] sm:$0xff]
    %v1177 = vld [vmem:[#allocation3 + $0x9e] sm:$0xff]
    %v1178 = vld [vmem:[#allocation3 + $0xa6] sm:$0xff]
    %v1179 = vld [vmem:[#allocation3 + $0xae] sm:$0xff]
    %v1180 = vld [vmem:[#allocation3 + $0xb6] sm:$0xff]
    %v1181 = vld [vmem:[#allocation3 + $0xbe] sm:$0xff]
    %v1182 = vld [vmem:[#allocation3 + $0xc6] sm:$0xff]
    %1208 = vrot.lane.b32.xlu0 %v1158, 32
    %v1209 = vpop.permute.xlu0 %1208
    %1210 = vrot.lane.b32.xlu0 %v1159, 32
    %v1211 = vpop.permute.xlu0 %1210
    %1212 = vrot.lane.b32.xlu0 %v1160, 32
    %v1213 = vpop.permute.xlu0 %1212
    %1214 = vrot.lane.b32.xlu0 %v1161, 32
    %v1215 = vpop.permute.xlu0 %1214
    %1216 = vrot.lane.b32.xlu0 %v1162, 32
    %v1217 = vpop.permute.xlu0 %1216
    %1218 = vrot.lane.b32.xlu0 %v1163, 32
    %v1219 = vpop.permute.xlu0 %1218
    %1220 = vrot.lane.b32.xlu0 %v1164, 32
    %v1221 = vpop.permute.xlu0 %1220
    %1222 = vrot.lane.b32.xlu0 %v1165, 32
    %v1223 = vpop.permute.xlu0 %1222
    %1224 = vrot.lane.b32.xlu0 %v1166, 32
    %v1225 = vpop.permute.xlu0 %1224
    %1226 = vrot.lane.b32.xlu0 %v1167, 32
    %v1227 = vpop.permute.xlu0 %1226
    %1228 = vrot.lane.b32.xlu0 %v1168, 32
    %v1229 = vpop.permute.xlu0 %1228
    %1230 = vrot.lane.b32.xlu0 %v1169, 32
    %v1231 = vpop.permute.xlu0 %1230
    %1232 = vrot.lane.b32.xlu0 %v1170, 32
    %v1233 = vpop.permute.xlu0 %1232
    %1234 = vrot.lane.b32.xlu0 %v1171, 32
    %v1235 = vpop.permute.xlu0 %1234
    %1236 = vrot.lane.b32.xlu0 %v1172, 32
    %v1237 = vpop.permute.xlu0 %1236
    %1238 = vrot.lane.b32.xlu0 %v1173, 32
    %v1239 = vpop.permute.xlu0 %1238
    %1240 = vrot.lane.b32.xlu0 %v1174, 32
    %v1241 = vpop.permute.xlu0 %1240
    %1242 = vrot.lane.b32.xlu0 %v1175, 32
    %v1243 = vpop.permute.xlu0 %1242
    %1244 = vrot.lane.b32.xlu0 %v1176, 32
    %v1245 = vpop.permute.xlu0 %1244
    %1246 = vrot.lane.b32.xlu0 %v1177, 32
    %v1247 = vpop.permute.xlu0 %1246
    %1248 = vrot.lane.b32.xlu0 %v1178, 32
    %v1249 = vpop.permute.xlu0 %1248
    %1250 = vrot.lane.b32.xlu0 %v1179, 32
    %v1251 = vpop.permute.xlu0 %1250
    %1252 = vrot.lane.b32.xlu0 %v1180, 32
    %v1253 = vpop.permute.xlu0 %1252
    %1254 = vrot.lane.b32.xlu0 %v1181, 32
    %v1255 = vpop.permute.xlu0 %1254
    %1256 = vrot.lane.b32.xlu0 %v1182, 32
    %v1257 = vpop.permute.xlu0 %1256
    %vm1283 = vcmask 523520
    %1284 = vst.msk [vmem:[#allocation4] sm:$0xff] %vm1283, %v1209
    %1285 = vst.msk [vmem:[#allocation4 + $0x18] sm:$0xff] %vm1283, %v1211
    %1286 = vst.msk [vmem:[#allocation4 + $0x30] sm:$0xff] %vm1283, %v1213
    %1287 = vst.msk [vmem:[#allocation4 + $0x48] sm:$0xff] %vm1283, %v1215
    %1288 = vst.msk [vmem:[#allocation4 + $0x60] sm:$0xff] %vm1283, %v1217
    %1289 = vst.msk [vmem:[#allocation4 + $0x78] sm:$0xff] %vm1283, %v1219
    %1290 = vst.msk [vmem:[#allocation4 + $0x90] sm:$0xff] %vm1283, %v1221
    %1291 = vst.msk [vmem:[#allocation4 + $0xa8] sm:$0xff] %vm1283, %v1223
    %1292 = vst.msk [vmem:[#allocation4 + $0xc0] sm:$0xff] %vm1283, %v1225
    %1293 = vst.msk [vmem:[#allocation4 + $0xd8] sm:$0xff] %vm1283, %v1227
    %1294 = vst.msk [vmem:[#allocation4 + $0xf0] sm:$0xff] %vm1283, %v1229
    %1295 = vst.msk [vmem:[#allocation4 + $0x108] sm:$0xff] %vm1283, %v1231
    %1296 = vst.msk [vmem:[#allocation4 + $0x120] sm:$0xff] %vm1283, %v1233
    %1297 = vst.msk [vmem:[#allocation4 + $0x138] sm:$0xff] %vm1283, %v1235
    %1298 = vst.msk [vmem:[#allocation4 + $0x150] sm:$0xff] %vm1283, %v1237
    %1299 = vst.msk [vmem:[#allocation4 + $0x168] sm:$0xff] %vm1283, %v1239
    %1300 = vst.msk [vmem:[#allocation4 + $0x180] sm:$0xff] %vm1283, %v1241
    %1301 = vst.msk [vmem:[#allocation4 + $0x198] sm:$0xff] %vm1283, %v1243
    %1302 = vst.msk [vmem:[#allocation4 + $0x1b0] sm:$0xff] %vm1283, %v1245
    %1303 = vst.msk [vmem:[#allocation4 + $0x1c8] sm:$0xff] %vm1283, %v1247
    %1304 = vst.msk [vmem:[#allocation4 + $0x1e0] sm:$0xff] %vm1283, %v1249
    %1305 = vst.msk [vmem:[#allocation4 + $0x1f8] sm:$0xff] %vm1283, %v1251
    %1306 = vst.msk [vmem:[#allocation4 + $0x210] sm:$0xff] %vm1283, %v1253
    %1307 = vst.msk [vmem:[#allocation4 + $0x228] sm:$0xff] %vm1283, %v1255
    %1308 = vst.msk [vmem:[#allocation4 + $0x240] sm:$0xff] %vm1283, %v1257
    %v1309 = vld [vmem:[#allocation3 + $0x7] sm:$0xff]
    %v1310 = vld [vmem:[#allocation3 + $0xf] sm:$0xff]
    %v1311 = vld [vmem:[#allocation3 + $0x17] sm:$0xff]
    %v1312 = vld [vmem:[#allocation3 + $0x1f] sm:$0xff]
    %v1313 = vld [vmem:[#allocation3 + $0x27] sm:$0xff]
    %v1314 = vld [vmem:[#allocation3 + $0x2f] sm:$0xff]
    %v1315 = vld [vmem:[#allocation3 + $0x37] sm:$0xff]
    %v1316 = vld [vmem:[#allocation3 + $0x3f] sm:$0xff]
    %v1317 = vld [vmem:[#allocation3 + $0x47] sm:$0xff]
    %v1318 = vld [vmem:[#allocation3 + $0x4f] sm:$0xff]
    %v1319 = vld [vmem:[#allocation3 + $0x57] sm:$0xff]
    %v1320 = vld [vmem:[#allocation3 + $0x5f] sm:$0xff]
    %v1321 = vld [vmem:[#allocation3 + $0x67] sm:$0xff]
    %v1322 = vld [vmem:[#allocation3 + $0x6f] sm:$0xff]
    %v1323 = vld [vmem:[#allocation3 + $0x77] sm:$0xff]
    %v1324 = vld [vmem:[#allocation3 + $0x7f] sm:$0xff]
    %v1325 = vld [vmem:[#allocation3 + $0x87] sm:$0xff]
    %v1326 = vld [vmem:[#allocation3 + $0x8f] sm:$0xff]
    %v1327 = vld [vmem:[#allocation3 + $0x97] sm:$0xff]
    %v1328 = vld [vmem:[#allocation3 + $0x9f] sm:$0xff]
    %v1329 = vld [vmem:[#allocation3 + $0xa7] sm:$0xff]
    %v1330 = vld [vmem:[#allocation3 + $0xaf] sm:$0xff]
    %v1331 = vld [vmem:[#allocation3 + $0xb7] sm:$0xff]
    %v1332 = vld [vmem:[#allocation3 + $0xbf] sm:$0xff]
    %v1333 = vld [vmem:[#allocation3 + $0xc7] sm:$0xff]
    %1359 = vrot.lane.b32.xlu0 %v1309, 64
    %v1360 = vpop.permute.xlu0 %1359
    %1361 = vrot.lane.b32.xlu0 %v1310, 64
    %v1362 = vpop.permute.xlu0 %1361
    %1363 = vrot.lane.b32.xlu0 %v1311, 64
    %v1364 = vpop.permute.xlu0 %1363
    %1365 = vrot.lane.b32.xlu0 %v1312, 64
    %v1366 = vpop.permute.xlu0 %1365
    %1367 = vrot.lane.b32.xlu0 %v1313, 64
    %v1368 = vpop.permute.xlu0 %1367
    %1369 = vrot.lane.b32.xlu0 %v1314, 64
    %v1370 = vpop.permute.xlu0 %1369
    %1371 = vrot.lane.b32.xlu0 %v1315, 64
    %v1372 = vpop.permute.xlu0 %1371
    %1373 = vrot.lane.b32.xlu0 %v1316, 64
    %v1374 = vpop.permute.xlu0 %1373
    %1375 = vrot.lane.b32.xlu0 %v1317, 64
    %v1376 = vpop.permute.xlu0 %1375
    %1377 = vrot.lane.b32.xlu0 %v1318, 64
    %v1378 = vpop.permute.xlu0 %1377
    %1379 = vrot.lane.b32.xlu0 %v1319, 64
    %v1380 = vpop.permute.xlu0 %1379
    %1381 = vrot.lane.b32.xlu0 %v1320, 64
    %v1382 = vpop.permute.xlu0 %1381
    %1383 = vrot.lane.b32.xlu0 %v1321, 64
    %v1384 = vpop.permute.xlu0 %1383
    %1385 = vrot.lane.b32.xlu0 %v1322, 64
    %v1386 = vpop.permute.xlu0 %1385
    %1387 = vrot.lane.b32.xlu0 %v1323, 64
    %v1388 = vpop.permute.xlu0 %1387
    %1389 = vrot.lane.b32.xlu0 %v1324, 64
    %v1390 = vpop.permute.xlu0 %1389
    %1391 = vrot.lane.b32.xlu0 %v1325, 64
    %v1392 = vpop.permute.xlu0 %1391
    %1393 = vrot.lane.b32.xlu0 %v1326, 64
    %v1394 = vpop.permute.xlu0 %1393
    %1395 = vrot.lane.b32.xlu0 %v1327, 64
    %v1396 = vpop.permute.xlu0 %1395
    %1397 = vrot.lane.b32.xlu0 %v1328, 64
    %v1398 = vpop.permute.xlu0 %1397
    %1399 = vrot.lane.b32.xlu0 %v1329, 64
    %v1400 = vpop.permute.xlu0 %1399
    %1401 = vrot.lane.b32.xlu0 %v1330, 64
    %v1402 = vpop.permute.xlu0 %1401
    %1403 = vrot.lane.b32.xlu0 %v1331, 64
    %v1404 = vpop.permute.xlu0 %1403
    %1405 = vrot.lane.b32.xlu0 %v1332, 64
    %v1406 = vpop.permute.xlu0 %1405
    %1407 = vrot.lane.b32.xlu0 %v1333, 64
    %v1408 = vpop.permute.xlu0 %1407
    %vm1434 = vcmask 785920
    %1435 = vst.msk [vmem:[#allocation4] sm:$0xff] %vm1434, %v1360
    %1436 = vst.msk [vmem:[#allocation4 + $0x18] sm:$0xff] %vm1434, %v1362
    %1437 = vst.msk [vmem:[#allocation4 + $0x30] sm:$0xff] %vm1434, %v1364
    %1438 = vst.msk [vmem:[#allocation4 + $0x48] sm:$0xff] %vm1434, %v1366
    %1439 = vst.msk [vmem:[#allocation4 + $0x60] sm:$0xff] %vm1434, %v1368
    %1440 = vst.msk [vmem:[#allocation4 + $0x78] sm:$0xff] %vm1434, %v1370
    %1441 = vst.msk [vmem:[#allocation4 + $0x90] sm:$0xff] %vm1434, %v1372
    %1442 = vst.msk [vmem:[#allocation4 + $0xa8] sm:$0xff] %vm1434, %v1374
    %1443 = vst.msk [vmem:[#allocation4 + $0xc0] sm:$0xff] %vm1434, %v1376
    %1444 = vst.msk [vmem:[#allocation4 + $0xd8] sm:$0xff] %vm1434, %v1378
    %1445 = vst.msk [vmem:[#allocation4 + $0xf0] sm:$0xff] %vm1434, %v1380
    %1446 = vst.msk [vmem:[#allocation4 + $0x108] sm:$0xff] %vm1434, %v1382
    %1447 = vst.msk [vmem:[#allocation4 + $0x120] sm:$0xff] %vm1434, %v1384
    %1448 = vst.msk [vmem:[#allocation4 + $0x138] sm:$0xff] %vm1434, %v1386
    %1449 = vst.msk [vmem:[#allocation4 + $0x150] sm:$0xff] %vm1434, %v1388
    %1450 = vst.msk [vmem:[#allocation4 + $0x168] sm:$0xff] %vm1434, %v1390
    %1451 = vst.msk [vmem:[#allocation4 + $0x180] sm:$0xff] %vm1434, %v1392
    %1452 = vst.msk [vmem:[#allocation4 + $0x198] sm:$0xff] %vm1434, %v1394
    %1453 = vst.msk [vmem:[#allocation4 + $0x1b0] sm:$0xff] %vm1434, %v1396
    %1454 = vst.msk [vmem:[#allocation4 + $0x1c8] sm:$0xff] %vm1434, %v1398
    %1455 = vst.msk [vmem:[#allocation4 + $0x1e0] sm:$0xff] %vm1434, %v1400
    %1456 = vst.msk [vmem:[#allocation4 + $0x1f8] sm:$0xff] %vm1434, %v1402
    %1457 = vst.msk [vmem:[#allocation4 + $0x210] sm:$0xff] %vm1434, %v1404
    %1458 = vst.msk [vmem:[#allocation4 + $0x228] sm:$0xff] %vm1434, %v1406
    %1459 = vst.msk [vmem:[#allocation4 + $0x240] sm:$0xff] %vm1434, %v1408
    %v1460 = vld [vmem:[#allocation3 + $0xf] sm:$0xff]
    %v1461 = vld [vmem:[#allocation3 + $0x17] sm:$0xff]
    %v1462 = vld [vmem:[#allocation3 + $0x1f] sm:$0xff]
    %v1463 = vld [vmem:[#allocation3 + $0x27] sm:$0xff]
    %v1464 = vld [vmem:[#allocation3 + $0x2f] sm:$0xff]
    %v1465 = vld [vmem:[#allocation3 + $0x37] sm:$0xff]
    %v1466 = vld [vmem:[#allocation3 + $0x3f] sm:$0xff]
    %v1467 = vld [vmem:[#allocation3 + $0x47] sm:$0xff]
    %v1468 = vld [vmem:[#allocation3 + $0x4f] sm:$0xff]
    %v1469 = vld [vmem:[#allocation3 + $0x57] sm:$0xff]
    %v1470 = vld [vmem:[#allocation3 + $0x5f] sm:$0xff]
    %v1471 = vld [vmem:[#allocation3 + $0x67] sm:$0xff]
    %v1472 = vld [vmem:[#allocation3 + $0x6f] sm:$0xff]
    %v1473 = vld [vmem:[#allocation3 + $0x77] sm:$0xff]
    %v1474 = vld [vmem:[#allocation3 + $0x7f] sm:$0xff]
    %v1475 = vld [vmem:[#allocation3 + $0x87] sm:$0xff]
    %v1476 = vld [vmem:[#allocation3 + $0x8f] sm:$0xff]
    %v1477 = vld [vmem:[#allocation3 + $0x97] sm:$0xff]
    %v1478 = vld [vmem:[#allocation3 + $0x9f] sm:$0xff]
    %v1479 = vld [vmem:[#allocation3 + $0xa7] sm:$0xff]
    %v1480 = vld [vmem:[#allocation3 + $0xaf] sm:$0xff]
    %v1481 = vld [vmem:[#allocation3 + $0xb7] sm:$0xff]
    %v1482 = vld [vmem:[#allocation3 + $0xbf] sm:$0xff]
    %v1483 = vld [vmem:[#allocation3 + $0xc7] sm:$0xff]
    %v1484 = vld [vmem:[#allocation3 + $0xcf] sm:$0xff]
    %1510 = vrot.lane.b32.xlu0 %v1460, 96
    %v1511 = vpop.permute.xlu0 %1510
    %1512 = vrot.lane.b32.xlu0 %v1461, 96
    %v1513 = vpop.permute.xlu0 %1512
    %1514 = vrot.lane.b32.xlu0 %v1462, 96
    %v1515 = vpop.permute.xlu0 %1514
    %1516 = vrot.lane.b32.xlu0 %v1463, 96
    %v1517 = vpop.permute.xlu0 %1516
    %1518 = vrot.lane.b32.xlu0 %v1464, 96
    %v1519 = vpop.permute.xlu0 %1518
    %1520 = vrot.lane.b32.xlu0 %v1465, 96
    %v1521 = vpop.permute.xlu0 %1520
    %1522 = vrot.lane.b32.xlu0 %v1466, 96
    %v1523 = vpop.permute.xlu0 %1522
    %1524 = vrot.lane.b32.xlu0 %v1467, 96
    %v1525 = vpop.permute.xlu0 %1524
    %1526 = vrot.lane.b32.xlu0 %v1468, 96
    %v1527 = vpop.permute.xlu0 %1526
    %1528 = vrot.lane.b32.xlu0 %v1469, 96
    %v1529 = vpop.permute.xlu0 %1528
    %1530 = vrot.lane.b32.xlu0 %v1470, 96
    %v1531 = vpop.permute.xlu0 %1530
    %1532 = vrot.lane.b32.xlu0 %v1471, 96
    %v1533 = vpop.permute.xlu0 %1532
    %1534 = vrot.lane.b32.xlu0 %v1472, 96
    %v1535 = vpop.permute.xlu0 %1534
    %1536 = vrot.lane.b32.xlu0 %v1473, 96
    %v1537 = vpop.permute.xlu0 %1536
    %1538 = vrot.lane.b32.xlu0 %v1474, 96
    %v1539 = vpop.permute.xlu0 %1538
    %1540 = vrot.lane.b32.xlu0 %v1475, 96
    %v1541 = vpop.permute.xlu0 %1540
    %1542 = vrot.lane.b32.xlu0 %v1476, 96
    %v1543 = vpop.permute.xlu0 %1542
    %1544 = vrot.lane.b32.xlu0 %v1477, 96
    %v1545 = vpop.permute.xlu0 %1544
    %1546 = vrot.lane.b32.xlu0 %v1478, 96
    %v1547 = vpop.permute.xlu0 %1546
    %1548 = vrot.lane.b32.xlu0 %v1479, 96
    %v1549 = vpop.permute.xlu0 %1548
    %1550 = vrot.lane.b32.xlu0 %v1480, 96
    %v1551 = vpop.permute.xlu0 %1550
    %1552 = vrot.lane.b32.xlu0 %v1481, 96
    %v1553 = vpop.permute.xlu0 %1552
    %1554 = vrot.lane.b32.xlu0 %v1482, 96
    %v1555 = vpop.permute.xlu0 %1554
    %1556 = vrot.lane.b32.xlu0 %v1483, 96
    %v1557 = vpop.permute.xlu0 %1556
    %1558 = vrot.lane.b32.xlu0 %v1484, 96
    %v1559 = vpop.permute.xlu0 %1558
    %vm1585 = vcmask 1048320
    %1586 = vst.msk [vmem:[#allocation4] sm:$0xff] %vm1585, %v1511
    %1587 = vst.msk [vmem:[#allocation4 + $0x18] sm:$0xff] %vm1585, %v1513
    %1588 = vst.msk [vmem:[#allocation4 + $0x30] sm:$0xff] %vm1585, %v1515
    %1589 = vst.msk [vmem:[#allocation4 + $0x48] sm:$0xff] %vm1585, %v1517
    %1590 = vst.msk [vmem:[#allocation4 + $0x60] sm:$0xff] %vm1585, %v1519
    %1591 = vst.msk [vmem:[#allocation4 + $0x78] sm:$0xff] %vm1585, %v1521
    %1592 = vst.msk [vmem:[#allocation4 + $0x90] sm:$0xff] %vm1585, %v1523
    %1593 = vst.msk [vmem:[#allocation4 + $0xa8] sm:$0xff] %vm1585, %v1525
    %1594 = vst.msk [vmem:[#allocation4 + $0xc0] sm:$0xff] %vm1585, %v1527
    %1595 = vst.msk [vmem:[#allocation4 + $0xd8] sm:$0xff] %vm1585, %v1529
    %1596 = vst.msk [vmem:[#allocation4 + $0xf0] sm:$0xff] %vm1585, %v1531
    %1597 = vst.msk [vmem:[#allocation4 + $0x108] sm:$0xff] %vm1585, %v1533
    %1598 = vst.msk [vmem:[#allocation4 + $0x120] sm:$0xff] %vm1585, %v1535
    %1599 = vst.msk [vmem:[#allocation4 + $0x138] sm:$0xff] %vm1585, %v1537
    %1600 = vst.msk [vmem:[#allocation4 + $0x150] sm:$0xff] %vm1585, %v1539
    %1601 = vst.msk [vmem:[#allocation4 + $0x168] sm:$0xff] %vm1585, %v1541
    %1602 = vst.msk [vmem:[#allocation4 + $0x180] sm:$0xff] %vm1585, %v1543
    %1603 = vst.msk [vmem:[#allocation4 + $0x198] sm:$0xff] %vm1585, %v1545
    %1604 = vst.msk [vmem:[#allocation4 + $0x1b0] sm:$0xff] %vm1585, %v1547
    %1605 = vst.msk [vmem:[#allocation4 + $0x1c8] sm:$0xff] %vm1585, %v1549
    %1606 = vst.msk [vmem:[#allocation4 + $0x1e0] sm:$0xff] %vm1585, %v1551
    %1607 = vst.msk [vmem:[#allocation4 + $0x1f8] sm:$0xff] %vm1585, %v1553
    %1608 = vst.msk [vmem:[#allocation4 + $0x210] sm:$0xff] %vm1585, %v1555
    %1609 = vst.msk [vmem:[#allocation4 + $0x228] sm:$0xff] %vm1585, %v1557
    %1610 = vst.msk [vmem:[#allocation4 + $0x240] sm:$0xff] %vm1585, %v1559
    %v1611 = vld [vmem:[#allocation3 + $0x10] sm:$0xff]
    %v1612 = vld [vmem:[#allocation3 + $0x18] sm:$0xff]
    %v1613 = vld [vmem:[#allocation3 + $0x20] sm:$0xff]
    %v1614 = vld [vmem:[#allocation3 + $0x28] sm:$0xff]
    %v1615 = vld [vmem:[#allocation3 + $0x30] sm:$0xff]
    %v1616 = vld [vmem:[#allocation3 + $0x38] sm:$0xff]
    %v1617 = vld [vmem:[#allocation3 + $0x40] sm:$0xff]
    %v1618 = vld [vmem:[#allocation3 + $0x48] sm:$0xff]
    %v1619 = vld [vmem:[#allocation3 + $0x50] sm:$0xff]
    %v1620 = vld [vmem:[#allocation3 + $0x58] sm:$0xff]
    %v1621 = vld [vmem:[#allocation3 + $0x60] sm:$0xff]
    %v1622 = vld [vmem:[#allocation3 + $0x68] sm:$0xff]
    %v1623 = vld [vmem:[#allocation3 + $0x70] sm:$0xff]
    %v1624 = vld [vmem:[#allocation3 + $0x78] sm:$0xff]
    %v1625 = vld [vmem:[#allocation3 + $0x80] sm:$0xff]
    %v1626 = vld [vmem:[#allocation3 + $0x88] sm:$0xff]
    %v1627 = vld [vmem:[#allocation3 + $0x90] sm:$0xff]
    %v1628 = vld [vmem:[#allocation3 + $0x98] sm:$0xff]
    %v1629 = vld [vmem:[#allocation3 + $0xa0] sm:$0xff]
    %v1630 = vld [vmem:[#allocation3 + $0xa8] sm:$0xff]
    %v1631 = vld [vmem:[#allocation3 + $0xb0] sm:$0xff]
    %v1632 = vld [vmem:[#allocation3 + $0xb8] sm:$0xff]
    %v1633 = vld [vmem:[#allocation3 + $0xc0] sm:$0xff]
    %v1634 = vld [vmem:[#allocation3 + $0xc8] sm:$0xff]
    %v1635 = vld [vmem:[#allocation3 + $0xd0] sm:$0xff]
    %1636 = vst.msk [vmem:[#allocation4 + $0x8] sm:$0xff] %vm579, %v1611
    %1637 = vst.msk [vmem:[#allocation4 + $0x20] sm:$0xff] %vm579, %v1612
    %1638 = vst.msk [vmem:[#allocation4 + $0x38] sm:$0xff] %vm579, %v1613
    %1639 = vst.msk [vmem:[#allocation4 + $0x50] sm:$0xff] %vm579, %v1614
    %1640 = vst.msk [vmem:[#allocation4 + $0x68] sm:$0xff] %vm579, %v1615
    %1641 = vst.msk [vmem:[#allocation4 + $0x80] sm:$0xff] %vm579, %v1616
    %1642 = vst.msk [vmem:[#allocation4 + $0x98] sm:$0xff] %vm579, %v1617
    %1643 = vst.msk [vmem:[#allocation4 + $0xb0] sm:$0xff] %vm579, %v1618
    %1644 = vst.msk [vmem:[#allocation4 + $0xc8] sm:$0xff] %vm579, %v1619
    %1645 = vst.msk [vmem:[#allocation4 + $0xe0] sm:$0xff] %vm579, %v1620
    %1646 = vst.msk [vmem:[#allocation4 + $0xf8] sm:$0xff] %vm579, %v1621
    %1647 = vst.msk [vmem:[#allocation4 + $0x110] sm:$0xff] %vm579, %v1622
    %1648 = vst.msk [vmem:[#allocation4 + $0x128] sm:$0xff] %vm579, %v1623
    %1649 = vst.msk [vmem:[#allocation4 + $0x140] sm:$0xff] %vm579, %v1624
    %1650 = vst.msk [vmem:[#allocation4 + $0x158] sm:$0xff] %vm579, %v1625
    %1651 = vst.msk [vmem:[#allocation4 + $0x170] sm:$0xff] %vm579, %v1626
    %1652 = vst.msk [vmem:[#allocation4 + $0x188] sm:$0xff] %vm579, %v1627
    %1653 = vst.msk [vmem:[#allocation4 + $0x1a0] sm:$0xff] %vm579, %v1628
    %1654 = vst.msk [vmem:[#allocation4 + $0x1b8] sm:$0xff] %vm579, %v1629
    %1655 = vst.msk [vmem:[#allocation4 + $0x1d0] sm:$0xff] %vm579, %v1630
    %1656 = vst.msk [vmem:[#allocation4 + $0x1e8] sm:$0xff] %vm579, %v1631
    %1657 = vst.msk [vmem:[#allocation4 + $0x200] sm:$0xff] %vm579, %v1632
    %1658 = vst.msk [vmem:[#allocation4 + $0x218] sm:$0xff] %vm579, %v1633
    %1659 = vst.msk [vmem:[#allocation4 + $0x230] sm:$0xff] %vm579, %v1634
    %1660 = vst.msk [vmem:[#allocation4 + $0x248] sm:$0xff] %vm579, %v1635
    %v1661 = vld [vmem:[#allocation3 + $0x11] sm:$0xff]
    %v1662 = vld [vmem:[#allocation3 + $0x19] sm:$0xff]
    %v1663 = vld [vmem:[#allocation3 + $0x21] sm:$0xff]
    %v1664 = vld [vmem:[#allocation3 + $0x29] sm:$0xff]
    %v1665 = vld [vmem:[#allocation3 + $0x31] sm:$0xff]
    %v1666 = vld [vmem:[#allocation3 + $0x39] sm:$0xff]
    %v1667 = vld [vmem:[#allocation3 + $0x41] sm:$0xff]
    %v1668 = vld [vmem:[#allocation3 + $0x49] sm:$0xff]
    %v1669 = vld [vmem:[#allocation3 + $0x51] sm:$0xff]
    %v1670 = vld [vmem:[#allocation3 + $0x59] sm:$0xff]
    %v1671 = vld [vmem:[#allocation3 + $0x61] sm:$0xff]
    %v1672 = vld [vmem:[#allocation3 + $0x69] sm:$0xff]
    %v1673 = vld [vmem:[#allocation3 + $0x71] sm:$0xff]
    %v1674 = vld [vmem:[#allocation3 + $0x79] sm:$0xff]
    %v1675 = vld [vmem:[#allocation3 + $0x81] sm:$0xff]
    %v1676 = vld [vmem:[#allocation3 + $0x89] sm:$0xff]
    %v1677 = vld [vmem:[#allocation3 + $0x91] sm:$0xff]
    %v1678 = vld [vmem:[#allocation3 + $0x99] sm:$0xff]
    %v1679 = vld [vmem:[#allocation3 + $0xa1] sm:$0xff]
    %v1680 = vld [vmem:[#allocation3 + $0xa9] sm:$0xff]
    %v1681 = vld [vmem:[#allocation3 + $0xb1] sm:$0xff]
    %v1682 = vld [vmem:[#allocation3 + $0xb9] sm:$0xff]
    %v1683 = vld [vmem:[#allocation3 + $0xc1] sm:$0xff]
    %v1684 = vld [vmem:[#allocation3 + $0xc9] sm:$0xff]
    %v1685 = vld [vmem:[#allocation3 + $0xd1] sm:$0xff]
    %1711 = vrot.lane.b32.xlu0 %v1661, 32
    %v1712 = vpop.permute.xlu0 %1711
    %1713 = vrot.lane.b32.xlu0 %v1662, 32
    %v1714 = vpop.permute.xlu0 %1713
    %1715 = vrot.lane.b32.xlu0 %v1663, 32
    %v1716 = vpop.permute.xlu0 %1715
    %1717 = vrot.lane.b32.xlu0 %v1664, 32
    %v1718 = vpop.permute.xlu0 %1717
    %1719 = vrot.lane.b32.xlu0 %v1665, 32
    %v1720 = vpop.permute.xlu0 %1719
    %1721 = vrot.lane.b32.xlu0 %v1666, 32
    %v1722 = vpop.permute.xlu0 %1721
    %1723 = vrot.lane.b32.xlu0 %v1667, 32
    %v1724 = vpop.permute.xlu0 %1723
    %1725 = vrot.lane.b32.xlu0 %v1668, 32
    %v1726 = vpop.permute.xlu0 %1725
    %1727 = vrot.lane.b32.xlu0 %v1669, 32
    %v1728 = vpop.permute.xlu0 %1727
    %1729 = vrot.lane.b32.xlu0 %v1670, 32
    %v1730 = vpop.permute.xlu0 %1729
    %1731 = vrot.lane.b32.xlu0 %v1671, 32
    %v1732 = vpop.permute.xlu0 %1731
    %1733 = vrot.lane.b32.xlu0 %v1672, 32
    %v1734 = vpop.permute.xlu0 %1733
    %1735 = vrot.lane.b32.xlu0 %v1673, 32
    %v1736 = vpop.permute.xlu0 %1735
    %1737 = vrot.lane.b32.xlu0 %v1674, 32
    %v1738 = vpop.permute.xlu0 %1737
    %1739 = vrot.lane.b32.xlu0 %v1675, 32
    %v1740 = vpop.permute.xlu0 %1739
    %1741 = vrot.lane.b32.xlu0 %v1676, 32
    %v1742 = vpop.permute.xlu0 %1741
    %1743 = vrot.lane.b32.xlu0 %v1677, 32
    %v1744 = vpop.permute.xlu0 %1743
    %1745 = vrot.lane.b32.xlu0 %v1678, 32
    %v1746 = vpop.permute.xlu0 %1745
    %1747 = vrot.lane.b32.xlu0 %v1679, 32
    %v1748 = vpop.permute.xlu0 %1747
    %1749 = vrot.lane.b32.xlu0 %v1680, 32
    %v1750 = vpop.permute.xlu0 %1749
    %1751 = vrot.lane.b32.xlu0 %v1681, 32
    %v1752 = vpop.permute.xlu0 %1751
    %1753 = vrot.lane.b32.xlu0 %v1682, 32
    %v1754 = vpop.permute.xlu0 %1753
    %1755 = vrot.lane.b32.xlu0 %v1683, 32
    %v1756 = vpop.permute.xlu0 %1755
    %1757 = vrot.lane.b32.xlu0 %v1684, 32
    %v1758 = vpop.permute.xlu0 %1757
    %1759 = vrot.lane.b32.xlu0 %v1685, 32
    %v1760 = vpop.permute.xlu0 %1759
    %1786 = vst.msk [vmem:[#allocation4 + $0x8] sm:$0xff] %vm1283, %v1712
    %1787 = vst.msk [vmem:[#allocation4 + $0x20] sm:$0xff] %vm1283, %v1714
    %1788 = vst.msk [vmem:[#allocation4 + $0x38] sm:$0xff] %vm1283, %v1716
    %1789 = vst.msk [vmem:[#allocation4 + $0x50] sm:$0xff] %vm1283, %v1718
    %1790 = vst.msk [vmem:[#allocation4 + $0x68] sm:$0xff] %vm1283, %v1720
    %1791 = vst.msk [vmem:[#allocation4 + $0x80] sm:$0xff] %vm1283, %v1722
    %1792 = vst.msk [vmem:[#allocation4 + $0x98] sm:$0xff] %vm1283, %v1724
    %1793 = vst.msk [vmem:[#allocation4 + $0xb0] sm:$0xff] %vm1283, %v1726
    %1794 = vst.msk [vmem:[#allocation4 + $0xc8] sm:$0xff] %vm1283, %v1728
    %1795 = vst.msk [vmem:[#allocation4 + $0xe0] sm:$0xff] %vm1283, %v1730
    %1796 = vst.msk [vmem:[#allocation4 + $0xf8] sm:$0xff] %vm1283, %v1732
    %1797 = vst.msk [vmem:[#allocation4 + $0x110] sm:$0xff] %vm1283, %v1734
    %1798 = vst.msk [vmem:[#allocation4 + $0x128] sm:$0xff] %vm1283, %v1736
    %1799 = vst.msk [vmem:[#allocation4 + $0x140] sm:$0xff] %vm1283, %v1738
    %1800 = vst.msk [vmem:[#allocation4 + $0x158] sm:$0xff] %vm1283, %v1740
    %1801 = vst.msk [vmem:[#allocation4 + $0x170] sm:$0xff] %vm1283, %v1742
    %1802 = vst.msk [vmem:[#allocation4 + $0x188] sm:$0xff] %vm1283, %v1744
    %1803 = vst.msk [vmem:[#allocation4 + $0x1a0] sm:$0xff] %vm1283, %v1746
    %1804 = vst.msk [vmem:[#allocation4 + $0x1b8] sm:$0xff] %vm1283, %v1748
    %1805 = vst.msk [vmem:[#allocation4 + $0x1d0] sm:$0xff] %vm1283, %v1750
    %1806 = vst.msk [vmem:[#allocation4 + $0x1e8] sm:$0xff] %vm1283, %v1752
    %1807 = vst.msk [vmem:[#allocation4 + $0x200] sm:$0xff] %vm1283, %v1754
    %1808 = vst.msk [vmem:[#allocation4 + $0x218] sm:$0xff] %vm1283, %v1756
    %1809 = vst.msk [vmem:[#allocation4 + $0x230] sm:$0xff] %vm1283, %v1758
    %1810 = vst.msk [vmem:[#allocation4 + $0x248] sm:$0xff] %vm1283, %v1760
    %v1811 = vld [vmem:[#allocation3 + $0x19] sm:$0xff]
    %v1812 = vld [vmem:[#allocation3 + $0x21] sm:$0xff]
    %v1813 = vld [vmem:[#allocation3 + $0x29] sm:$0xff]
    %v1814 = vld [vmem:[#allocation3 + $0x31] sm:$0xff]
    %v1815 = vld [vmem:[#allocation3 + $0x39] sm:$0xff]
    %v1816 = vld [vmem:[#allocation3 + $0x41] sm:$0xff]
    %v1817 = vld [vmem:[#allocation3 + $0x49] sm:$0xff]
    %v1818 = vld [vmem:[#allocation3 + $0x51] sm:$0xff]
    %v1819 = vld [vmem:[#allocation3 + $0x59] sm:$0xff]
    %v1820 = vld [vmem:[#allocation3 + $0x61] sm:$0xff]
    %v1821 = vld [vmem:[#allocation3 + $0x69] sm:$0xff]
    %v1822 = vld [vmem:[#allocation3 + $0x71] sm:$0xff]
    %v1823 = vld [vmem:[#allocation3 + $0x79] sm:$0xff]
    %v1824 = vld [vmem:[#allocation3 + $0x81] sm:$0xff]
    %v1825 = vld [vmem:[#allocation3 + $0x89] sm:$0xff]
    %v1826 = vld [vmem:[#allocation3 + $0x91] sm:$0xff]
    %v1827 = vld [vmem:[#allocation3 + $0x99] sm:$0xff]
    %v1828 = vld [vmem:[#allocation3 + $0xa1] sm:$0xff]
    %v1829 = vld [vmem:[#allocation3 + $0xa9] sm:$0xff]
    %v1830 = vld [vmem:[#allocation3 + $0xb1] sm:$0xff]
    %v1831 = vld [vmem:[#allocation3 + $0xb9] sm:$0xff]
    %v1832 = vld [vmem:[#allocation3 + $0xc1] sm:$0xff]
    %v1833 = vld [vmem:[#allocation3 + $0xc9] sm:$0xff]
    %v1834 = vld [vmem:[#allocation3 + $0xd1] sm:$0xff]
    %v1835 = vld [vmem:[#allocation3 + $0xd9] sm:$0xff]
    %1861 = vrot.lane.b32.xlu0 %v1811, 64
    %v1862 = vpop.permute.xlu0 %1861
    %1863 = vrot.lane.b32.xlu0 %v1812, 64
    %v1864 = vpop.permute.xlu0 %1863
    %1865 = vrot.lane.b32.xlu0 %v1813, 64
    %v1866 = vpop.permute.xlu0 %1865
    %1867 = vrot.lane.b32.xlu0 %v1814, 64
    %v1868 = vpop.permute.xlu0 %1867
    %1869 = vrot.lane.b32.xlu0 %v1815, 64
    %v1870 = vpop.permute.xlu0 %1869
    %1871 = vrot.lane.b32.xlu0 %v1816, 64
    %v1872 = vpop.permute.xlu0 %1871
    %1873 = vrot.lane.b32.xlu0 %v1817, 64
    %v1874 = vpop.permute.xlu0 %1873
    %1875 = vrot.lane.b32.xlu0 %v1818, 64
    %v1876 = vpop.permute.xlu0 %1875
    %1877 = vrot.lane.b32.xlu0 %v1819, 64
    %v1878 = vpop.permute.xlu0 %1877
    %1879 = vrot.lane.b32.xlu0 %v1820, 64
    %v1880 = vpop.permute.xlu0 %1879
    %1881 = vrot.lane.b32.xlu0 %v1821, 64
    %v1882 = vpop.permute.xlu0 %1881
    %1883 = vrot.lane.b32.xlu0 %v1822, 64
    %v1884 = vpop.permute.xlu0 %1883
    %1885 = vrot.lane.b32.xlu0 %v1823, 64
    %v1886 = vpop.permute.xlu0 %1885
    %1887 = vrot.lane.b32.xlu0 %v1824, 64
    %v1888 = vpop.permute.xlu0 %1887
    %1889 = vrot.lane.b32.xlu0 %v1825, 64
    %v1890 = vpop.permute.xlu0 %1889
    %1891 = vrot.lane.b32.xlu0 %v1826, 64
    %v1892 = vpop.permute.xlu0 %1891
    %1893 = vrot.lane.b32.xlu0 %v1827, 64
    %v1894 = vpop.permute.xlu0 %1893
    %1895 = vrot.lane.b32.xlu0 %v1828, 64
    %v1896 = vpop.permute.xlu0 %1895
    %1897 = vrot.lane.b32.xlu0 %v1829, 64
    %v1898 = vpop.permute.xlu0 %1897
    %1899 = vrot.lane.b32.xlu0 %v1830, 64
    %v1900 = vpop.permute.xlu0 %1899
    %1901 = vrot.lane.b32.xlu0 %v1831, 64
    %v1902 = vpop.permute.xlu0 %1901
    %1903 = vrot.lane.b32.xlu0 %v1832, 64
    %v1904 = vpop.permute.xlu0 %1903
    %1905 = vrot.lane.b32.xlu0 %v1833, 64
    %v1906 = vpop.permute.xlu0 %1905
    %1907 = vrot.lane.b32.xlu0 %v1834, 64
    %v1908 = vpop.permute.xlu0 %1907
    %1909 = vrot.lane.b32.xlu0 %v1835, 64
    %v1910 = vpop.permute.xlu0 %1909
    %1936 = vst.msk [vmem:[#allocation4 + $0x8] sm:$0xff] %vm1434, %v1862
    %1937 = vst.msk [vmem:[#allocation4 + $0x20] sm:$0xff] %vm1434, %v1864
    %1938 = vst.msk [vmem:[#allocation4 + $0x38] sm:$0xff] %vm1434, %v1866
    %1939 = vst.msk [vmem:[#allocation4 + $0x50] sm:$0xff] %vm1434, %v1868
    %1940 = vst.msk [vmem:[#allocation4 + $0x68] sm:$0xff] %vm1434, %v1870
    %1941 = vst.msk [vmem:[#allocation4 + $0x80] sm:$0xff] %vm1434, %v1872
    %1942 = vst.msk [vmem:[#allocation4 + $0x98] sm:$0xff] %vm1434, %v1874
    %1943 = vst.msk [vmem:[#allocation4 + $0xb0] sm:$0xff] %vm1434, %v1876
    %1944 = vst.msk [vmem:[#allocation4 + $0xc8] sm:$0xff] %vm1434, %v1878
    %1945 = vst.msk [vmem:[#allocation4 + $0xe0] sm:$0xff] %vm1434, %v1880
    %1946 = vst.msk [vmem:[#allocation4 + $0xf8] sm:$0xff] %vm1434, %v1882
    %1947 = vst.msk [vmem:[#allocation4 + $0x110] sm:$0xff] %vm1434, %v1884
    %1948 = vst.msk [vmem:[#allocation4 + $0x128] sm:$0xff] %vm1434, %v1886
    %1949 = vst.msk [vmem:[#allocation4 + $0x140] sm:$0xff] %vm1434, %v1888
    %1950 = vst.msk [vmem:[#allocation4 + $0x158] sm:$0xff] %vm1434, %v1890
    %1951 = vst.msk [vmem:[#allocation4 + $0x170] sm:$0xff] %vm1434, %v1892
    %1952 = vst.msk [vmem:[#allocation4 + $0x188] sm:$0xff] %vm1434, %v1894
    %1953 = vst.msk [vmem:[#allocation4 + $0x1a0] sm:$0xff] %vm1434, %v1896
    %1954 = vst.msk [vmem:[#allocation4 + $0x1b8] sm:$0xff] %vm1434, %v1898
    %1955 = vst.msk [vmem:[#allocation4 + $0x1d0] sm:$0xff] %vm1434, %v1900
    %1956 = vst.msk [vmem:[#allocation4 + $0x1e8] sm:$0xff] %vm1434, %v1902
    %1957 = vst.msk [vmem:[#allocation4 + $0x200] sm:$0xff] %vm1434, %v1904
    %1958 = vst.msk [vmem:[#allocation4 + $0x218] sm:$0xff] %vm1434, %v1906
    %1959 = vst.msk [vmem:[#allocation4 + $0x230] sm:$0xff] %vm1434, %v1908
    %1960 = vst.msk [vmem:[#allocation4 + $0x248] sm:$0xff] %vm1434, %v1910
    %v1961 = vld [vmem:[#allocation3 + $0x1a] sm:$0xff]
    %v1962 = vld [vmem:[#allocation3 + $0x22] sm:$0xff]
    %v1963 = vld [vmem:[#allocation3 + $0x2a] sm:$0xff]
    %v1964 = vld [vmem:[#allocation3 + $0x32] sm:$0xff]
    %v1965 = vld [vmem:[#allocation3 + $0x3a] sm:$0xff]
    %v1966 = vld [vmem:[#allocation3 + $0x42] sm:$0xff]
    %v1967 = vld [vmem:[#allocation3 + $0x4a] sm:$0xff]
    %v1968 = vld [vmem:[#allocation3 + $0x52] sm:$0xff]
    %v1969 = vld [vmem:[#allocation3 + $0x5a] sm:$0xff]
    %v1970 = vld [vmem:[#allocation3 + $0x62] sm:$0xff]
    %v1971 = vld [vmem:[#allocation3 + $0x6a] sm:$0xff]
    %v1972 = vld [vmem:[#allocation3 + $0x72] sm:$0xff]
    %v1973 = vld [vmem:[#allocation3 + $0x7a] sm:$0xff]
    %v1974 = vld [vmem:[#allocation3 + $0x82] sm:$0xff]
    %v1975 = vld [vmem:[#allocation3 + $0x8a] sm:$0xff]
    %v1976 = vld [vmem:[#allocation3 + $0x92] sm:$0xff]
    %v1977 = vld [vmem:[#allocation3 + $0x9a] sm:$0xff]
    %v1978 = vld [vmem:[#allocation3 + $0xa2] sm:$0xff]
    %v1979 = vld [vmem:[#allocation3 + $0xaa] sm:$0xff]
    %v1980 = vld [vmem:[#allocation3 + $0xb2] sm:$0xff]
    %v1981 = vld [vmem:[#allocation3 + $0xba] sm:$0xff]
    %v1982 = vld [vmem:[#allocation3 + $0xc2] sm:$0xff]
    %v1983 = vld [vmem:[#allocation3 + $0xca] sm:$0xff]
    %v1984 = vld [vmem:[#allocation3 + $0xd2] sm:$0xff]
    %v1985 = vld [vmem:[#allocation3 + $0xda] sm:$0xff]
    %2011 = vrot.lane.b32.xlu0 %v1961, 96
    %v2012 = vpop.permute.xlu0 %2011
    %2013 = vrot.lane.b32.xlu0 %v1962, 96
    %v2014 = vpop.permute.xlu0 %2013
    %2015 = vrot.lane.b32.xlu0 %v1963, 96
    %v2016 = vpop.permute.xlu0 %2015
    %2017 = vrot.lane.b32.xlu0 %v1964, 96
    %v2018 = vpop.permute.xlu0 %2017
    %2019 = vrot.lane.b32.xlu0 %v1965, 96
    %v2020 = vpop.permute.xlu0 %2019
    %2021 = vrot.lane.b32.xlu0 %v1966, 96
    %v2022 = vpop.permute.xlu0 %2021
    %2023 = vrot.lane.b32.xlu0 %v1967, 96
    %v2024 = vpop.permute.xlu0 %2023
    %2025 = vrot.lane.b32.xlu0 %v1968, 96
    %v2026 = vpop.permute.xlu0 %2025
    %2027 = vrot.lane.b32.xlu0 %v1969, 96
    %v2028 = vpop.permute.xlu0 %2027
    %2029 = vrot.lane.b32.xlu0 %v1970, 96
    %v2030 = vpop.permute.xlu0 %2029
    %2031 = vrot.lane.b32.xlu0 %v1971, 96
    %v2032 = vpop.permute.xlu0 %2031
    %2033 = vrot.lane.b32.xlu0 %v1972, 96
    %v2034 = vpop.permute.xlu0 %2033
    %2035 = vrot.lane.b32.xlu0 %v1973, 96
    %v2036 = vpop.permute.xlu0 %2035
    %2037 = vrot.lane.b32.xlu0 %v1974, 96
    %v2038 = vpop.permute.xlu0 %2037
    %2039 = vrot.lane.b32.xlu0 %v1975, 96
    %v2040 = vpop.permute.xlu0 %2039
    %2041 = vrot.lane.b32.xlu0 %v1976, 96
    %v2042 = vpop.permute.xlu0 %2041
    %2043 = vrot.lane.b32.xlu0 %v1977, 96
    %v2044 = vpop.permute.xlu0 %2043
    %2045 = vrot.lane.b32.xlu0 %v1978, 96
    %v2046 = vpop.permute.xlu0 %2045
    %2047 = vrot.lane.b32.xlu0 %v1979, 96
    %v2048 = vpop.permute.xlu0 %2047
    %2049 = vrot.lane.b32.xlu0 %v1980, 96
    %v2050 = vpop.permute.xlu0 %2049
    %2051 = vrot.lane.b32.xlu0 %v1981, 96
    %v2052 = vpop.permute.xlu0 %2051
    %2053 = vrot.lane.b32.xlu0 %v1982, 96
    %v2054 = vpop.permute.xlu0 %2053
    %2055 = vrot.lane.b32.xlu0 %v1983, 96
    %v2056 = vpop.permute.xlu0 %2055
    %2057 = vrot.lane.b32.xlu0 %v1984, 96
    %v2058 = vpop.permute.xlu0 %2057
    %2059 = vrot.lane.b32.xlu0 %v1985, 96
    %v2060 = vpop.permute.xlu0 %2059
    %2086 = vst.msk [vmem:[#allocation4 + $0x8] sm:$0xff] %vm1585, %v2012
    %2087 = vst.msk [vmem:[#allocation4 + $0x20] sm:$0xff] %vm1585, %v2014
    %2088 = vst.msk [vmem:[#allocation4 + $0x38] sm:$0xff] %vm1585, %v2016
    %2089 = vst.msk [vmem:[#allocation4 + $0x50] sm:$0xff] %vm1585, %v2018
    %2090 = vst.msk [vmem:[#allocation4 + $0x68] sm:$0xff] %vm1585, %v2020
    %2091 = vst.msk [vmem:[#allocation4 + $0x80] sm:$0xff] %vm1585, %v2022
    %2092 = vst.msk [vmem:[#allocation4 + $0x98] sm:$0xff] %vm1585, %v2024
    %2093 = vst.msk [vmem:[#allocation4 + $0xb0] sm:$0xff] %vm1585, %v2026
    %2094 = vst.msk [vmem:[#allocation4 + $0xc8] sm:$0xff] %vm1585, %v2028
    %2095 = vst.msk [vmem:[#allocation4 + $0xe0] sm:$0xff] %vm1585, %v2030
    %2096 = vst.msk [vmem:[#allocation4 + $0xf8] sm:$0xff] %vm1585, %v2032
    %2097 = vst.msk [vmem:[#allocation4 + $0x110] sm:$0xff] %vm1585, %v2034
    %2098 = vst.msk [vmem:[#allocation4 + $0x128] sm:$0xff] %vm1585, %v2036
    %2099 = vst.msk [vmem:[#allocation4 + $0x140] sm:$0xff] %vm1585, %v2038
    %2100 = vst.msk [vmem:[#allocation4 + $0x158] sm:$0xff] %vm1585, %v2040
    %2101 = vst.msk [vmem:[#allocation4 + $0x170] sm:$0xff] %vm1585, %v2042
    %2102 = vst.msk [vmem:[#allocation4 + $0x188] sm:$0xff] %vm1585, %v2044
    %2103 = vst.msk [vmem:[#allocation4 + $0x1a0] sm:$0xff] %vm1585, %v2046
    %2104 = vst.msk [vmem:[#allocation4 + $0x1b8] sm:$0xff] %vm1585, %v2048
    %2105 = vst.msk [vmem:[#allocation4 + $0x1d0] sm:$0xff] %vm1585, %v2050
    %2106 = vst.msk [vmem:[#allocation4 + $0x1e8] sm:$0xff] %vm1585, %v2052
    %2107 = vst.msk [vmem:[#allocation4 + $0x200] sm:$0xff] %vm1585, %v2054
    %2108 = vst.msk [vmem:[#allocation4 + $0x218] sm:$0xff] %vm1585, %v2056
    %2109 = vst.msk [vmem:[#allocation4 + $0x230] sm:$0xff] %vm1585, %v2058
    %2110 = vst.msk [vmem:[#allocation4 + $0x248] sm:$0xff] %vm1585, %v2060
    %v2111 = vld [vmem:[#allocation3 + $0x1b] sm:$0xff]
    %v2112 = vld [vmem:[#allocation3 + $0x23] sm:$0xff]
    %v2113 = vld [vmem:[#allocation3 + $0x2b] sm:$0xff]
    %v2114 = vld [vmem:[#allocation3 + $0x33] sm:$0xff]
    %v2115 = vld [vmem:[#allocation3 + $0x3b] sm:$0xff]
    %v2116 = vld [vmem:[#allocation3 + $0x43] sm:$0xff]
    %v2117 = vld [vmem:[#allocation3 + $0x4b] sm:$0xff]
    %v2118 = vld [vmem:[#allocation3 + $0x53] sm:$0xff]
    %v2119 = vld [vmem:[#allocation3 + $0x5b] sm:$0xff]
    %v2120 = vld [vmem:[#allocation3 + $0x63] sm:$0xff]
    %v2121 = vld [vmem:[#allocation3 + $0x6b] sm:$0xff]
    %v2122 = vld [vmem:[#allocation3 + $0x73] sm:$0xff]
    %v2123 = vld [vmem:[#allocation3 + $0x7b] sm:$0xff]
    %v2124 = vld [vmem:[#allocation3 + $0x83] sm:$0xff]
    %v2125 = vld [vmem:[#allocation3 + $0x8b] sm:$0xff]
    %v2126 = vld [vmem:[#allocation3 + $0x93] sm:$0xff]
    %v2127 = vld [vmem:[#allocation3 + $0x9b] sm:$0xff]
    %v2128 = vld [vmem:[#allocation3 + $0xa3] sm:$0xff]
    %v2129 = vld [vmem:[#allocation3 + $0xab] sm:$0xff]
    %v2130 = vld [vmem:[#allocation3 + $0xb3] sm:$0xff]
    %v2131 = vld [vmem:[#allocation3 + $0xbb] sm:$0xff]
    %v2132 = vld [vmem:[#allocation3 + $0xc3] sm:$0xff]
    %v2133 = vld [vmem:[#allocation3 + $0xcb] sm:$0xff]
    %v2134 = vld [vmem:[#allocation3 + $0xd3] sm:$0xff]
    %v2135 = vld [vmem:[#allocation3 + $0xdb] sm:$0xff]
    %2136 = vst.msk [vmem:[#allocation4 + $0x10] sm:$0xff] %vm579, %v2111
    %2137 = vst.msk [vmem:[#allocation4 + $0x28] sm:$0xff] %vm579, %v2112
    %2138 = vst.msk [vmem:[#allocation4 + $0x40] sm:$0xff] %vm579, %v2113
    %2139 = vst.msk [vmem:[#allocation4 + $0x58] sm:$0xff] %vm579, %v2114
    %2140 = vst.msk [vmem:[#allocation4 + $0x70] sm:$0xff] %vm579, %v2115
    %2141 = vst.msk [vmem:[#allocation4 + $0x88] sm:$0xff] %vm579, %v2116
    %2142 = vst.msk [vmem:[#allocation4 + $0xa0] sm:$0xff] %vm579, %v2117
    %2143 = vst.msk [vmem:[#allocation4 + $0xb8] sm:$0xff] %vm579, %v2118
    %2144 = vst.msk [vmem:[#allocation4 + $0xd0] sm:$0xff] %vm579, %v2119
    %2145 = vst.msk [vmem:[#allocation4 + $0xe8] sm:$0xff] %vm579, %v2120
    %2146 = vst.msk [vmem:[#allocation4 + $0x100] sm:$0xff] %vm579, %v2121
    %2147 = vst.msk [vmem:[#allocation4 + $0x118] sm:$0xff] %vm579, %v2122
    %2148 = vst.msk [vmem:[#allocation4 + $0x130] sm:$0xff] %vm579, %v2123
    %2149 = vst.msk [vmem:[#allocation4 + $0x148] sm:$0xff] %vm579, %v2124
    %2150 = vst.msk [vmem:[#allocation4 + $0x160] sm:$0xff] %vm579, %v2125
    %2151 = vst.msk [vmem:[#allocation4 + $0x178] sm:$0xff] %vm579, %v2126
    %2152 = vst.msk [vmem:[#allocation4 + $0x190] sm:$0xff] %vm579, %v2127
    %2153 = vst.msk [vmem:[#allocation4 + $0x1a8] sm:$0xff] %vm579, %v2128
    %2154 = vst.msk [vmem:[#allocation4 + $0x1c0] sm:$0xff] %vm579, %v2129
    %2155 = vst.msk [vmem:[#allocation4 + $0x1d8] sm:$0xff] %vm579, %v2130
    %2156 = vst.msk [vmem:[#allocation4 + $0x1f0] sm:$0xff] %vm579, %v2131
    %2157 = vst.msk [vmem:[#allocation4 + $0x208] sm:$0xff] %vm579, %v2132
    %2158 = vst.msk [vmem:[#allocation4 + $0x220] sm:$0xff] %vm579, %v2133
    %2159 = vst.msk [vmem:[#allocation4 + $0x238] sm:$0xff] %vm579, %v2134
    %2160 = vst.msk [vmem:[#allocation4 + $0x250] sm:$0xff] %vm579, %v2135
    %v2161 = vld [vmem:[#allocation4] sm:$0xff]
    %v2162 = vld [vmem:[#allocation4 + $0x8] sm:$0xff]
    %v2163 = vld [vmem:[#allocation4 + $0x10] sm:$0xff]
    %v2164 = vld [vmem:[#allocation4 + $0x18] sm:$0xff]
    %v2165 = vld [vmem:[#allocation4 + $0x20] sm:$0xff]
    %v2166 = vld [vmem:[#allocation4 + $0x28] sm:$0xff]
    %v2167 = vld [vmem:[#allocation4 + $0x30] sm:$0xff]
    %v2168 = vld [vmem:[#allocation4 + $0x38] sm:$0xff]
    %v2169 = vld [vmem:[#allocation4 + $0x40] sm:$0xff]
    %v2170 = vld [vmem:[#allocation4 + $0x48] sm:$0xff]
    %v2171 = vld [vmem:[#allocation4 + $0x50] sm:$0xff]
    %v2172 = vld [vmem:[#allocation4 + $0x58] sm:$0xff]
    %v2173 = vld [vmem:[#allocation4 + $0x60] sm:$0xff]
    %v2174 = vld [vmem:[#allocation4 + $0x68] sm:$0xff]
    %v2175 = vld [vmem:[#allocation4 + $0x70] sm:$0xff]
    %v2176 = vld [vmem:[#allocation4 + $0x78] sm:$0xff]
    %v2177 = vld [vmem:[#allocation4 + $0x80] sm:$0xff]
    %v2178 = vld [vmem:[#allocation4 + $0x88] sm:$0xff]
    %v2179 = vld [vmem:[#allocation4 + $0x90] sm:$0xff]
    %v2180 = vld [vmem:[#allocation4 + $0x98] sm:$0xff]
    %v2181 = vld [vmem:[#allocation4 + $0xa0] sm:$0xff]
    %v2182 = vld [vmem:[#allocation4 + $0xa8] sm:$0xff]
    %v2183 = vld [vmem:[#allocation4 + $0xb0] sm:$0xff]
    %v2184 = vld [vmem:[#allocation4 + $0xb8] sm:$0xff]
    %v2185 = vld [vmem:[#allocation4 + $0xc0] sm:$0xff]
    %v2186 = vld [vmem:[#allocation4 + $0xc8] sm:$0xff]
    %v2187 = vld [vmem:[#allocation4 + $0xd0] sm:$0xff]
    %v2188 = vld [vmem:[#allocation4 + $0xd8] sm:$0xff]
    %v2189 = vld [vmem:[#allocation4 + $0xe0] sm:$0xff]
    %v2190 = vld [vmem:[#allocation4 + $0xe8] sm:$0xff]
    %v2191 = vld [vmem:[#allocation4 + $0xf0] sm:$0xff]
    %v2192 = vld [vmem:[#allocation4 + $0xf8] sm:$0xff]
    %v2193 = vld [vmem:[#allocation4 + $0x100] sm:$0xff]
    %v2194 = vld [vmem:[#allocation4 + $0x108] sm:$0xff]
    %v2195 = vld [vmem:[#allocation4 + $0x110] sm:$0xff]
    %v2196 = vld [vmem:[#allocation4 + $0x118] sm:$0xff]
    %v2197 = vld [vmem:[#allocation4 + $0x120] sm:$0xff]
    %v2198 = vld [vmem:[#allocation4 + $0x128] sm:$0xff]
    %v2199 = vld [vmem:[#allocation4 + $0x130] sm:$0xff]
    %v2200 = vld [vmem:[#allocation4 + $0x138] sm:$0xff]
    %v2201 = vld [vmem:[#allocation4 + $0x140] sm:$0xff]
    %v2202 = vld [vmem:[#allocation4 + $0x148] sm:$0xff]
    %v2203 = vld [vmem:[#allocation4 + $0x150] sm:$0xff]
    %v2204 = vld [vmem:[#allocation4 + $0x158] sm:$0xff]
    %v2205 = vld [vmem:[#allocation4 + $0x160] sm:$0xff]
    %v2206 = vld [vmem:[#allocation4 + $0x168] sm:$0xff]
    %v2207 = vld [vmem:[#allocation4 + $0x170] sm:$0xff]
    %v2208 = vld [vmem:[#allocation4 + $0x178] sm:$0xff]
    %v2209 = vld [vmem:[#allocation4 + $0x180] sm:$0xff]
    %v2210 = vld [vmem:[#allocation4 + $0x188] sm:$0xff]
    %v2211 = vld [vmem:[#allocation4 + $0x190] sm:$0xff]
    %v2212 = vld [vmem:[#allocation4 + $0x198] sm:$0xff]
    %v2213 = vld [vmem:[#allocation4 + $0x1a0] sm:$0xff]
    %v2214 = vld [vmem:[#allocation4 + $0x1a8] sm:$0xff]
    %v2215 = vld [vmem:[#allocation4 + $0x1b0] sm:$0xff]
    %v2216 = vld [vmem:[#allocation4 + $0x1b8] sm:$0xff]
    %v2217 = vld [vmem:[#allocation4 + $0x1c0] sm:$0xff]
    %v2218 = vld [vmem:[#allocation4 + $0x1c8] sm:$0xff]
    %v2219 = vld [vmem:[#allocation4 + $0x1d0] sm:$0xff]
    %v2220 = vld [vmem:[#allocation4 + $0x1d8] sm:$0xff]
    %v2221 = vld [vmem:[#allocation4 + $0x1e0] sm:$0xff]
    %v2222 = vld [vmem:[#allocation4 + $0x1e8] sm:$0xff]
    %v2223 = vld [vmem:[#allocation4 + $0x1f0] sm:$0xff]
    %v2224 = vld [vmem:[#allocation4 + $0x1f8] sm:$0xff]
    %v2225 = vld [vmem:[#allocation4 + $0x200] sm:$0xff]
    %v2226 = vld [vmem:[#allocation4 + $0x208] sm:$0xff]
    %v2227 = vld [vmem:[#allocation4 + $0x210] sm:$0xff]
    %v2228 = vld [vmem:[#allocation4 + $0x218] sm:$0xff]
    %v2229 = vld [vmem:[#allocation4 + $0x220] sm:$0xff]
    %v2230 = vld [vmem:[#allocation4 + $0x228] sm:$0xff]
    %v2231 = vld [vmem:[#allocation4 + $0x230] sm:$0xff]
    %v2232 = vld [vmem:[#allocation4 + $0x238] sm:$0xff]
    %v2233 = vld [vmem:[#allocation4 + $0x240] sm:$0xff]
    %v2234 = vld [vmem:[#allocation4 + $0x248] sm:$0xff]
    %v2235 = vld [vmem:[#allocation4 + $0x250] sm:$0xff]
    %v2236 = vld [vmem:[%s3] sm:$0xff]
    %v2237 = vld [vmem:[%s3 + $0x8] sm:$0xff]
    %v2238 = vld [vmem:[%s3 + $0x10] sm:$0xff]
    %v2239 = vld [vmem:[%s3 + $0x18] sm:$0xff]
    %v2240 = vld [vmem:[%s3 + $0x20] sm:$0xff]
    %v2241 = vld [vmem:[%s3 + $0x28] sm:$0xff]
    %v2242 = vld [vmem:[%s3 + $0x30] sm:$0xff]
    %v2243 = vld [vmem:[%s3 + $0x38] sm:$0xff]
    %v2244 = vld [vmem:[%s3 + $0x40] sm:$0xff]
    %v2245 = vld [vmem:[%s3 + $0x48] sm:$0xff]
    %v2246 = vld [vmem:[%s3 + $0x50] sm:$0xff]
    %v2247 = vld [vmem:[%s3 + $0x58] sm:$0xff]
    %v2248 = vld [vmem:[%s3 + $0x60] sm:$0xff]
    %v2249 = vld [vmem:[%s3 + $0x68] sm:$0xff]
    %v2250 = vld [vmem:[%s3 + $0x70] sm:$0xff]
    %v2251 = vld [vmem:[%s3 + $0x78] sm:$0xff]
    %v2252 = vld [vmem:[%s3 + $0x80] sm:$0xff]
    %v2253 = vld [vmem:[%s3 + $0x88] sm:$0xff]
    %v2254 = vld [vmem:[%s3 + $0x90] sm:$0xff]
    %v2255 = vld [vmem:[%s3 + $0x98] sm:$0xff]
    %v2256 = vld [vmem:[%s3 + $0xa0] sm:$0xff]
    %v2257 = vld [vmem:[%s3 + $0xa8] sm:$0xff]
    %v2258 = vld [vmem:[%s3 + $0xb0] sm:$0xff]
    %v2259 = vld [vmem:[%s3 + $0xb8] sm:$0xff]
    %v2260 = vld [vmem:[%s3 + $0xc0] sm:$0xff]
    %v2261 = vld [vmem:[%s3 + $0xc8] sm:$0xff]
    %v2262 = vld [vmem:[%s3 + $0xd0] sm:$0xff]
    %v2263 = vld [vmem:[%s3 + $0xd8] sm:$0xff]
    %v2264 = vld [vmem:[%s3 + $0xe0] sm:$0xff]
    %v2265 = vld [vmem:[%s3 + $0xe8] sm:$0xff]
    %v2266 = vld [vmem:[%s3 + $0xf0] sm:$0xff]
    %v2267 = vld [vmem:[%s3 + $0xf8] sm:$0xff]
    %v2268 = vld [vmem:[%s3 + $0x100] sm:$0xff]
    %v2269 = vld [vmem:[%s3 + $0x108] sm:$0xff]
    %v2270 = vld [vmem:[%s3 + $0x110] sm:$0xff]
    %v2271 = vld [vmem:[%s3 + $0x118] sm:$0xff]
    %v2272 = vld [vmem:[%s4] sm:$0x1]
    %v2274 = vperm.slane %v2272, 0
    %v2277 = vsel %vm579, %v2163, 0
    %v2280 = vsel %vm579, %v2166, 0
    %v2283 = vsel %vm579, %v2169, 0
    %v2286 = vsel %vm579, %v2172, 0
    %v2289 = vsel %vm579, %v2175, 0
    %v2292 = vsel %vm579, %v2178, 0
    %v2295 = vsel %vm579, %v2181, 0
    %v2298 = vsel %vm579, %v2184, 0
    %v2301 = vsel %vm579, %v2187, 0
    %v2304 = vsel %vm579, %v2190, 0
    %v2307 = vsel %vm579, %v2193, 0
    %v2310 = vsel %vm579, %v2196, 0
    %v2313 = vsel %vm579, %v2199, 0
    %v2316 = vsel %vm579, %v2202, 0
    %v2319 = vsel %vm579, %v2205, 0
    %v2322 = vsel %vm579, %v2208, 0
    %v2325 = vsel %vm579, %v2211, 0
    %v2328 = vsel %vm579, %v2214, 0
    %v2331 = vsel %vm579, %v2217, 0
    %v2334 = vsel %vm579, %v2220, 0
    %v2337 = vsel %vm579, %v2223, 0
    %v2340 = vsel %vm579, %v2226, 0
    %v2343 = vsel %vm579, %v2229, 0
    %v2346 = vsel %vm579, %v2232, 0
    %v2349 = vsel %vm579, %v2235, 0
    %2351 = vmatpush.msra.mxu0 %v2251
    %2352 = vmatpush.msra.mxu0 %v2250
    %2353 = vmatpush.msra.mxu0 %v2249
    %2354 = vmatpush.msra.mxu0 %v2248
    %2355 = vmatpush.msra.mxu0 %v2247
    %2356 = vmatpush.msra.mxu0 %v2246
    %2357 = vmatpush.msra.mxu0 %v2245
    %2358 = vmatpush.msra.mxu0 %v2244
    %2359 = vmatpush.msra.mxu0 %v2243
    %2360 = vmatpush.msra.mxu0 %v2242
    %2361 = vmatpush.msra.mxu0 %v2241
    %2362 = vmatpush.msra.mxu0 %v2240
    %2363 = vmatpush.msra.mxu0 %v2239
    %2364 = vmatpush.msra.mxu0 %v2238
    %2365 = vmatpush.msra.mxu0 %v2237
    %2366 = vmatpush.msra.mxu0 %v2236
    %2367 = vmatmul.f32.gmra.mxu0 %v2161
    %v2368 = vpop.f32.mrf.mxu0
    %v2369 = vadd.f32 %v2274, %v2368
    %2370 = vmatmul.f32.gmra.mxu0 %v2164
    %v2371 = vpop.f32.mrf.mxu0
    %v2372 = vadd.f32 %v2274, %v2371
    %2373 = vmatmul.f32.gmra.mxu0 %v2167
    %v2374 = vpop.f32.mrf.mxu0
    %v2375 = vadd.f32 %v2274, %v2374
    %2376 = vmatmul.f32.gmra.mxu0 %v2170
    %v2377 = vpop.f32.mrf.mxu0
    %v2378 = vadd.f32 %v2274, %v2377
    %2379 = vmatmul.f32.gmra.mxu0 %v2173
    %v2380 = vpop.f32.mrf.mxu0
    %v2381 = vadd.f32 %v2274, %v2380
    %2382 = vmatmul.f32.gmra.mxu0 %v2176
    %v2383 = vpop.f32.mrf.mxu0
    %v2384 = vadd.f32 %v2274, %v2383
    %2385 = vmatmul.f32.gmra.mxu0 %v2179
    %v2386 = vpop.f32.mrf.mxu0
    %v2387 = vadd.f32 %v2274, %v2386
    %2388 = vmatmul.f32.gmra.mxu0 %v2182
    %v2389 = vpop.f32.mrf.mxu0
    %v2390 = vadd.f32 %v2274, %v2389
    %2391 = vmatmul.f32.gmra.mxu0 %v2185
    %v2392 = vpop.f32.mrf.mxu0
    %v2393 = vadd.f32 %v2274, %v2392
    %2394 = vmatmul.f32.gmra.mxu0 %v2188
    %v2395 = vpop.f32.mrf.mxu0
    %v2396 = vadd.f32 %v2274, %v2395
    %2397 = vmatmul.f32.gmra.mxu0 %v2191
    %v2398 = vpop.f32.mrf.mxu0
    %v2399 = vadd.f32 %v2274, %v2398
    %2400 = vmatmul.f32.gmra.mxu0 %v2194
    %v2401 = vpop.f32.mrf.mxu0
    %v2402 = vadd.f32 %v2274, %v2401
    %2403 = vmatmul.f32.gmra.mxu0 %v2197
    %v2404 = vpop.f32.mrf.mxu0
    %v2405 = vadd.f32 %v2274, %v2404
    %2406 = vmatmul.f32.gmra.mxu0 %v2200
    %v2407 = vpop.f32.mrf.mxu0
    %v2408 = vadd.f32 %v2274, %v2407
    %2409 = vmatmul.f32.gmra.mxu0 %v2203
    %v2410 = vpop.f32.mrf.mxu0
    %v2411 = vadd.f32 %v2274, %v2410
    %2412 = vmatmul.f32.gmra.mxu0 %v2206
    %v2413 = vpop.f32.mrf.mxu0
    %v2414 = vadd.f32 %v2274, %v2413
    %2415 = vmatmul.f32.gmra.mxu0 %v2209
    %v2416 = vpop.f32.mrf.mxu0
    %v2417 = vadd.f32 %v2274, %v2416
    %2418 = vmatmul.f32.gmra.mxu0 %v2212
    %v2419 = vpop.f32.mrf.mxu0
    %v2420 = vadd.f32 %v2274, %v2419
    %2421 = vmatmul.f32.gmra.mxu0 %v2215
    %v2422 = vpop.f32.mrf.mxu0
    %v2423 = vadd.f32 %v2274, %v2422
    %2424 = vmatmul.f32.gmra.mxu0 %v2218
    %v2425 = vpop.f32.mrf.mxu0
    %v2426 = vadd.f32 %v2274, %v2425
    %2427 = vmatmul.f32.gmra.mxu0 %v2221
    %v2428 = vpop.f32.mrf.mxu0
    %v2429 = vadd.f32 %v2274, %v2428
    %2430 = vmatmul.f32.gmra.mxu0 %v2224
    %v2431 = vpop.f32.mrf.mxu0
    %v2432 = vadd.f32 %v2274, %v2431
    %2433 = vmatmul.f32.gmra.mxu0 %v2227
    %v2434 = vpop.f32.mrf.mxu0
    %v2435 = vadd.f32 %v2274, %v2434
    %2436 = vmatmul.f32.gmra.mxu0 %v2230
    %v2437 = vpop.f32.mrf.mxu0
    %v2438 = vadd.f32 %v2274, %v2437
    %2439 = vmatmul.f32.gmra.mxu0 %v2233
    %v2440 = vpop.f32.mrf.mxu0
    %v2441 = vadd.f32 %v2274, %v2440
    %2442 = vdwg.mxu0
    %2443 = vmatpush.msra.mxu0 %v2267
    %2444 = vmatpush.msra.mxu0 %v2266
    %2445 = vmatpush.msra.mxu0 %v2265
    %2446 = vmatpush.msra.mxu0 %v2264
    %2447 = vmatpush.msra.mxu0 %v2263
    %2448 = vmatpush.msra.mxu0 %v2262
    %2449 = vmatpush.msra.mxu0 %v2261
    %2450 = vmatpush.msra.mxu0 %v2260
    %2451 = vmatpush.msra.mxu0 %v2259
    %2452 = vmatpush.msra.mxu0 %v2258
    %2453 = vmatpush.msra.mxu0 %v2257
    %2454 = vmatpush.msra.mxu0 %v2256
    %2455 = vmatpush.msra.mxu0 %v2255
    %2456 = vmatpush.msra.mxu0 %v2254
    %2457 = vmatpush.msra.mxu0 %v2253
    %2458 = vmatpush.msra.mxu0 %v2252
    %2459 = vmatmul.f32.gmra.mxu0 %v2162
    %v2460 = vpop.f32.mrf.mxu0
    %v2461 = vadd.f32 %v2369, %v2460
    %2462 = vmatmul.f32.gmra.mxu0 %v2165
    %v2463 = vpop.f32.mrf.mxu0
    %v2464 = vadd.f32 %v2372, %v2463
    %2465 = vmatmul.f32.gmra.mxu0 %v2168
    %v2466 = vpop.f32.mrf.mxu0
    %v2467 = vadd.f32 %v2375, %v2466
    %2468 = vmatmul.f32.gmra.mxu0 %v2171
    %v2469 = vpop.f32.mrf.mxu0
    %v2470 = vadd.f32 %v2378, %v2469
    %2471 = vmatmul.f32.gmra.mxu0 %v2174
    %v2472 = vpop.f32.mrf.mxu0
    %v2473 = vadd.f32 %v2381, %v2472
    %2474 = vmatmul.f32.gmra.mxu0 %v2177
    %v2475 = vpop.f32.mrf.mxu0
    %v2476 = vadd.f32 %v2384, %v2475
    %2477 = vmatmul.f32.gmra.mxu0 %v2180
    %v2478 = vpop.f32.mrf.mxu0
    %v2479 = vadd.f32 %v2387, %v2478
    %2480 = vmatmul.f32.gmra.mxu0 %v2183
    %v2481 = vpop.f32.mrf.mxu0
    %v2482 = vadd.f32 %v2390, %v2481
    %2483 = vmatmul.f32.gmra.mxu0 %v2186
    %v2484 = vpop.f32.mrf.mxu0
    %v2485 = vadd.f32 %v2393, %v2484
    %2486 = vmatmul.f32.gmra.mxu0 %v2189
    %v2487 = vpop.f32.mrf.mxu0
    %v2488 = vadd.f32 %v2396, %v2487
    %2489 = vmatmul.f32.gmra.mxu0 %v2192
    %v2490 = vpop.f32.mrf.mxu0
    %v2491 = vadd.f32 %v2399, %v2490
    %2492 = vmatmul.f32.gmra.mxu0 %v2195
    %v2493 = vpop.f32.mrf.mxu0
    %v2494 = vadd.f32 %v2402, %v2493
    %2495 = vmatmul.f32.gmra.mxu0 %v2198
    %v2496 = vpop.f32.mrf.mxu0
    %v2497 = vadd.f32 %v2405, %v2496
    %2498 = vmatmul.f32.gmra.mxu0 %v2201
    %v2499 = vpop.f32.mrf.mxu0
    %v2500 = vadd.f32 %v2408, %v2499
    %2501 = vmatmul.f32.gmra.mxu0 %v2204
    %v2502 = vpop.f32.mrf.mxu0
    %v2503 = vadd.f32 %v2411, %v2502
    %2504 = vmatmul.f32.gmra.mxu0 %v2207
    %v2505 = vpop.f32.mrf.mxu0
    %v2506 = vadd.f32 %v2414, %v2505
    %2507 = vmatmul.f32.gmra.mxu0 %v2210
    %v2508 = vpop.f32.mrf.mxu0
    %v2509 = vadd.f32 %v2417, %v2508
    %2510 = vmatmul.f32.gmra.mxu0 %v2213
    %v2511 = vpop.f32.mrf.mxu0
    %v2512 = vadd.f32 %v2420, %v2511
    %2513 = vmatmul.f32.gmra.mxu0 %v2216
    %v2514 = vpop.f32.mrf.mxu0
    %v2515 = vadd.f32 %v2423, %v2514
    %2516 = vmatmul.f32.gmra.mxu0 %v2219
    %v2517 = vpop.f32.mrf.mxu0
    %v2518 = vadd.f32 %v2426, %v2517
    %2519 = vmatmul.f32.gmra.mxu0 %v2222
    %v2520 = vpop.f32.mrf.mxu0
    %v2521 = vadd.f32 %v2429, %v2520
    %2522 = vmatmul.f32.gmra.mxu0 %v2225
    %v2523 = vpop.f32.mrf.mxu0
    %v2524 = vadd.f32 %v2432, %v2523
    %2525 = vmatmul.f32.gmra.mxu0 %v2228
    %v2526 = vpop.f32.mrf.mxu0
    %v2527 = vadd.f32 %v2435, %v2526
    %2528 = vmatmul.f32.gmra.mxu0 %v2231
    %v2529 = vpop.f32.mrf.mxu0
    %v2530 = vadd.f32 %v2438, %v2529
    %2531 = vmatmul.f32.gmra.mxu0 %v2234
    %v2532 = vpop.f32.mrf.mxu0
    %v2533 = vadd.f32 %v2441, %v2532
    %2534 = vdwg.mxu0
    %2535 = vmatpush.msra.mxu0 0.0
    %2536 = vmatpush.msra.mxu0 0.0
    %2537 = vmatpush.msra.mxu0 0.0
    %2538 = vmatpush.msra.mxu0 0.0
    %2539 = vmatpush.msra.mxu0 0.0
    %2540 = vmatpush.msra.mxu0 0.0
    %2541 = vmatpush.msra.mxu0 0.0
    %2542 = vmatpush.msra.mxu0 0.0
    %2543 = vmatpush.msra.mxu0 0.0
    %2544 = vmatpush.msra.mxu0 0.0
    %2545 = vmatpush.msra.mxu0 0.0
    %2546 = vmatpush.msra.mxu0 0.0
    %2547 = vmatpush.msra.mxu0 %v2271
    %2548 = vmatpush.msra.mxu0 %v2270
    %2549 = vmatpush.msra.mxu0 %v2269
    %2550 = vmatpush.msra.mxu0 %v2268
    %2551 = vmatmul.f32.gmra.mxu0 %v2277
    %v2552 = vpop.f32.mrf.mxu0
    %v2553 = vadd.f32 %v2461, %v2552
    %2554 = vmatmul.f32.gmra.mxu0 %v2280
    %v2555 = vpop.f32.mrf.mxu0
    %v2556 = vadd.f32 %v2464, %v2555
    %2557 = vmatmul.f32.gmra.mxu0 %v2283
    %v2558 = vpop.f32.mrf.mxu0
    %v2559 = vadd.f32 %v2467, %v2558
    %2560 = vmatmul.f32.gmra.mxu0 %v2286
    %v2561 = vpop.f32.mrf.mxu0
    %v2562 = vadd.f32 %v2470, %v2561
    %2563 = vmatmul.f32.gmra.mxu0 %v2289
    %v2564 = vpop.f32.mrf.mxu0
    %v2565 = vadd.f32 %v2473, %v2564
    %2566 = vmatmul.f32.gmra.mxu0 %v2292
    %v2567 = vpop.f32.mrf.mxu0
    %v2568 = vadd.f32 %v2476, %v2567
    %2569 = vmatmul.f32.gmra.mxu0 %v2295
    %v2570 = vpop.f32.mrf.mxu0
    %v2571 = vadd.f32 %v2479, %v2570
    %2572 = vmatmul.f32.gmra.mxu0 %v2298
    %v2573 = vpop.f32.mrf.mxu0
    %v2574 = vadd.f32 %v2482, %v2573
    %2575 = vmatmul.f32.gmra.mxu0 %v2301
    %v2576 = vpop.f32.mrf.mxu0
    %v2577 = vadd.f32 %v2485, %v2576
    %2578 = vmatmul.f32.gmra.mxu0 %v2304
    %v2579 = vpop.f32.mrf.mxu0
    %v2580 = vadd.f32 %v2488, %v2579
    %2581 = vmatmul.f32.gmra.mxu0 %v2307
    %v2582 = vpop.f32.mrf.mxu0
    %v2583 = vadd.f32 %v2491, %v2582
    %2584 = vmatmul.f32.gmra.mxu0 %v2310
    %v2585 = vpop.f32.mrf.mxu0
    %v2586 = vadd.f32 %v2494, %v2585
    %2587 = vmatmul.f32.gmra.mxu0 %v2313
    %v2588 = vpop.f32.mrf.mxu0
    %v2589 = vadd.f32 %v2497, %v2588
    %2590 = vmatmul.f32.gmra.mxu0 %v2316
    %v2591 = vpop.f32.mrf.mxu0
    %v2592 = vadd.f32 %v2500, %v2591
    %2593 = vmatmul.f32.gmra.mxu0 %v2319
    %v2594 = vpop.f32.mrf.mxu0
    %v2595 = vadd.f32 %v2503, %v2594
    %2596 = vmatmul.f32.gmra.mxu0 %v2322
    %v2597 = vpop.f32.mrf.mxu0
    %v2598 = vadd.f32 %v2506, %v2597
    %2599 = vmatmul.f32.gmra.mxu0 %v2325
    %v2600 = vpop.f32.mrf.mxu0
    %v2601 = vadd.f32 %v2509, %v2600
    %2602 = vmatmul.f32.gmra.mxu0 %v2328
    %v2603 = vpop.f32.mrf.mxu0
    %v2604 = vadd.f32 %v2512, %v2603
    %2605 = vmatmul.f32.gmra.mxu0 %v2331
    %v2606 = vpop.f32.mrf.mxu0
    %v2607 = vadd.f32 %v2515, %v2606
    %2608 = vmatmul.f32.gmra.mxu0 %v2334
    %v2609 = vpop.f32.mrf.mxu0
    %v2610 = vadd.f32 %v2518, %v2609
    %2611 = vmatmul.f32.gmra.mxu0 %v2337
    %v2612 = vpop.f32.mrf.mxu0
    %v2613 = vadd.f32 %v2521, %v2612
    %2614 = vmatmul.f32.gmra.mxu0 %v2340
    %v2615 = vpop.f32.mrf.mxu0
    %v2616 = vadd.f32 %v2524, %v2615
    %2617 = vmatmul.f32.gmra.mxu0 %v2343
    %v2618 = vpop.f32.mrf.mxu0
    %v2619 = vadd.f32 %v2527, %v2618
    %2620 = vmatmul.f32.gmra.mxu0 %v2346
    %v2621 = vpop.f32.mrf.mxu0
    %v2622 = vadd.f32 %v2530, %v2621
    %2623 = vmatmul.f32.gmra.mxu0 %v2349
    %v2624 = vpop.f32.mrf.mxu0
    %v2625 = vadd.f32 %v2533, %v2624
    %2626 = vdwg.mxu0
    %v2627 = vmax.f32 %v2553, 0.0
    %v2628 = vmax.f32 %v2556, 0.0
    %v2629 = vmax.f32 %v2559, 0.0
    %v2630 = vmax.f32 %v2562, 0.0
    %v2631 = vmax.f32 %v2565, 0.0
    %v2632 = vmax.f32 %v2568, 0.0
    %v2633 = vmax.f32 %v2571, 0.0
    %v2634 = vmax.f32 %v2574, 0.0
    %v2635 = vmax.f32 %v2577, 0.0
    %v2636 = vmax.f32 %v2580, 0.0
    %v2637 = vmax.f32 %v2583, 0.0
    %v2638 = vmax.f32 %v2586, 0.0
    %v2639 = vmax.f32 %v2589, 0.0
    %v2640 = vmax.f32 %v2592, 0.0
    %v2641 = vmax.f32 %v2595, 0.0
    %v2642 = vmax.f32 %v2598, 0.0
    %v2643 = vmax.f32 %v2601, 0.0
    %v2644 = vmax.f32 %v2604, 0.0
    %v2645 = vmax.f32 %v2607, 0.0
    %v2646 = vmax.f32 %v2610, 0.0
    %v2647 = vmax.f32 %v2613, 0.0
    %v2648 = vmax.f32 %v2616, 0.0
    %v2649 = vmax.f32 %v2619, 0.0
    %v2650 = vmax.f32 %v2622, 0.0
    %v2651 = vmax.f32 %v2625, 0.0
    %vm2652 = vcmask 130048
    %2653 = vst.msk [vmem:[#allocation5] sm:$0xff] %vm2652, %v2627
    %2654 = vst.msk [vmem:[#allocation5 + $0x8] sm:$0xff] %vm2652, %v2628
    %2655 = vst.msk [vmem:[#allocation5 + $0x10] sm:$0xff] %vm2652, %v2629
    %2656 = vst.msk [vmem:[#allocation5 + $0x18] sm:$0xff] %vm2652, %v2630
    %2657 = vst.msk [vmem:[#allocation5 + $0x20] sm:$0xff] %vm2652, %v2631
    %2658 = vst.msk [vmem:[#allocation5 + $0x28] sm:$0xff] %vm2652, %v2632
    %2659 = vst.msk [vmem:[#allocation5 + $0x30] sm:$0xff] %vm2652, %v2633
    %2660 = vst.msk [vmem:[#allocation5 + $0x38] sm:$0xff] %vm2652, %v2634
    %2661 = vst.msk [vmem:[#allocation5 + $0x40] sm:$0xff] %vm2652, %v2635
    %2662 = vst.msk [vmem:[#allocation5 + $0x48] sm:$0xff] %vm2652, %v2636
    %2663 = vst.msk [vmem:[#allocation5 + $0x50] sm:$0xff] %vm2652, %v2637
    %2664 = vst.msk [vmem:[#allocation5 + $0x58] sm:$0xff] %vm2652, %v2638
    %2665 = vst.msk [vmem:[#allocation5 + $0x60] sm:$0xff] %vm2652, %v2639
    %2666 = vst.msk [vmem:[#allocation5 + $0x68] sm:$0xff] %vm2652, %v2640
    %2667 = vst.msk [vmem:[#allocation5 + $0x70] sm:$0xff] %vm2652, %v2641
    %2668 = vst.msk [vmem:[#allocation5 + $0x78] sm:$0xff] %vm2652, %v2642
    %2669 = vst.msk [vmem:[#allocation5 + $0x80] sm:$0xff] %vm2652, %v2643
    %2670 = vst.msk [vmem:[#allocation5 + $0x88] sm:$0xff] %vm2652, %v2644
    %2671 = vst.msk [vmem:[#allocation5 + $0x90] sm:$0xff] %vm2652, %v2645
    %2672 = vst.msk [vmem:[#allocation5 + $0x98] sm:$0xff] %vm2652, %v2646
    %2673 = vst.msk [vmem:[#allocation5 + $0xa0] sm:$0xff] %vm2652, %v2647
    %2674 = vst.msk [vmem:[#allocation5 + $0xa8] sm:$0xff] %vm2652, %v2648
    %2675 = vst.msk [vmem:[#allocation5 + $0xb0] sm:$0xff] %vm2652, %v2649
    %2676 = vst.msk [vmem:[#allocation5 + $0xb8] sm:$0xff] %vm2652, %v2650
    %2677 = vst.msk [vmem:[#allocation5 + $0xc0] sm:$0xff] %vm2652, %v2651
    %v2678 = vld [vmem:[#allocation5] sm:$0xff]
    %v2679 = vld [vmem:[#allocation5 + $0x8] sm:$0xff]
    %v2680 = vld [vmem:[#allocation5 + $0x10] sm:$0xff]
    %v2681 = vld [vmem:[#allocation5 + $0x18] sm:$0xff]
    %v2682 = vld [vmem:[#allocation5 + $0x20] sm:$0xff]
    %v2683 = vld [vmem:[#allocation5 + $0x28] sm:$0xff]
    %v2684 = vld [vmem:[#allocation5 + $0x30] sm:$0xff]
    %v2685 = vld [vmem:[#allocation5 + $0x38] sm:$0xff]
    %v2686 = vld [vmem:[#allocation5 + $0x40] sm:$0xff]
    %v2687 = vld [vmem:[#allocation5 + $0x48] sm:$0xff]
    %v2688 = vld [vmem:[#allocation5 + $0x50] sm:$0xff]
    %v2689 = vld [vmem:[#allocation5 + $0x58] sm:$0xff]
    %v2690 = vld [vmem:[#allocation5 + $0x60] sm:$0xff]
    %v2691 = vld [vmem:[#allocation5 + $0x68] sm:$0xff]
    %v2692 = vld [vmem:[#allocation5 + $0x70] sm:$0xff]
    %v2693 = vld [vmem:[#allocation5 + $0x78] sm:$0xff]
    %v2694 = vld [vmem:[#allocation5 + $0x80] sm:$0xff]
    %v2695 = vld [vmem:[#allocation5 + $0x88] sm:$0xff]
    %v2696 = vld [vmem:[#allocation5 + $0x90] sm:$0xff]
    %v2697 = vld [vmem:[#allocation5 + $0x98] sm:$0xff]
    %v2698 = vld [vmem:[#allocation5 + $0xa0] sm:$0xff]
    %v2699 = vld [vmem:[#allocation5 + $0xa8] sm:$0xff]
    %v2700 = vld [vmem:[#allocation5 + $0xb0] sm:$0xff]
    %v2701 = vld [vmem:[#allocation5 + $0xb8] sm:$0xff]
    %v2702 = vld [vmem:[#allocation5 + $0xc0] sm:$0xff]
    %v2703 = vld [vmem:[#allocation5 + $0x1] sm:$0xff]
    %v2704 = vld [vmem:[#allocation5 + $0x9] sm:$0xff]
    %v2705 = vld [vmem:[#allocation5 + $0x11] sm:$0xff]
    %v2706 = vld [vmem:[#allocation5 + $0x19] sm:$0xff]
    %v2707 = vld [vmem:[#allocation5 + $0x21] sm:$0xff]
    %v2708 = vld [vmem:[#allocation5 + $0x29] sm:$0xff]
    %v2709 = vld [vmem:[#allocation5 + $0x31] sm:$0xff]
    %v2710 = vld [vmem:[#allocation5 + $0x39] sm:$0xff]
    %v2711 = vld [vmem:[#allocation5 + $0x41] sm:$0xff]
    %v2712 = vld [vmem:[#allocation5 + $0x49] sm:$0xff]
    %v2713 = vld [vmem:[#allocation5 + $0x51] sm:$0xff]
    %v2714 = vld [vmem:[#allocation5 + $0x59] sm:$0xff]
    %v2715 = vld [vmem:[#allocation5 + $0x61] sm:$0xff]
    %v2716 = vld [vmem:[#allocation5 + $0x69] sm:$0xff]
    %v2717 = vld [vmem:[#allocation5 + $0x71] sm:$0xff]
    %v2718 = vld [vmem:[#allocation5 + $0x79] sm:$0xff]
    %v2719 = vld [vmem:[#allocation5 + $0x81] sm:$0xff]
    %v2720 = vld [vmem:[#allocation5 + $0x89] sm:$0xff]
    %v2721 = vld [vmem:[#allocation5 + $0x91] sm:$0xff]
    %v2722 = vld [vmem:[#allocation5 + $0x99] sm:$0xff]
    %v2723 = vld [vmem:[#allocation5 + $0xa1] sm:$0xff]
    %v2724 = vld [vmem:[#allocation5 + $0xa9] sm:$0xff]
    %v2725 = vld [vmem:[#allocation5 + $0xb1] sm:$0xff]
    %v2726 = vld [vmem:[#allocation5 + $0xb9] sm:$0xff]
    %v2727 = vld [vmem:[#allocation5 + $0xc1] sm:$0xff]
    %v2728 = vmax.f32 %v2678, %v2703
    %v2729 = vmax.f32 %v2679, %v2704
    %v2730 = vmax.f32 %v2680, %v2705
    %v2731 = vmax.f32 %v2681, %v2706
    %v2732 = vmax.f32 %v2682, %v2707
    %v2733 = vmax.f32 %v2683, %v2708
    %v2734 = vmax.f32 %v2684, %v2709
    %v2735 = vmax.f32 %v2685, %v2710
    %v2736 = vmax.f32 %v2686, %v2711
    %v2737 = vmax.f32 %v2687, %v2712
    %v2738 = vmax.f32 %v2688, %v2713
    %v2739 = vmax.f32 %v2689, %v2714
    %v2740 = vmax.f32 %v2690, %v2715
    %v2741 = vmax.f32 %v2691, %v2716
    %v2742 = vmax.f32 %v2692, %v2717
    %v2743 = vmax.f32 %v2693, %v2718
    %v2744 = vmax.f32 %v2694, %v2719
    %v2745 = vmax.f32 %v2695, %v2720
    %v2746 = vmax.f32 %v2696, %v2721
    %v2747 = vmax.f32 %v2697, %v2722
    %v2748 = vmax.f32 %v2698, %v2723
    %v2749 = vmax.f32 %v2699, %v2724
    %v2750 = vmax.f32 %v2700, %v2725
    %v2751 = vmax.f32 %v2701, %v2726
    %v2752 = vmax.f32 %v2702, %v2727
    %v2753 = vld [vmem:[#allocation5 + $0xa] sm:$0xff]
    %v2754 = vld [vmem:[#allocation5 + $0x12] sm:$0xff]
    %v2755 = vld [vmem:[#allocation5 + $0x1a] sm:$0xff]
    %v2756 = vld [vmem:[#allocation5 + $0x22] sm:$0xff]
    %v2757 = vld [vmem:[#allocation5 + $0x2a] sm:$0xff]
    %v2758 = vld [vmem:[#allocation5 + $0x32] sm:$0xff]
    %v2759 = vld [vmem:[#allocation5 + $0x3a] sm:$0xff]
    %v2760 = vld [vmem:[#allocation5 + $0x42] sm:$0xff]
    %v2761 = vld [vmem:[#allocation5 + $0x4a] sm:$0xff]
    %v2762 = vld [vmem:[#allocation5 + $0x52] sm:$0xff]
    %v2763 = vld [vmem:[#allocation5 + $0x5a] sm:$0xff]
    %v2764 = vld [vmem:[#allocation5 + $0x62] sm:$0xff]
    %v2765 = vld [vmem:[#allocation5 + $0x6a] sm:$0xff]
    %v2766 = vld [vmem:[#allocation5 + $0x72] sm:$0xff]
    %v2767 = vld [vmem:[#allocation5 + $0x7a] sm:$0xff]
    %v2768 = vld [vmem:[#allocation5 + $0x82] sm:$0xff]
    %v2769 = vld [vmem:[#allocation5 + $0x8a] sm:$0xff]
    %v2770 = vld [vmem:[#allocation5 + $0x92] sm:$0xff]
    %v2771 = vld [vmem:[#allocation5 + $0x9a] sm:$0xff]
    %v2772 = vld [vmem:[#allocation5 + $0xa2] sm:$0xff]
    %v2773 = vld [vmem:[#allocation5 + $0xaa] sm:$0xff]
    %v2774 = vld [vmem:[#allocation5 + $0xb2] sm:$0xff]
    %v2775 = vld [vmem:[#allocation5 + $0xba] sm:$0xff]
    %v2776 = vld [vmem:[#allocation5 + $0xc2] sm:$0xff]
    %v2777 = vld [vmem:[#allocation5 + $0xca] sm:$0xff]
    %v2778 = vmax.f32 %v2728, %v2753
    %v2779 = vmax.f32 %v2729, %v2754
    %v2780 = vmax.f32 %v2730, %v2755
    %v2781 = vmax.f32 %v2731, %v2756
    %v2782 = vmax.f32 %v2732, %v2757
    %v2783 = vmax.f32 %v2733, %v2758
    %v2784 = vmax.f32 %v2734, %v2759
    %v2785 = vmax.f32 %v2735, %v2760
    %v2786 = vmax.f32 %v2736, %v2761
    %v2787 = vmax.f32 %v2737, %v2762
    %v2788 = vmax.f32 %v2738, %v2763
    %v2789 = vmax.f32 %v2739, %v2764
    %v2790 = vmax.f32 %v2740, %v2765
    %v2791 = vmax.f32 %v2741, %v2766
    %v2792 = vmax.f32 %v2742, %v2767
    %v2793 = vmax.f32 %v2743, %v2768
    %v2794 = vmax.f32 %v2744, %v2769
    %v2795 = vmax.f32 %v2745, %v2770
    %v2796 = vmax.f32 %v2746, %v2771
    %v2797 = vmax.f32 %v2747, %v2772
    %v2798 = vmax.f32 %v2748, %v2773
    %v2799 = vmax.f32 %v2749, %v2774
    %v2800 = vmax.f32 %v2750, %v2775
    %v2801 = vmax.f32 %v2751, %v2776
    %v2802 = vmax.f32 %v2752, %v2777
    %v2803 = vld [vmem:[#allocation5 + $0xb] sm:$0xff]
    %v2804 = vld [vmem:[#allocation5 + $0x13] sm:$0xff]
    %v2805 = vld [vmem:[#allocation5 + $0x1b] sm:$0xff]
    %v2806 = vld [vmem:[#allocation5 + $0x23] sm:$0xff]
    %v2807 = vld [vmem:[#allocation5 + $0x2b] sm:$0xff]
    %v2808 = vld [vmem:[#allocation5 + $0x33] sm:$0xff]
    %v2809 = vld [vmem:[#allocation5 + $0x3b] sm:$0xff]
    %v2810 = vld [vmem:[#allocation5 + $0x43] sm:$0xff]
    %v2811 = vld [vmem:[#allocation5 + $0x4b] sm:$0xff]
    %v2812 = vld [vmem:[#allocation5 + $0x53] sm:$0xff]
    %v2813 = vld [vmem:[#allocation5 + $0x5b] sm:$0xff]
    %v2814 = vld [vmem:[#allocation5 + $0x63] sm:$0xff]
    %v2815 = vld [vmem:[#allocation5 + $0x6b] sm:$0xff]
    %v2816 = vld [vmem:[#allocation5 + $0x73] sm:$0xff]
    %v2817 = vld [vmem:[#allocation5 + $0x7b] sm:$0xff]
    %v2818 = vld [vmem:[#allocation5 + $0x83] sm:$0xff]
    %v2819 = vld [vmem:[#allocation5 + $0x8b] sm:$0xff]
    %v2820 = vld [vmem:[#allocation5 + $0x93] sm:$0xff]
    %v2821 = vld [vmem:[#allocation5 + $0x9b] sm:$0xff]
    %v2822 = vld [vmem:[#allocation5 + $0xa3] sm:$0xff]
    %v2823 = vld [vmem:[#allocation5 + $0xab] sm:$0xff]
    %v2824 = vld [vmem:[#allocation5 + $0xb3] sm:$0xff]
    %v2825 = vld [vmem:[#allocation5 + $0xbb] sm:$0xff]
    %v2826 = vld [vmem:[#allocation5 + $0xc3] sm:$0xff]
    %v2827 = vld [vmem:[#allocation5 + $0xcb] sm:$0xff]
    %v2828 = vmax.f32 %v2778, %v2803
    %v2829 = vmax.f32 %v2779, %v2804
    %v2830 = vmax.f32 %v2780, %v2805
    %v2831 = vmax.f32 %v2781, %v2806
    %v2832 = vmax.f32 %v2782, %v2807
    %v2833 = vmax.f32 %v2783, %v2808
    %v2834 = vmax.f32 %v2784, %v2809
    %v2835 = vmax.f32 %v2785, %v2810
    %v2836 = vmax.f32 %v2786, %v2811
    %v2837 = vmax.f32 %v2787, %v2812
    %v2838 = vmax.f32 %v2788, %v2813
    %v2839 = vmax.f32 %v2789, %v2814
    %v2840 = vmax.f32 %v2790, %v2815
    %v2841 = vmax.f32 %v2791, %v2816
    %v2842 = vmax.f32 %v2792, %v2817
    %v2843 = vmax.f32 %v2793, %v2818
    %v2844 = vmax.f32 %v2794, %v2819
    %v2845 = vmax.f32 %v2795, %v2820
    %v2846 = vmax.f32 %v2796, %v2821
    %v2847 = vmax.f32 %v2797, %v2822
    %v2848 = vmax.f32 %v2798, %v2823
    %v2849 = vmax.f32 %v2799, %v2824
    %v2850 = vmax.f32 %v2800, %v2825
    %v2851 = vmax.f32 %v2801, %v2826
    %v2852 = vmax.f32 %v2802, %v2827
    %2853 = vst.msk [vmem:[#allocation5] sm:$0xff] %vm2652, %v2828
    %2854 = vst.msk [vmem:[#allocation5 + $0x8] sm:$0xff] %vm2652, %v2829
    %2855 = vst.msk [vmem:[#allocation5 + $0x10] sm:$0xff] %vm2652, %v2830
    %2856 = vst.msk [vmem:[#allocation5 + $0x18] sm:$0xff] %vm2652, %v2831
    %2857 = vst.msk [vmem:[#allocation5 + $0x20] sm:$0xff] %vm2652, %v2832
    %2858 = vst.msk [vmem:[#allocation5 + $0x28] sm:$0xff] %vm2652, %v2833
    %2859 = vst.msk [vmem:[#allocation5 + $0x30] sm:$0xff] %vm2652, %v2834
    %2860 = vst.msk [vmem:[#allocation5 + $0x38] sm:$0xff] %vm2652, %v2835
    %2861 = vst.msk [vmem:[#allocation5 + $0x40] sm:$0xff] %vm2652, %v2836
    %2862 = vst.msk [vmem:[#allocation5 + $0x48] sm:$0xff] %vm2652, %v2837
    %2863 = vst.msk [vmem:[#allocation5 + $0x50] sm:$0xff] %vm2652, %v2838
    %2864 = vst.msk [vmem:[#allocation5 + $0x58] sm:$0xff] %vm2652, %v2839
    %2865 = vst.msk [vmem:[#allocation5 + $0x60] sm:$0xff] %vm2652, %v2840
    %2866 = vst.msk [vmem:[#allocation5 + $0x68] sm:$0xff] %vm2652, %v2841
    %2867 = vst.msk [vmem:[#allocation5 + $0x70] sm:$0xff] %vm2652, %v2842
    %2868 = vst.msk [vmem:[#allocation5 + $0x78] sm:$0xff] %vm2652, %v2843
    %2869 = vst.msk [vmem:[#allocation5 + $0x80] sm:$0xff] %vm2652, %v2844
    %2870 = vst.msk [vmem:[#allocation5 + $0x88] sm:$0xff] %vm2652, %v2845
    %2871 = vst.msk [vmem:[#allocation5 + $0x90] sm:$0xff] %vm2652, %v2846
    %2872 = vst.msk [vmem:[#allocation5 + $0x98] sm:$0xff] %vm2652, %v2847
    %2873 = vst.msk [vmem:[#allocation5 + $0xa0] sm:$0xff] %vm2652, %v2848
    %2874 = vst.msk [vmem:[#allocation5 + $0xa8] sm:$0xff] %vm2652, %v2849
    %2875 = vst.msk [vmem:[#allocation5 + $0xb0] sm:$0xff] %vm2652, %v2850
    %2876 = vst.msk [vmem:[#allocation5 + $0xb8] sm:$0xff] %vm2652, %v2851
    %2877 = vst.msk [vmem:[#allocation5 + $0xc0] sm:$0xff] %vm2652, %v2852
    %2878 = vst.msk [vmem:[#allocation6] sm:$0xff] %vm2652, 0.0
    %2879 = vst.msk [vmem:[#allocation6 + $0x8] sm:$0xff] %vm2652, 0.0
    %2880 = vst.msk [vmem:[#allocation6 + $0x10] sm:$0xff] %vm2652, 0.0
    %2881 = vst.msk [vmem:[#allocation6 + $0x18] sm:$0xff] %vm2652, 0.0
    %2882 = vst.msk [vmem:[#allocation6 + $0x20] sm:$0xff] %vm2652, 0.0
    %2883 = vst.msk [vmem:[#allocation6 + $0x28] sm:$0xff] %vm2652, 0.0
    %2884 = vst.msk [vmem:[#allocation6 + $0x30] sm:$0xff] %vm2652, 0.0
    %2885 = vst.msk [vmem:[#allocation6 + $0x38] sm:$0xff] %vm2652, 0.0
    %2886 = vst.msk [vmem:[#allocation6 + $0x40] sm:$0xff] %vm2652, 0.0
    %2887 = vst.msk [vmem:[#allocation6 + $0x48] sm:$0xff] %vm2652, 0.0
    %2888 = vst.msk [vmem:[#allocation6 + $0x50] sm:$0xff] %vm2652, 0.0
    %s2889 = scalar_lea.vmem [#allocation5], 11
    %v2890 = vld [vmem:[%s2889] ss:$2 sm:$0xf]
    %vm2891 = vcmask 125952
    %2892 = vst.msk [vmem:[#allocation6 + $0xf] sm:$0xf] %vm2891, %v2890
    %s2893 = scalar_lea.vmem [#allocation5], 31
    %v2894 = vld [vmem:[%s2893] ss:$2 sm:$0xf]
    %2895 = vst.msk [vmem:[#allocation6 + $0x15] sm:$0xf] %vm2891, %v2894
    %s2896 = scalar_lea.vmem [#allocation5], 51
    %v2897 = vld [vmem:[%s2896] ss:$2 sm:$0xf]
    %2898 = vst.msk [vmem:[#allocation6 + $0x1b] sm:$0xf] %vm2891, %v2897
    %s2899 = scalar_lea.vmem [#allocation5], 71
    %v2900 = vld [vmem:[%s2899] ss:$2 sm:$0xf]
    %2901 = vst.msk [vmem:[#allocation6 + $0x21] sm:$0xf] %vm2891, %v2900
    %s2902 = scalar_lea.vmem [#allocation5], 111
    %v2903 = vld [vmem:[%s2902] ss:$2 sm:$0xf]
    %2904 = vst.msk [vmem:[#allocation6 + $0x33] sm:$0xf] %vm2891, %v2903
    %s2905 = scalar_lea.vmem [#allocation5], 131
    %v2906 = vld [vmem:[%s2905] ss:$2 sm:$0xf]
    %2907 = vst.msk [vmem:[#allocation6 + $0x39] sm:$0xf] %vm2891, %v2906
    %s2908 = scalar_lea.vmem [#allocation5], 151
    %v2909 = vld [vmem:[%s2908] ss:$2 sm:$0xf]
    %2910 = vst.msk [vmem:[#allocation6 + $0x3f] sm:$0xf] %vm2891, %v2909
    %s2911 = scalar_lea.vmem [#allocation5], 171
    %v2912 = vld [vmem:[%s2911] ss:$2 sm:$0xf]
    %2913 = vst.msk [vmem:[#allocation6 + $0x45] sm:$0xf] %vm2891, %v2912
    %v2914 = vld [vmem:[#allocation6 + $0x1] sm:$0xff]
    %v2915 = vld [vmem:[#allocation6 + $0x9] sm:$0xff]
    %v2916 = vld [vmem:[#allocation6 + $0x11] sm:$0xff]
    %v2917 = vld [vmem:[#allocation6 + $0x19] sm:$0xff]
    %v2918 = vld [vmem:[#allocation6 + $0x21] sm:$0xff]
    %v2919 = vld [vmem:[#allocation6 + $0x29] sm:$0xff]
    %v2920 = vld [vmem:[#allocation6 + $0x31] sm:$0xff]
    %v2921 = vld [vmem:[#allocation6 + $0x39] sm:$0xff]
    %v2922 = vld [vmem:[#allocation6 + $0x41] sm:$0xff]
    %2923 = vst.msk [vmem:[#allocation7] sm:$0xff] %vm2652, %v2914
    %2924 = vst.msk [vmem:[#allocation7 + $0x10] sm:$0xff] %vm2652, %v2915
    %2925 = vst.msk [vmem:[#allocation7 + $0x20] sm:$0xff] %vm2652, %v2916
    %2926 = vst.msk [vmem:[#allocation7 + $0x30] sm:$0xff] %vm2652, %v2917
    %2927 = vst.msk [vmem:[#allocation7 + $0x40] sm:$0xff] %vm2652, %v2918
    %2928 = vst.msk [vmem:[#allocation7 + $0x50] sm:$0xff] %vm2652, %v2919
    %2929 = vst.msk [vmem:[#allocation7 + $0x60] sm:$0xff] %vm2652, %v2920
    %2930 = vst.msk [vmem:[#allocation7 + $0x70] sm:$0xff] %vm2652, %v2921
    %2931 = vst.msk [vmem:[#allocation7 + $0x80] sm:$0xff] %vm2652, %v2922
    %v2932 = vld [vmem:[#allocation6 + $0x2] sm:$0xff]
    %v2933 = vld [vmem:[#allocation6 + $0xa] sm:$0xff]
    %v2934 = vld [vmem:[#allocation6 + $0x12] sm:$0xff]
    %v2935 = vld [vmem:[#allocation6 + $0x1a] sm:$0xff]
    %v2936 = vld [vmem:[#allocation6 + $0x22] sm:$0xff]
    %v2937 = vld [vmem:[#allocation6 + $0x2a] sm:$0xff]
    %v2938 = vld [vmem:[#allocation6 + $0x32] sm:$0xff]
    %v2939 = vld [vmem:[#allocation6 + $0x3a] sm:$0xff]
    %v2940 = vld [vmem:[#allocation6 + $0x42] sm:$0xff]
    %2950 = vrot.lane.b32.xlu0 %v2932, 16
    %v2951 = vpop.permute.xlu0 %2950
    %2952 = vrot.lane.b32.xlu0 %v2933, 16
    %v2953 = vpop.permute.xlu0 %2952
    %2954 = vrot.lane.b32.xlu0 %v2934, 16
    %v2955 = vpop.permute.xlu0 %2954
    %2956 = vrot.lane.b32.xlu0 %v2935, 16
    %v2957 = vpop.permute.xlu0 %2956
    %2958 = vrot.lane.b32.xlu0 %v2936, 16
    %v2959 = vpop.permute.xlu0 %2958
    %2960 = vrot.lane.b32.xlu0 %v2937, 16
    %v2961 = vpop.permute.xlu0 %2960
    %2962 = vrot.lane.b32.xlu0 %v2938, 16
    %v2963 = vpop.permute.xlu0 %2962
    %2964 = vrot.lane.b32.xlu0 %v2939, 16
    %v2965 = vpop.permute.xlu0 %2964
    %2966 = vrot.lane.b32.xlu0 %v2940, 16
    %v2967 = vpop.permute.xlu0 %2966
    %vm2977 = vcmask 261248
    %2978 = vst.msk [vmem:[#allocation7] sm:$0xff] %vm2977, %v2951
    %2979 = vst.msk [vmem:[#allocation7 + $0x10] sm:$0xff] %vm2977, %v2953
    %2980 = vst.msk [vmem:[#allocation7 + $0x20] sm:$0xff] %vm2977, %v2955
    %2981 = vst.msk [vmem:[#allocation7 + $0x30] sm:$0xff] %vm2977, %v2957
    %2982 = vst.msk [vmem:[#allocation7 + $0x40] sm:$0xff] %vm2977, %v2959
    %2983 = vst.msk [vmem:[#allocation7 + $0x50] sm:$0xff] %vm2977, %v2961
    %2984 = vst.msk [vmem:[#allocation7 + $0x60] sm:$0xff] %vm2977, %v2963
    %2985 = vst.msk [vmem:[#allocation7 + $0x70] sm:$0xff] %vm2977, %v2965
    %2986 = vst.msk [vmem:[#allocation7 + $0x80] sm:$0xff] %vm2977, %v2967
    %v2987 = vld [vmem:[#allocation6 + $0x3] sm:$0xff]
    %v2988 = vld [vmem:[#allocation6 + $0xb] sm:$0xff]
    %v2989 = vld [vmem:[#allocation6 + $0x13] sm:$0xff]
    %v2990 = vld [vmem:[#allocation6 + $0x1b] sm:$0xff]
    %v2991 = vld [vmem:[#allocation6 + $0x23] sm:$0xff]
    %v2992 = vld [vmem:[#allocation6 + $0x2b] sm:$0xff]
    %v2993 = vld [vmem:[#allocation6 + $0x33] sm:$0xff]
    %v2994 = vld [vmem:[#allocation6 + $0x3b] sm:$0xff]
    %v2995 = vld [vmem:[#allocation6 + $0x43] sm:$0xff]
    %3005 = vrot.lane.b32.xlu0 %v2987, 32
    %v3006 = vpop.permute.xlu0 %3005
    %3007 = vrot.lane.b32.xlu0 %v2988, 32
    %v3008 = vpop.permute.xlu0 %3007
    %3009 = vrot.lane.b32.xlu0 %v2989, 32
    %v3010 = vpop.permute.xlu0 %3009
    %3011 = vrot.lane.b32.xlu0 %v2990, 32
    %v3012 = vpop.permute.xlu0 %3011
    %3013 = vrot.lane.b32.xlu0 %v2991, 32
    %v3014 = vpop.permute.xlu0 %3013
    %3015 = vrot.lane.b32.xlu0 %v2992, 32
    %v3016 = vpop.permute.xlu0 %3015
    %3017 = vrot.lane.b32.xlu0 %v2993, 32
    %v3018 = vpop.permute.xlu0 %3017
    %3019 = vrot.lane.b32.xlu0 %v2994, 32
    %v3020 = vpop.permute.xlu0 %3019
    %3021 = vrot.lane.b32.xlu0 %v2995, 32
    %v3022 = vpop.permute.xlu0 %3021
    %vm3032 = vcmask 392448
    %3033 = vst.msk [vmem:[#allocation7] sm:$0xff] %vm3032, %v3006
    %3034 = vst.msk [vmem:[#allocation7 + $0x10] sm:$0xff] %vm3032, %v3008
    %3035 = vst.msk [vmem:[#allocation7 + $0x20] sm:$0xff] %vm3032, %v3010
    %3036 = vst.msk [vmem:[#allocation7 + $0x30] sm:$0xff] %vm3032, %v3012
    %3037 = vst.msk [vmem:[#allocation7 + $0x40] sm:$0xff] %vm3032, %v3014
    %3038 = vst.msk [vmem:[#allocation7 + $0x50] sm:$0xff] %vm3032, %v3016
    %3039 = vst.msk [vmem:[#allocation7 + $0x60] sm:$0xff] %vm3032, %v3018
    %3040 = vst.msk [vmem:[#allocation7 + $0x70] sm:$0xff] %vm3032, %v3020
    %3041 = vst.msk [vmem:[#allocation7 + $0x80] sm:$0xff] %vm3032, %v3022
    %v3042 = vld [vmem:[#allocation6 + $0x7] sm:$0xff]
    %v3043 = vld [vmem:[#allocation6 + $0xf] sm:$0xff]
    %v3044 = vld [vmem:[#allocation6 + $0x17] sm:$0xff]
    %v3045 = vld [vmem:[#allocation6 + $0x1f] sm:$0xff]
    %v3046 = vld [vmem:[#allocation6 + $0x27] sm:$0xff]
    %v3047 = vld [vmem:[#allocation6 + $0x2f] sm:$0xff]
    %v3048 = vld [vmem:[#allocation6 + $0x37] sm:$0xff]
    %v3049 = vld [vmem:[#allocation6 + $0x3f] sm:$0xff]
    %v3050 = vld [vmem:[#allocation6 + $0x47] sm:$0xff]
    %3060 = vrot.lane.b32.xlu0 %v3042, 48
    %v3061 = vpop.permute.xlu0 %3060
    %3062 = vrot.lane.b32.xlu0 %v3043, 48
    %v3063 = vpop.permute.xlu0 %3062
    %3064 = vrot.lane.b32.xlu0 %v3044, 48
    %v3065 = vpop.permute.xlu0 %3064
    %3066 = vrot.lane.b32.xlu0 %v3045, 48
    %v3067 = vpop.permute.xlu0 %3066
    %3068 = vrot.lane.b32.xlu0 %v3046, 48
    %v3069 = vpop.permute.xlu0 %3068
    %3070 = vrot.lane.b32.xlu0 %v3047, 48
    %v3071 = vpop.permute.xlu0 %3070
    %3072 = vrot.lane.b32.xlu0 %v3048, 48
    %v3073 = vpop.permute.xlu0 %3072
    %3074 = vrot.lane.b32.xlu0 %v3049, 48
    %v3075 = vpop.permute.xlu0 %3074
    %3076 = vrot.lane.b32.xlu0 %v3050, 48
    %v3077 = vpop.permute.xlu0 %3076
    %vm3087 = vcmask 523648
    %3088 = vst.msk [vmem:[#allocation7] sm:$0xff] %vm3087, %v3061
    %3089 = vst.msk [vmem:[#allocation7 + $0x10] sm:$0xff] %vm3087, %v3063
    %3090 = vst.msk [vmem:[#allocation7 + $0x20] sm:$0xff] %vm3087, %v3065
    %3091 = vst.msk [vmem:[#allocation7 + $0x30] sm:$0xff] %vm3087, %v3067
    %3092 = vst.msk [vmem:[#allocation7 + $0x40] sm:$0xff] %vm3087, %v3069
    %3093 = vst.msk [vmem:[#allocation7 + $0x50] sm:$0xff] %vm3087, %v3071
    %3094 = vst.msk [vmem:[#allocation7 + $0x60] sm:$0xff] %vm3087, %v3073
    %3095 = vst.msk [vmem:[#allocation7 + $0x70] sm:$0xff] %vm3087, %v3075
    %3096 = vst.msk [vmem:[#allocation7 + $0x80] sm:$0xff] %vm3087, %v3077
    %v3097 = vld [vmem:[#allocation6 + $0x8] sm:$0xff]
    %v3098 = vld [vmem:[#allocation6 + $0x10] sm:$0xff]
    %v3099 = vld [vmem:[#allocation6 + $0x18] sm:$0xff]
    %v3100 = vld [vmem:[#allocation6 + $0x20] sm:$0xff]
    %v3101 = vld [vmem:[#allocation6 + $0x28] sm:$0xff]
    %v3102 = vld [vmem:[#allocation6 + $0x30] sm:$0xff]
    %v3103 = vld [vmem:[#allocation6 + $0x38] sm:$0xff]
    %v3104 = vld [vmem:[#allocation6 + $0x40] sm:$0xff]
    %v3105 = vld [vmem:[#allocation6 + $0x48] sm:$0xff]
    %3115 = vrot.lane.b32.xlu0 %v3097, 64
    %v3116 = vpop.permute.xlu0 %3115
    %3117 = vrot.lane.b32.xlu0 %v3098, 64
    %v3118 = vpop.permute.xlu0 %3117
    %3119 = vrot.lane.b32.xlu0 %v3099, 64
    %v3120 = vpop.permute.xlu0 %3119
    %3121 = vrot.lane.b32.xlu0 %v3100, 64
    %v3122 = vpop.permute.xlu0 %3121
    %3123 = vrot.lane.b32.xlu0 %v3101, 64
    %v3124 = vpop.permute.xlu0 %3123
    %3125 = vrot.lane.b32.xlu0 %v3102, 64
    %v3126 = vpop.permute.xlu0 %3125
    %3127 = vrot.lane.b32.xlu0 %v3103, 64
    %v3128 = vpop.permute.xlu0 %3127
    %3129 = vrot.lane.b32.xlu0 %v3104, 64
    %v3130 = vpop.permute.xlu0 %3129
    %3131 = vrot.lane.b32.xlu0 %v3105, 64
    %v3132 = vpop.permute.xlu0 %3131
    %vm3142 = vcmask 654848
    %3143 = vst.msk [vmem:[#allocation7] sm:$0xff] %vm3142, %v3116
    %3144 = vst.msk [vmem:[#allocation7 + $0x10] sm:$0xff] %vm3142, %v3118
    %3145 = vst.msk [vmem:[#allocation7 + $0x20] sm:$0xff] %vm3142, %v3120
    %3146 = vst.msk [vmem:[#allocation7 + $0x30] sm:$0xff] %vm3142, %v3122
    %3147 = vst.msk [vmem:[#allocation7 + $0x40] sm:$0xff] %vm3142, %v3124
    %3148 = vst.msk [vmem:[#allocation7 + $0x50] sm:$0xff] %vm3142, %v3126
    %3149 = vst.msk [vmem:[#allocation7 + $0x60] sm:$0xff] %vm3142, %v3128
    %3150 = vst.msk [vmem:[#allocation7 + $0x70] sm:$0xff] %vm3142, %v3130
    %3151 = vst.msk [vmem:[#allocation7 + $0x80] sm:$0xff] %vm3142, %v3132
    %v3152 = vld [vmem:[#allocation6 + $0x9] sm:$0xff]
    %v3153 = vld [vmem:[#allocation6 + $0x11] sm:$0xff]
    %v3154 = vld [vmem:[#allocation6 + $0x19] sm:$0xff]
    %v3155 = vld [vmem:[#allocation6 + $0x21] sm:$0xff]
    %v3156 = vld [vmem:[#allocation6 + $0x29] sm:$0xff]
    %v3157 = vld [vmem:[#allocation6 + $0x31] sm:$0xff]
    %v3158 = vld [vmem:[#allocation6 + $0x39] sm:$0xff]
    %v3159 = vld [vmem:[#allocation6 + $0x41] sm:$0xff]
    %v3160 = vld [vmem:[#allocation6 + $0x49] sm:$0xff]
    %3170 = vrot.lane.b32.xlu0 %v3152, 80
    %v3171 = vpop.permute.xlu0 %3170
    %3172 = vrot.lane.b32.xlu0 %v3153, 80
    %v3173 = vpop.permute.xlu0 %3172
    %3174 = vrot.lane.b32.xlu0 %v3154, 80
    %v3175 = vpop.permute.xlu0 %3174
    %3176 = vrot.lane.b32.xlu0 %v3155, 80
    %v3177 = vpop.permute.xlu0 %3176
    %3178 = vrot.lane.b32.xlu0 %v3156, 80
    %v3179 = vpop.permute.xlu0 %3178
    %3180 = vrot.lane.b32.xlu0 %v3157, 80
    %v3181 = vpop.permute.xlu0 %3180
    %3182 = vrot.lane.b32.xlu0 %v3158, 80
    %v3183 = vpop.permute.xlu0 %3182
    %3184 = vrot.lane.b32.xlu0 %v3159, 80
    %v3185 = vpop.permute.xlu0 %3184
    %3186 = vrot.lane.b32.xlu0 %v3160, 80
    %v3187 = vpop.permute.xlu0 %3186
    %vm3197 = vcmask 786048
    %3198 = vst.msk [vmem:[#allocation7] sm:$0xff] %vm3197, %v3171
    %3199 = vst.msk [vmem:[#allocation7 + $0x10] sm:$0xff] %vm3197, %v3173
    %3200 = vst.msk [vmem:[#allocation7 + $0x20] sm:$0xff] %vm3197, %v3175
    %3201 = vst.msk [vmem:[#allocation7 + $0x30] sm:$0xff] %vm3197, %v3177
    %3202 = vst.msk [vmem:[#allocation7 + $0x40] sm:$0xff] %vm3197, %v3179
    %3203 = vst.msk [vmem:[#allocation7 + $0x50] sm:$0xff] %vm3197, %v3181
    %3204 = vst.msk [vmem:[#allocation7 + $0x60] sm:$0xff] %vm3197, %v3183
    %3205 = vst.msk [vmem:[#allocation7 + $0x70] sm:$0xff] %vm3197, %v3185
    %3206 = vst.msk [vmem:[#allocation7 + $0x80] sm:$0xff] %vm3197, %v3187
    %v3207 = vld [vmem:[#allocation6 + $0xd] sm:$0xff]
    %v3208 = vld [vmem:[#allocation6 + $0x15] sm:$0xff]
    %v3209 = vld [vmem:[#allocation6 + $0x1d] sm:$0xff]
    %v3210 = vld [vmem:[#allocation6 + $0x25] sm:$0xff]
    %v3211 = vld [vmem:[#allocation6 + $0x2d] sm:$0xff]
    %v3212 = vld [vmem:[#allocation6 + $0x35] sm:$0xff]
    %v3213 = vld [vmem:[#allocation6 + $0x3d] sm:$0xff]
    %v3214 = vld [vmem:[#allocation6 + $0x45] sm:$0xff]
    %v3215 = vld [vmem:[#allocation6 + $0x4d] sm:$0xff]
    %3225 = vrot.lane.b32.xlu0 %v3207, 96
    %v3226 = vpop.permute.xlu0 %3225
    %3227 = vrot.lane.b32.xlu0 %v3208, 96
    %v3228 = vpop.permute.xlu0 %3227
    %3229 = vrot.lane.b32.xlu0 %v3209, 96
    %v3230 = vpop.permute.xlu0 %3229
    %3231 = vrot.lane.b32.xlu0 %v3210, 96
    %v3232 = vpop.permute.xlu0 %3231
    %3233 = vrot.lane.b32.xlu0 %v3211, 96
    %v3234 = vpop.permute.xlu0 %3233
    %3235 = vrot.lane.b32.xlu0 %v3212, 96
    %v3236 = vpop.permute.xlu0 %3235
    %3237 = vrot.lane.b32.xlu0 %v3213, 96
    %v3238 = vpop.permute.xlu0 %3237
    %3239 = vrot.lane.b32.xlu0 %v3214, 96
    %v3240 = vpop.permute.xlu0 %3239
    %3241 = vrot.lane.b32.xlu0 %v3215, 96
    %v3242 = vpop.permute.xlu0 %3241
    %vm3252 = vcmask 917248
    %3253 = vst.msk [vmem:[#allocation7] sm:$0xff] %vm3252, %v3226
    %3254 = vst.msk [vmem:[#allocation7 + $0x10] sm:$0xff] %vm3252, %v3228
    %3255 = vst.msk [vmem:[#allocation7 + $0x20] sm:$0xff] %vm3252, %v3230
    %3256 = vst.msk [vmem:[#allocation7 + $0x30] sm:$0xff] %vm3252, %v3232
    %3257 = vst.msk [vmem:[#allocation7 + $0x40] sm:$0xff] %vm3252, %v3234
    %3258 = vst.msk [vmem:[#allocation7 + $0x50] sm:$0xff] %vm3252, %v3236
    %3259 = vst.msk [vmem:[#allocation7 + $0x60] sm:$0xff] %vm3252, %v3238
    %3260 = vst.msk [vmem:[#allocation7 + $0x70] sm:$0xff] %vm3252, %v3240
    %3261 = vst.msk [vmem:[#allocation7 + $0x80] sm:$0xff] %vm3252, %v3242
    %v3262 = vld [vmem:[#allocation6 + $0xe] sm:$0xff]
    %v3263 = vld [vmem:[#allocation6 + $0x16] sm:$0xff]
    %v3264 = vld [vmem:[#allocation6 + $0x1e] sm:$0xff]
    %v3265 = vld [vmem:[#allocation6 + $0x26] sm:$0xff]
    %v3266 = vld [vmem:[#allocation6 + $0x2e] sm:$0xff]
    %v3267 = vld [vmem:[#allocation6 + $0x36] sm:$0xff]
    %v3268 = vld [vmem:[#allocation6 + $0x3e] sm:$0xff]
    %v3269 = vld [vmem:[#allocation6 + $0x46] sm:$0xff]
    %v3270 = vld [vmem:[#allocation6 + $0x4e] sm:$0xff]
    %3280 = vrot.lane.b32.xlu0 %v3262, 112
    %v3281 = vpop.permute.xlu0 %3280
    %3282 = vrot.lane.b32.xlu0 %v3263, 112
    %v3283 = vpop.permute.xlu0 %3282
    %3284 = vrot.lane.b32.xlu0 %v3264, 112
    %v3285 = vpop.permute.xlu0 %3284
    %3286 = vrot.lane.b32.xlu0 %v3265, 112
    %v3287 = vpop.permute.xlu0 %3286
    %3288 = vrot.lane.b32.xlu0 %v3266, 112
    %v3289 = vpop.permute.xlu0 %3288
    %3290 = vrot.lane.b32.xlu0 %v3267, 112
    %v3291 = vpop.permute.xlu0 %3290
    %3292 = vrot.lane.b32.xlu0 %v3268, 112
    %v3293 = vpop.permute.xlu0 %3292
    %3294 = vrot.lane.b32.xlu0 %v3269, 112
    %v3295 = vpop.permute.xlu0 %3294
    %3296 = vrot.lane.b32.xlu0 %v3270, 112
    %v3297 = vpop.permute.xlu0 %3296
    %vm3307 = vcmask 1048448
    %3308 = vst.msk [vmem:[#allocation7] sm:$0xff] %vm3307, %v3281
    %3309 = vst.msk [vmem:[#allocation7 + $0x10] sm:$0xff] %vm3307, %v3283
    %3310 = vst.msk [vmem:[#allocation7 + $0x20] sm:$0xff] %vm3307, %v3285
    %3311 = vst.msk [vmem:[#allocation7 + $0x30] sm:$0xff] %vm3307, %v3287
    %3312 = vst.msk [vmem:[#allocation7 + $0x40] sm:$0xff] %vm3307, %v3289
    %3313 = vst.msk [vmem:[#allocation7 + $0x50] sm:$0xff] %vm3307, %v3291
    %3314 = vst.msk [vmem:[#allocation7 + $0x60] sm:$0xff] %vm3307, %v3293
    %3315 = vst.msk [vmem:[#allocation7 + $0x70] sm:$0xff] %vm3307, %v3295
    %3316 = vst.msk [vmem:[#allocation7 + $0x80] sm:$0xff] %vm3307, %v3297
    %v3317 = vld [vmem:[#allocation6 + $0xf] sm:$0xff]
    %v3318 = vld [vmem:[#allocation6 + $0x17] sm:$0xff]
    %v3319 = vld [vmem:[#allocation6 + $0x1f] sm:$0xff]
    %v3320 = vld [vmem:[#allocation6 + $0x27] sm:$0xff]
    %v3321 = vld [vmem:[#allocation6 + $0x2f] sm:$0xff]
    %v3322 = vld [vmem:[#allocation6 + $0x37] sm:$0xff]
    %v3323 = vld [vmem:[#allocation6 + $0x3f] sm:$0xff]
    %v3324 = vld [vmem:[#allocation6 + $0x47] sm:$0xff]
    %v3325 = vld [vmem:[#allocation6 + $0x4f] sm:$0xff]
    %3326 = vst.msk [vmem:[#allocation7 + $0x8] sm:$0xff] %vm2652, %v3317
    %3327 = vst.msk [vmem:[#allocation7 + $0x18] sm:$0xff] %vm2652, %v3318
    %3328 = vst.msk [vmem:[#allocation7 + $0x28] sm:$0xff] %vm2652, %v3319
    %3329 = vst.msk [vmem:[#allocation7 + $0x38] sm:$0xff] %vm2652, %v3320
    %3330 = vst.msk [vmem:[#allocation7 + $0x48] sm:$0xff] %vm2652, %v3321
    %3331 = vst.msk [vmem:[#allocation7 + $0x58] sm:$0xff] %vm2652, %v3322
    %3332 = vst.msk [vmem:[#allocation7 + $0x68] sm:$0xff] %vm2652, %v3323
    %3333 = vst.msk [vmem:[#allocation7 + $0x78] sm:$0xff] %vm2652, %v3324
    %3334 = vst.msk [vmem:[#allocation7 + $0x88] sm:$0xff] %vm2652, %v3325
    %v3335 = vld [vmem:[#allocation7] sm:$0xff]
    %v3336 = vld [vmem:[#allocation7 + $0x8] sm:$0xff]
    %v3337 = vld [vmem:[#allocation7 + $0x10] sm:$0xff]
    %v3338 = vld [vmem:[#allocation7 + $0x18] sm:$0xff]
    %v3339 = vld [vmem:[#allocation7 + $0x20] sm:$0xff]
    %v3340 = vld [vmem:[#allocation7 + $0x28] sm:$0xff]
    %v3341 = vld [vmem:[#allocation7 + $0x30] sm:$0xff]
    %v3342 = vld [vmem:[#allocation7 + $0x38] sm:$0xff]
    %v3343 = vld [vmem:[#allocation7 + $0x40] sm:$0xff]
    %v3344 = vld [vmem:[#allocation7 + $0x48] sm:$0xff]
    %v3345 = vld [vmem:[#allocation7 + $0x50] sm:$0xff]
    %v3346 = vld [vmem:[#allocation7 + $0x58] sm:$0xff]
    %v3347 = vld [vmem:[#allocation7 + $0x60] sm:$0xff]
    %v3348 = vld [vmem:[#allocation7 + $0x68] sm:$0xff]
    %v3349 = vld [vmem:[#allocation7 + $0x70] sm:$0xff]
    %v3350 = vld [vmem:[#allocation7 + $0x78] sm:$0xff]
    %v3351 = vld [vmem:[#allocation7 + $0x80] sm:$0xff]
    %v3352 = vld [vmem:[#allocation7 + $0x88] sm:$0xff]
    %v3353 = vld [vmem:[%s5] sm:$0xff]
    %v3354 = vld [vmem:[%s5 + $0x8] sm:$0xff]
    %v3355 = vld [vmem:[%s5 + $0x10] sm:$0xff]
    %v3356 = vld [vmem:[%s5 + $0x18] sm:$0xff]
    %v3357 = vld [vmem:[%s5 + $0x20] sm:$0xff]
    %v3358 = vld [vmem:[%s5 + $0x28] sm:$0xff]
    %v3359 = vld [vmem:[%s5 + $0x30] sm:$0xff]
    %v3360 = vld [vmem:[%s5 + $0x38] sm:$0xff]
    %v3361 = vld [vmem:[%s5 + $0x40] sm:$0xff]
    %v3362 = vld [vmem:[%s5 + $0x48] sm:$0xff]
    %v3363 = vld [vmem:[%s5 + $0x50] sm:$0xff]
    %v3364 = vld [vmem:[%s5 + $0x58] sm:$0xff]
    %v3365 = vld [vmem:[%s5 + $0x60] sm:$0xff]
    %v3366 = vld [vmem:[%s5 + $0x68] sm:$0xff]
    %v3367 = vld [vmem:[%s5 + $0x70] sm:$0xff]
    %v3368 = vld [vmem:[%s5 + $0x78] sm:$0xff]
    %v3369 = vld [vmem:[%s5 + $0x80] sm:$0xff]
    %v3370 = vld [vmem:[%s5 + $0x88] sm:$0xff]
    %v3371 = vld [vmem:[%s6] sm:$0x1]
    %v3373 = vperm.slane %v3371, 0
    %v3376 = vsel %vm2652, %v3336, 0
    %v3379 = vsel %vm2652, %v3338, 0
    %v3382 = vsel %vm2652, %v3340, 0
    %v3385 = vsel %vm2652, %v3342, 0
    %v3388 = vsel %vm2652, %v3344, 0
    %v3391 = vsel %vm2652, %v3346, 0
    %v3394 = vsel %vm2652, %v3348, 0
    %v3397 = vsel %vm2652, %v3350, 0
    %v3400 = vsel %vm2652, %v3352, 0
    %3402 = vmatpush.msra.mxu0 %v3368
    %3403 = vmatpush.msra.mxu0 %v3367
    %3404 = vmatpush.msra.mxu0 %v3366
    %3405 = vmatpush.msra.mxu0 %v3365
    %3406 = vmatpush.msra.mxu0 %v3364
    %3407 = vmatpush.msra.mxu0 %v3363
    %3408 = vmatpush.msra.mxu0 %v3362
    %3409 = vmatpush.msra.mxu0 %v3361
    %3410 = vmatpush.msra.mxu0 %v3360
    %3411 = vmatpush.msra.mxu0 %v3359
    %3412 = vmatpush.msra.mxu0 %v3358
    %3413 = vmatpush.msra.mxu0 %v3357
    %3414 = vmatpush.msra.mxu0 %v3356
    %3415 = vmatpush.msra.mxu0 %v3355
    %3416 = vmatpush.msra.mxu0 %v3354
    %3417 = vmatpush.msra.mxu0 %v3353
    %3418 = vmatmul.f32.gmra.mxu0 %v3335
    %v3419 = vpop.f32.mrf.mxu0
    %v3420 = vadd.f32 %v3373, %v3419
    %3421 = vmatmul.f32.gmra.mxu0 %v3337
    %v3422 = vpop.f32.mrf.mxu0
    %v3423 = vadd.f32 %v3373, %v3422
    %3424 = vmatmul.f32.gmra.mxu0 %v3339
    %v3425 = vpop.f32.mrf.mxu0
    %v3426 = vadd.f32 %v3373, %v3425
    %3427 = vmatmul.f32.gmra.mxu0 %v3341
    %v3428 = vpop.f32.mrf.mxu0
    %v3429 = vadd.f32 %v3373, %v3428
    %3430 = vmatmul.f32.gmra.mxu0 %v3343
    %v3431 = vpop.f32.mrf.mxu0
    %v3432 = vadd.f32 %v3373, %v3431
    %3433 = vmatmul.f32.gmra.mxu0 %v3345
    %v3434 = vpop.f32.mrf.mxu0
    %v3435 = vadd.f32 %v3373, %v3434
    %3436 = vmatmul.f32.gmra.mxu0 %v3347
    %v3437 = vpop.f32.mrf.mxu0
    %v3438 = vadd.f32 %v3373, %v3437
    %3439 = vmatmul.f32.gmra.mxu0 %v3349
    %v3440 = vpop.f32.mrf.mxu0
    %v3441 = vadd.f32 %v3373, %v3440
    %3442 = vmatmul.f32.gmra.mxu0 %v3351
    %v3443 = vpop.f32.mrf.mxu0
    %v3444 = vadd.f32 %v3373, %v3443
    %3445 = vdwg.mxu0
    %3446 = vmatpush.msra.mxu0 0.0
    %3447 = vmatpush.msra.mxu0 0.0
    %3448 = vmatpush.msra.mxu0 0.0
    %3449 = vmatpush.msra.mxu0 0.0
    %3450 = vmatpush.msra.mxu0 0.0
    %3451 = vmatpush.msra.mxu0 0.0
    %3452 = vmatpush.msra.mxu0 0.0
    %3453 = vmatpush.msra.mxu0 0.0
    %3454 = vmatpush.msra.mxu0 0.0
    %3455 = vmatpush.msra.mxu0 0.0
    %3456 = vmatpush.msra.mxu0 0.0
    %3457 = vmatpush.msra.mxu0 0.0
    %3458 = vmatpush.msra.mxu0 0.0
    %3459 = vmatpush.msra.mxu0 0.0
    %3460 = vmatpush.msra.mxu0 %v3370
    %3461 = vmatpush.msra.mxu0 %v3369
    %3462 = vmatmul.f32.gmra.mxu0 %v3376
    %v3463 = vpop.f32.mrf.mxu0
    %v3464 = vadd.f32 %v3420, %v3463
    %3465 = vmatmul.f32.gmra.mxu0 %v3379
    %v3466 = vpop.f32.mrf.mxu0
    %v3467 = vadd.f32 %v3423, %v3466
    %3468 = vmatmul.f32.gmra.mxu0 %v3382
    %v3469 = vpop.f32.mrf.mxu0
    %v3470 = vadd.f32 %v3426, %v3469
    %3471 = vmatmul.f32.gmra.mxu0 %v3385
    %v3472 = vpop.f32.mrf.mxu0
    %v3473 = vadd.f32 %v3429, %v3472
    %3474 = vmatmul.f32.gmra.mxu0 %v3388
    %v3475 = vpop.f32.mrf.mxu0
    %v3476 = vadd.f32 %v3432, %v3475
    %3477 = vmatmul.f32.gmra.mxu0 %v3391
    %v3478 = vpop.f32.mrf.mxu0
    %v3479 = vadd.f32 %v3435, %v3478
    %3480 = vmatmul.f32.gmra.mxu0 %v3394
    %v3481 = vpop.f32.mrf.mxu0
    %v3482 = vadd.f32 %v3438, %v3481
    %3483 = vmatmul.f32.gmra.mxu0 %v3397
    %v3484 = vpop.f32.mrf.mxu0
    %v3485 = vadd.f32 %v3441, %v3484
    %3486 = vmatmul.f32.gmra.mxu0 %v3400
    %v3487 = vpop.f32.mrf.mxu0
    %v3488 = vadd.f32 %v3444, %v3487
    %3489 = vdwg.mxu0
    %v3490 = vmax.f32 %v3464, 0.0
    %v3491 = vmax.f32 %v3467, 0.0
    %v3492 = vmax.f32 %v3470, 0.0
    %v3493 = vmax.f32 %v3473, 0.0
    %v3494 = vmax.f32 %v3476, 0.0
    %v3495 = vmax.f32 %v3479, 0.0
    %v3496 = vmax.f32 %v3482, 0.0
    %v3497 = vmax.f32 %v3485, 0.0
    %v3498 = vmax.f32 %v3488, 0.0
    %3499 = vst.msk [vmem:[#allocation8] sm:$0xff] %vm2652, %v3490
    %3500 = vst.msk [vmem:[#allocation8 + $0x8] sm:$0xff] %vm2652, %v3491
    %3501 = vst.msk [vmem:[#allocation8 + $0x10] sm:$0xff] %vm2652, %v3492
    %3502 = vst.msk [vmem:[#allocation8 + $0x18] sm:$0xff] %vm2652, %v3493
    %3503 = vst.msk [vmem:[#allocation8 + $0x20] sm:$0xff] %vm2652, %v3494
    %3504 = vst.msk [vmem:[#allocation8 + $0x28] sm:$0xff] %vm2652, %v3495
    %3505 = vst.msk [vmem:[#allocation8 + $0x30] sm:$0xff] %vm2652, %v3496
    %3506 = vst.msk [vmem:[#allocation8 + $0x38] sm:$0xff] %vm2652, %v3497
    %3507 = vst.msk [vmem:[#allocation8 + $0x40] sm:$0xff] %vm2652, %v3498
    %v3508 = vld [vmem:[#allocation8] sm:$0xff]
    %v3509 = vld [vmem:[#allocation8 + $0x8] sm:$0xff]
    %v3510 = vld [vmem:[#allocation8 + $0x10] sm:$0xff]
    %v3511 = vld [vmem:[#allocation8 + $0x18] sm:$0xff]
    %v3512 = vld [vmem:[#allocation8 + $0x20] sm:$0xff]
    %v3513 = vld [vmem:[#allocation8 + $0x28] sm:$0xff]
    %v3514 = vld [vmem:[#allocation8 + $0x30] sm:$0xff]
    %v3515 = vld [vmem:[#allocation8 + $0x38] sm:$0xff]
    %v3516 = vld [vmem:[#allocation8 + $0x40] sm:$0xff]
    %v3517 = vld [vmem:[#allocation8 + $0x1] sm:$0xff]
    %v3518 = vld [vmem:[#allocation8 + $0x9] sm:$0xff]
    %v3519 = vld [vmem:[#allocation8 + $0x11] sm:$0xff]
    %v3520 = vld [vmem:[#allocation8 + $0x19] sm:$0xff]
    %v3521 = vld [vmem:[#allocation8 + $0x21] sm:$0xff]
    %v3522 = vld [vmem:[#allocation8 + $0x29] sm:$0xff]
    %v3523 = vld [vmem:[#allocation8 + $0x31] sm:$0xff]
    %v3524 = vld [vmem:[#allocation8 + $0x39] sm:$0xff]
    %v3525 = vld [vmem:[#allocation8 + $0x41] sm:$0xff]
    %v3526 = vmax.f32 %v3508, %v3517
    %v3527 = vmax.f32 %v3509, %v3518
    %v3528 = vmax.f32 %v3510, %v3519
    %v3529 = vmax.f32 %v3511, %v3520
    %v3530 = vmax.f32 %v3512, %v3521
    %v3531 = vmax.f32 %v3513, %v3522
    %v3532 = vmax.f32 %v3514, %v3523
    %v3533 = vmax.f32 %v3515, %v3524
    %v3534 = vmax.f32 %v3516, %v3525
    %v3535 = vld [vmem:[#allocation8 + $0x6] sm:$0xff]
    %v3536 = vld [vmem:[#allocation8 + $0xe] sm:$0xff]
    %v3537 = vld [vmem:[#allocation8 + $0x16] sm:$0xff]
    %v3538 = vld [vmem:[#allocation8 + $0x1e] sm:$0xff]
    %v3539 = vld [vmem:[#allocation8 + $0x26] sm:$0xff]
    %v3540 = vld [vmem:[#allocation8 + $0x2e] sm:$0xff]
    %v3541 = vld [vmem:[#allocation8 + $0x36] sm:$0xff]
    %v3542 = vld [vmem:[#allocation8 + $0x3e] sm:$0xff]
    %v3543 = vld [vmem:[#allocation8 + $0x46] sm:$0xff]
    %v3544 = vmax.f32 %v3526, %v3535
    %v3545 = vmax.f32 %v3527, %v3536
    %v3546 = vmax.f32 %v3528, %v3537
    %v3547 = vmax.f32 %v3529, %v3538
    %v3548 = vmax.f32 %v3530, %v3539
    %v3549 = vmax.f32 %v3531, %v3540
    %v3550 = vmax.f32 %v3532, %v3541
    %v3551 = vmax.f32 %v3533, %v3542
    %v3552 = vmax.f32 %v3534, %v3543
    %v3553 = vld [vmem:[#allocation8 + $0x7] sm:$0xff]
    %v3554 = vld [vmem:[#allocation8 + $0xf] sm:$0xff]
    %v3555 = vld [vmem:[#allocation8 + $0x17] sm:$0xff]
    %v3556 = vld [vmem:[#allocation8 + $0x1f] sm:$0xff]
    %v3557 = vld [vmem:[#allocation8 + $0x27] sm:$0xff]
    %v3558 = vld [vmem:[#allocation8 + $0x2f] sm:$0xff]
    %v3559 = vld [vmem:[#allocation8 + $0x37] sm:$0xff]
    %v3560 = vld [vmem:[#allocation8 + $0x3f] sm:$0xff]
    %v3561 = vld [vmem:[#allocation8 + $0x47] sm:$0xff]
    %v3562 = vmax.f32 %v3544, %v3553
    %v3563 = vmax.f32 %v3545, %v3554
    %v3564 = vmax.f32 %v3546, %v3555
    %v3565 = vmax.f32 %v3547, %v3556
    %v3566 = vmax.f32 %v3548, %v3557
    %v3567 = vmax.f32 %v3549, %v3558
    %v3568 = vmax.f32 %v3550, %v3559
    %v3569 = vmax.f32 %v3551, %v3560
    %v3570 = vmax.f32 %v3552, %v3561
    %3571 = vst.msk [vmem:[#allocation8] sm:$0xff] %vm2652, %v3562
    %3572 = vst.msk [vmem:[#allocation8 + $0x8] sm:$0xff] %vm2652, %v3563
    %3573 = vst.msk [vmem:[#allocation8 + $0x10] sm:$0xff] %vm2652, %v3564
    %3574 = vst.msk [vmem:[#allocation8 + $0x18] sm:$0xff] %vm2652, %v3565
    %3575 = vst.msk [vmem:[#allocation8 + $0x20] sm:$0xff] %vm2652, %v3566
    %3576 = vst.msk [vmem:[#allocation8 + $0x28] sm:$0xff] %vm2652, %v3567
    %3577 = vst.msk [vmem:[#allocation8 + $0x30] sm:$0xff] %vm2652, %v3568
    %3578 = vst.msk [vmem:[#allocation8 + $0x38] sm:$0xff] %vm2652, %v3569
    %3579 = vst.msk [vmem:[#allocation8 + $0x40] sm:$0xff] %vm2652, %v3570
    %s3580 = scalar_lea.vmem [#allocation8], 7
    %v3581 = vld [vmem:[%s3580] ss:$36 sm:$0x3]
    %vm3582 = vcmask 123904
    %3583 = vst.msk [vmem:[#allocation9] sm:$0x3] %vm3582, %v3581
    %s3584 = scalar_lea.vmem [#allocation8], 9
    %v3585 = vld [vmem:[%s3584] ss:$36 sm:$0x3]
    %3587 = vrot.lane.b32.xlu0 %v3585, 16
    %v3588 = vpop.permute.xlu0 %3587
    %vm3590 = vcmask 255104
    %3591 = vst.msk [vmem:[#allocation9] sm:$0x3] %vm3590, %v3588
    %s3592 = scalar_lea.vmem [#allocation8], 19
    %v3593 = vld [vmem:[%s3592] ss:$36 sm:$0x3]
    %3595 = vrot.lane.b32.xlu0 %v3593, 32
    %v3596 = vpop.permute.xlu0 %3595
    %vm3598 = vcmask 386304
    %3599 = vst.msk [vmem:[#allocation9] sm:$0x3] %vm3598, %v3596
    %s3600 = scalar_lea.vmem [#allocation8], 21
    %v3601 = vld [vmem:[%s3600] ss:$36 sm:$0x3]
    %3603 = vrot.lane.b32.xlu0 %v3601, 48
    %v3604 = vpop.permute.xlu0 %3603
    %vm3606 = vcmask 517504
    %3607 = vst.msk [vmem:[#allocation9] sm:$0x3] %vm3606, %v3604
    %v3608 = vld [vmem:[#allocation9] sm:$0x3]
    %v3609 = vld [vmem:[%s7] sm:$0xff]
    %v3610 = vld [vmem:[%s7 + $0x8] sm:$0xff]
    %v3611 = vld [vmem:[%s7 + $0x10] sm:$0xff]
    %v3612 = vld [vmem:[%s7 + $0x18] sm:$0xff]
    %v3613 = vld [vmem:[%s7 + $0x20] sm:$0xff]
    %v3614 = vld [vmem:[%s7 + $0x28] sm:$0xff]
    %v3615 = vld [vmem:[%s7 + $0x30] sm:$0xff]
    %v3616 = vld [vmem:[%s7 + $0x38] sm:$0xff]
    %v3617 = vld [vmem:[%s8] sm:$0x1]
    %v3619 = vperm.slane %v3617, 0
    %vm3621 = vcmask 523264
    %v3623 = vsel %vm3621, %v3608, 0
    %3625 = vmatpush.msra.mxu0 0.0
    %3626 = vmatpush.msra.mxu0 0.0
    %3627 = vmatpush.msra.mxu0 0.0
    %3628 = vmatpush.msra.mxu0 0.0
    %3629 = vmatpush.msra.mxu0 0.0
    %3630 = vmatpush.msra.mxu0 0.0
    %3631 = vmatpush.msra.mxu0 0.0
    %3632 = vmatpush.msra.mxu0 0.0
    %3633 = vmatpush.msra.mxu0 %v3616
    %3634 = vmatpush.msra.mxu0 %v3615
    %3635 = vmatpush.msra.mxu0 %v3614
    %3636 = vmatpush.msra.mxu0 %v3613
    %3637 = vmatpush.msra.mxu0 %v3612
    %3638 = vmatpush.msra.mxu0 %v3611
    %3639 = vmatpush.msra.mxu0 %v3610
    %3640 = vmatpush.msra.mxu0 %v3609
    %3641 = vmatmul.f32.gmra.mxu0 %v3623
    %v3642 = vpop.f32.mrf.mxu0
    %v3643 = vadd.f32 %v3619, %v3642
    %3644 = vdwg.mxu0
    %v3645 = vmax.f32 %v3643, 0.0
    %v3646 = vld [vmem:[%s9] sm:$0xff]
    %v3647 = vld [vmem:[%s9 + $0x8] sm:$0xff]
    %v3648 = vld [vmem:[%s9 + $0x10] sm:$0xff]
    %v3649 = vld [vmem:[%s9 + $0x18] sm:$0xff]
    %v3650 = vld [vmem:[%s10] sm:$0x1]
    %v3652 = vperm.slane %v3650, 0
    %v3655 = vsel %vm579, %v3645, 0
    %3657 = vmatpush.msra.mxu0 0.0
    %3658 = vmatpush.msra.mxu0 0.0
    %3659 = vmatpush.msra.mxu0 0.0
    %3660 = vmatpush.msra.mxu0 0.0
    %3661 = vmatpush.msra.mxu0 0.0
    %3662 = vmatpush.msra.mxu0 0.0
    %3663 = vmatpush.msra.mxu0 0.0
    %3664 = vmatpush.msra.mxu0 0.0
    %3665 = vmatpush.msra.mxu0 0.0
    %3666 = vmatpush.msra.mxu0 0.0
    %3667 = vmatpush.msra.mxu0 0.0
    %3668 = vmatpush.msra.mxu0 0.0
    %3669 = vmatpush.msra.mxu0 %v3649
    %3670 = vmatpush.msra.mxu0 %v3648
    %3671 = vmatpush.msra.mxu0 %v3647
    %3672 = vmatpush.msra.mxu0 %v3646
    %3673 = vmatmul.f32.gmra.mxu0 %v3655
    %v3674 = vpop.f32.mrf.mxu0
    %v3675 = vadd.f32 %v3652, %v3674
    %3676 = vdwg.mxu0
    %3677 = vst [vmem:[#allocation10] sm:$0x3] %v3675
    // Predicated region
    $region46: #{net_depth_forward.1} parent=1 // pred_check
      _
    $region47: #{net_depth_forward.1} parent=1 // pred_check_branch
      %3679 = sbr.rel (0) target = $region49
    $region48: #{net_depth_forward.1} parent=1 // pred_region
      %3681 = vsyncadd [#allocation11], 0
      %s3683 = sshll.u32 [#allocation10], 4
      %s3684 = int_to_ptr.vmem [resolvable:$true] %s3683
      %s3685 = sshll.u32 %s11, 4
      %s3686 = int_to_ptr.hbm [resolvable:$true] %s3685
      %3688 = dma.vmem_to_hbm [thread:$0]  %s3684, 32, %s3686, [#allocation11]
    $region49: #{net_depth_forward.1} parent=1 // pred_fallthru
      _
    // Predicated region
    $region50: #{net_depth_forward.1} parent=1 // pred_check
      _
    $region51: #{net_depth_forward.1} parent=1 // pred_check_branch
      %3690 = sbr.rel (0) target = $region53
    $region52: #{net_depth_forward.1} parent=1 // pred_region
      %3692 = dma.done [#allocation11], 32
    $region53: #{net_depth_forward.1} parent=1 // pred_fallthru
      _
    %3693 = vsyncpa [#allocation11], 1

</llo_original>
